<compile_context>
chip_gen: v6e
topology: v6e:2x2x1
jax: 0.10.0
libtpu: 0.0.40
codegen_flags: <defaults>
</compile_context>

<pallas_src>
import math

import jax
import jax.numpy as jnp
from jax import lax
from jax.experimental import pallas as pl
from jax.experimental.pallas import tpu as pltpu


def _make_kernel(H, W, Cin, Cmid, Cout):
    HW = H * W

    def kernel(x_ref, w1_ref, s1_ref, b1_ref,
               w2_ref, s2_ref, b2_ref,
               w3_ref, s3_ref, b3_ref,
               o_ref, halo_ref):
        # x_ref:    (1, Cin, HW)      one image, NCHW with H*W flattened (lane axis = HW)
        # w1_ref:   (Cin, Cmid)       TE1 1x1 weight (transposed)
        # w2_ref:   (3, 3*Cmid, Cmid) TE2 3x3 weight, kh-major; rows = kw-blocks, each tap transposed
        # w3_ref:   (Cmid, Cout)      TE3 1x1 weight (transposed)
        # s*/b*:    (1, C) f32        folded BatchNorm scale / bias
        # o_ref:    (1, Cout, HW)     NCHW output block (lane axis = HW -> lane-dense store)
        # halo_ref: (HW+2W, 3*Cmid)   packed halo scratch (kw-blocks along lanes), x.dtype
        f32 = jnp.float32
        cdt = halo_ref.dtype                         # MXU compute dtype (== x.dtype)

        # ---- TE1: 1x1 conv -> BN -> ReLU --------------------------------
        xt = jnp.transpose(x_ref[0])                 # (HW, Cin): small in-kernel XLU transpose
        t1 = jnp.dot(xt, w1_ref[...], preferred_element_type=f32)
        t1 = jnp.maximum(t1 * s1_ref[...] + b1_ref[...], 0.0)      # (HW, Cmid) f32
        t1 = t1.astype(cdt)

        # ---- TE2: 3x3 conv (padding=1) -> BN -> ReLU --------------------
        # Single packed halo scratch: lane block kw (width Cmid) holds t1 stored at row
        # offset W + 1 - kw, with the row-edge columns pre-masked so the flattened +/-1
        # column shift cannot wrap across image rows. A contiguous, 8-aligned row slice at
        # kh*W then yields all three kw taps of row-shift (kh-1) at once, so the 3x3 conv
        # is just 3 GEMMs with K = 3*Cmid.
        col = lax.broadcasted_iota(jnp.int32, (HW, Cmid), 0) % W
        zero = jnp.zeros_like(t1)
        t1_nl = jnp.where(col != W - 1, t1, zero)    # zero last  column  (dw = -1 block)
        t1_nf = jnp.where(col != 0, t1, zero)        # zero first column  (dw = +1 block)

        zpad = jnp.zeros((W + 1, 3 * Cmid), cdt)
        halo_ref[pl.ds(0, W + 1), :] = zpad                          # top halo rows
        halo_ref[pl.ds(HW + W - 1, W + 1), :] = zpad                 # bottom halo rows
        halo_ref[pl.ds(W + 1, HW), pl.ds(0, Cmid)] = t1_nl           # kw = 0 (dw = -1)
        halo_ref[pl.ds(W, HW), pl.ds(Cmid, Cmid)] = t1               # kw = 1 (dw =  0)
        halo_ref[pl.ds(W - 1, HW), pl.ds(2 * Cmid, Cmid)] = t1_nf    # kw = 2 (dw = +1)

        acc = jnp.zeros((HW, Cmid), f32)
        for kh in range(3):                          # 3 GEMMs, K = 3*Cmid, aligned reads
            win = halo_ref[pl.ds(kh * W, HW), :]     # (HW, 3*Cmid)
            acc = acc + jnp.dot(win, w2_ref[kh], preferred_element_type=f32)
        t2 = jnp.maximum(acc * s2_ref[...] + b2_ref[...], 0.0)      # (HW, Cmid) f32

        # ---- TE3: 1x1 conv -> BN -> ReLU --------------------------------
        t3 = jnp.dot(t2.astype(cdt), w3_ref[...], preferred_element_type=f32)
        t3 = jnp.maximum(t3 * s3_ref[...] + b3_ref[...], 0.0)       # (HW, Cout) f32

        # Store channel-major (== NCHW): lane axis = HW -> unmasked lane-dense store.
        o_ref[0] = jnp.transpose(t3).astype(o_ref.dtype)

    return kernel


def _fold_bn(gamma, beta, mean, var, eps=1e-5):
    scale = (gamma / jnp.sqrt(var + eps)).astype(jnp.float32)
    bias = (beta - mean * scale).astype(jnp.float32)
    return scale, bias


def text_ecoding_forward(x, w1, bn1, w2, bn2, w3, bn3, *, eps=1e-5):
    """Fused forward of textEcoding (inference-mode BatchNorm).

    x:  (B, Cin, H, W) NCHW (any float dtype; MXU runs in x.dtype, accumulates f32)
    w1: (Cmid, Cin, 1, 1), w2: (Cmid, Cmid, 3, 3), w3: (Cout, Cmid, 1, 1)
    bn*: (gamma, beta, running_mean, running_var)
    returns (B, Cout, H, W) in x.dtype
    """
    B, Cin, H, W = x.shape
    Cmid = w1.shape[0]
    Cout = w3.shape[0]
    HW = H * W
    cdt = x.dtype                        # MXU-path dtype (no forced f32 upcast)

    # NCHW -> (B, Cin, HW): free reshape, no transpose / extra HBM pass.
    x_flat = x.reshape(B, Cin, HW)

    # 1x1 convs as right-multiplies; 3x3 weights kh-major with kw-blocks stacked along rows
    # (matching the lane packing of the halo scratch), each tap transposed to (Cin, Cout).
    w1t = jnp.transpose(w1.reshape(Cmid, Cin)).astype(cdt)                      # (Cin, Cmid)
    w2p = jnp.transpose(w2, (2, 3, 1, 0)).reshape(3, 3 * Cmid, Cmid).astype(cdt)
    w3t = jnp.transpose(w3.reshape(Cout, Cmid)).astype(cdt)                     # (Cmid, Cout)

    s1, b1 = _fold_bn(*bn1, eps=eps)
    s2, b2 = _fold_bn(*bn2, eps=eps)
    s3, b3 = _fold_bn(*bn3, eps=eps)
    s1, b1 = s1.reshape(1, Cmid), b1.reshape(1, Cmid)
    s2, b2 = s2.reshape(1, Cmid), b2.reshape(1, Cmid)
    s3, b3 = s3.reshape(1, Cout), b3.reshape(1, Cout)

    kernel = _make_kernel(H, W, Cin, Cmid, Cout)

    itemsize = jnp.dtype(x.dtype).itemsize
    w_itemsize = jnp.dtype(cdt).itemsize
    flops = 2 * B * HW * (Cin * Cmid + 9 * Cmid * Cmid + Cmid * Cout)
    bytes_accessed = (B * HW * (Cin + Cout) * itemsize
                      + (w1t.size + w2p.size + w3t.size) * w_itemsize
                      + 2 * (2 * Cmid + Cout) * 4)

    def full(a):
        nd = a.ndim
        return pl.BlockSpec(a.shape, lambda b, _nd=nd: (0,) * _nd)

    out = pl.pallas_call(
        kernel,
        out_shape=jax.ShapeDtypeStruct((B, Cout, HW), x.dtype),
        grid=(B,),
        in_specs=[
            pl.BlockSpec((1, Cin, HW), lambda b: (b, 0, 0)),
            full(w1t), full(s1), full(b1),
            full(w2p), full(s2), full(b2),
            full(w3t), full(s3), full(b3),
        ],
        out_specs=pl.BlockSpec((1, Cout, HW), lambda b: (b, 0, 0)),
        scratch_shapes=[pltpu.VMEM((HW + 2 * W, 3 * Cmid), cdt)],
        compiler_params=pltpu.CompilerParams(
            dimension_semantics=("parallel",)),
        cost_estimate=pl.CostEstimate(flops=flops, transcendentals=0,
                                      bytes_accessed=bytes_accessed),
    )(x_flat, w1t, s1, b1, w2p, s2, b2, w3t, s3, b3)

    # (B, Cout, HW) is already NCHW up to a free reshape.
    return out.reshape(B, Cout, H, W)


def _reference(x, w1, bn1, w2, bn2, w3, bn3, eps=1e-5):
    # Pure-JAX mirror of the PyTorch forward (eval-mode BatchNorm).
    def conv(y, w, pad):
        return lax.conv_general_dilated(
            y.astype(jnp.float32), w.astype(jnp.float32), (1, 1), pad,
            dimension_numbers=("NCHW", "OIHW", "NCHW"))

    def bn_relu(y, bn):
        gamma, beta, mean, var = bn
        scale = gamma / jnp.sqrt(var + eps)
        bias = beta - mean * scale
        y = y * scale[None, :, None, None] + bias[None, :, None, None]
        return jnp.maximum(y, 0.0)

    y = bn_relu(conv(x, w1, [(0, 0), (0, 0)]), bn1)
    y = bn_relu(conv(y, w2, [(1, 1), (1, 1)]), bn2)
    y = bn_relu(conv(y, w3, [(0, 0), (0, 0)]), bn3)
    return y.astype(x.dtype)


if __name__ == "__main__":
    key = jax.random.PRNGKey(0)
    keys = jax.random.split(key, 8)

    # textEcoding(input_channel=16, mid_channel=32, output_channel=16)
    B, Cin, Cmid, Cout, H, W = 2, 16, 32, 16, 16, 16

    x = jax.random.normal(keys[0], (B, Cin, H, W), dtype=jnp.float32)

    def uinit(k, shape, fan_in):
        bound = 1.0 / math.sqrt(fan_in)
        return jax.random.uniform(k, shape, jnp.float32, -bound, bound)

    w1 = uinit(keys[1], (Cmid, Cin, 1, 1), Cin * 1 * 1)
    w2 = uinit(keys[2], (Cmid, Cmid, 3, 3), Cmid * 3 * 3)
    w3 = uinit(keys[3], (Cout, Cmid, 1, 1), Cmid * 1 * 1)

    def bn_params(k, c):
        k1, k2, k3, k4 = jax.random.split(k, 4)
        gamma = jax.random.uniform(k1, (c,), jnp.float32, 0.5, 1.5)
        beta = 0.1 * jax.random.normal(k2, (c,), jnp.float32)
        mean = 0.1 * jax.random.normal(k3, (c,), jnp.float32)
        var = jax.random.uniform(k4, (c,), jnp.float32, 0.5, 1.5)
        return gamma, beta, mean, var

    bn1 = bn_params(keys[4], Cmid)
    bn2 = bn_params(keys[5], Cmid)
    bn3 = bn_params(keys[6], Cout)

    out = text_ecoding_forward(x, w1, bn1, w2, bn2, w3, bn3)
    out = jax.block_until_ready(out)

    ref = _reference(x, w1, bn1, w2, bn2, w3, bn3)
    assert out.shape == (B, Cout, H, W)
    max_err = float(jnp.max(jnp.abs(out - ref)))
    assert jnp.allclose(out, ref, atol=1e-3, rtol=1e-3), f"mismatch, max_err={max_err}"

    print("KERNEL_OK")
</pallas_src>

<mosaic_0001>
module attributes {stable_mosaic.version = 11 : i64} {
  func.func @kernel(%arg0: i32, %arg1: memref<1x16x256xf32, #tpu.memory_space<vmem>>, %arg2: memref<16x32xf32, #tpu.memory_space<vmem>>, %arg3: memref<1x32xf32, #tpu.memory_space<vmem>>, %arg4: memref<1x32xf32, #tpu.memory_space<vmem>>, %arg5: memref<3x96x32xf32, #tpu.memory_space<vmem>>, %arg6: memref<1x32xf32, #tpu.memory_space<vmem>>, %arg7: memref<1x32xf32, #tpu.memory_space<vmem>>, %arg8: memref<32x16xf32, #tpu.memory_space<vmem>>, %arg9: memref<1x16xf32, #tpu.memory_space<vmem>>, %arg10: memref<1x16xf32, #tpu.memory_space<vmem>>, %arg11: memref<1x16x256xf32, #tpu.memory_space<vmem>>, %arg12: memref<288x96xf32, #tpu.memory_space<vmem>>) attributes {dimension_semantics = [#tpu.dimension_semantics<parallel>], iteration_bounds = array<i64: 2>, scalar_prefetch = 0 : i64, scratch_operands = 1 : i64, tpu.core_type = #tpu.core_type<tc>, window_params = [{transform_indices = @transform_0, window_bounds = array<i64: 1, 16, 256>}, {pipeline_mode = #tpu.pipeline_mode<synchronous>, transform_indices = @transform_1, window_bounds = array<i64: 16, 32>}, {pipeline_mode = #tpu.pipeline_mode<synchronous>, transform_indices = @transform_2, window_bounds = array<i64: 1, 32>}, {pipeline_mode = #tpu.pipeline_mode<synchronous>, transform_indices = @transform_3, window_bounds = array<i64: 1, 32>}, {pipeline_mode = #tpu.pipeline_mode<synchronous>, transform_indices = @transform_4, window_bounds = array<i64: 3, 96, 32>}, {pipeline_mode = #tpu.pipeline_mode<synchronous>, transform_indices = @transform_5, window_bounds = array<i64: 1, 32>}, {pipeline_mode = #tpu.pipeline_mode<synchronous>, transform_indices = @transform_6, window_bounds = array<i64: 1, 32>}, {pipeline_mode = #tpu.pipeline_mode<synchronous>, transform_indices = @transform_7, window_bounds = array<i64: 32, 16>}, {pipeline_mode = #tpu.pipeline_mode<synchronous>, transform_indices = @transform_8, window_bounds = array<i64: 1, 16>}, {pipeline_mode = #tpu.pipeline_mode<synchronous>, transform_indices = @transform_9, window_bounds = array<i64: 1, 16>}, {transform_indices = @transform_10, window_bounds = array<i64: 1, 16, 256>}]} {
    %c0 = arith.constant 0 : index
    %c0_0 = arith.constant 0 : index
    %c0_1 = arith.constant 0 : index
    %0 = vector.load %arg1[%c0, %c0_0, %c0_1] : memref<1x16x256xf32, #tpu.memory_space<vmem>>, vector<1x16x256xf32>
    %1 = vector.shape_cast %0 : vector<1x16x256xf32> to vector<16x256xf32>
    %2 = tpu.transpose %1, [1, 0] : vector<16x256xf32> -> vector<256x16xf32>
    %c0_2 = arith.constant 0 : index
    %c0_3 = arith.constant 0 : index
    %3 = vector.load %arg2[%c0_2, %c0_3] : memref<16x32xf32, #tpu.memory_space<vmem>>, vector<16x32xf32>
    %cst = arith.constant dense<0.000000e+00> : vector<256x32xf32>
    %4 = tpu.matmul %2, %3, %cst {dimension_numbers = #tpu.dot_dimension_numbers<[1], [0], [0], [1], [0, 0, 1, 1], [], []>} : vector<256x16xf32>, vector<16x32xf32>, vector<256x32xf32> -> vector<256x32xf32>
    %c0_4 = arith.constant 0 : index
    %c0_5 = arith.constant 0 : index
    %5 = vector.load %arg3[%c0_4, %c0_5] : memref<1x32xf32, #tpu.memory_space<vmem>>, vector<1x32xf32>
    %6 = vector.broadcast %5 : vector<1x32xf32> to vector<256x32xf32>
    %7 = arith.mulf %4, %6 : vector<256x32xf32>
    %c0_6 = arith.constant 0 : index
    %c0_7 = arith.constant 0 : index
    %8 = vector.load %arg4[%c0_6, %c0_7] : memref<1x32xf32, #tpu.memory_space<vmem>>, vector<1x32xf32>
    %9 = vector.broadcast %8 : vector<1x32xf32> to vector<256x32xf32>
    %10 = arith.addf %7, %9 : vector<256x32xf32>
    %cst_8 = arith.constant 0.000000e+00 : f32
    %11 = vector.broadcast %cst_8 : f32 to vector<256x32xf32>
    %12 = arith.maximumf %10, %11 : vector<256x32xf32>
    %13 = tpu.iota {dimensions = array<i32: 0>} : vector<256x32xi32>
    %c16_i32 = arith.constant 16 : i32
    %c0_i32 = arith.constant 0 : i32
    %14 = arith.cmpi eq, %c16_i32, %c0_i32 : i32
    %c1_i32 = arith.constant 1 : i32
    %15 = arith.select %14, %c1_i32, %c16_i32 : i32
    %16 = vector.broadcast %15 : i32 to vector<256x32xi32>
    %17 = arith.remsi %13, %16 : vector<256x32xi32>
    %c0_i32_9 = arith.constant 0 : i32
    %18 = vector.broadcast %c0_i32_9 : i32 to vector<256x32xi32>
    %19 = arith.cmpi ne, %17, %18 : vector<256x32xi32>
    %c0_i32_10 = arith.constant 0 : i32
    %20 = vector.broadcast %c0_i32_10 : i32 to vector<256x32xi32>
    %21 = arith.cmpi slt, %17, %20 : vector<256x32xi32>
    %c0_i32_11 = arith.constant 0 : i32
    %22 = arith.cmpi slt, %15, %c0_i32_11 : i32
    %23 = vector.broadcast %22 : i1 to vector<256x32xi1>
    %24 = vector.broadcast %23 : vector<256x32xi1> to vector<256x32xi1>
    %25 = arith.xori %21, %24 : vector<256x32xi1>
    %26 = arith.andi %25, %19 : vector<256x32xi1>
    %27 = vector.broadcast %15 : i32 to vector<256x32xi32>
    %28 = arith.addi %17, %27 : vector<256x32xi32>
    %29 = arith.select %26, %28, %17 : vector<256x32xi1>, vector<256x32xi32>
    %cst_12 = arith.constant 0.000000e+00 : f32
    %30 = vector.broadcast %cst_12 : f32 to vector<256x32xf32>
    %c15_i32 = arith.constant 15 : i32
    %31 = vector.broadcast %c15_i32 : i32 to vector<256x32xi32>
    %32 = arith.cmpi ne, %29, %31 : vector<256x32xi32>
    %33 = arith.select %32, %12, %30 : vector<256x32xi1>, vector<256x32xf32>
    %c0_i32_13 = arith.constant 0 : i32
    %34 = vector.broadcast %c0_i32_13 : i32 to vector<256x32xi32>
    %35 = arith.cmpi ne, %29, %34 : vector<256x32xi32>
    %36 = arith.select %35, %12, %30 : vector<256x32xi1>, vector<256x32xf32>
    %cst_14 = arith.constant 0.000000e+00 : f32
    %37 = vector.broadcast %cst_14 : f32 to vector<17x96xf32>
    %c0_15 = arith.constant 0 : index
    %c0_16 = arith.constant 0 : index
    %38 = vector.load %arg12[%c0_15, %c0_16] : memref<288x96xf32, #tpu.memory_space<vmem>>, vector<17x96xf32>
    tpu.vector_store %arg12[%c0_15, %c0_16], %37 {strides = array<i32>} : memref<288x96xf32, #tpu.memory_space<vmem>>, vector<17x96xf32>,
    %c271 = arith.constant 271 : index
    %c0_17 = arith.constant 0 : index
    %39 = vector.load %arg12[%c271, %c0_17] : memref<288x96xf32, #tpu.memory_space<vmem>>, vector<17x96xf32>
    tpu.vector_store %arg12[%c271, %c0_17], %37 {strides = array<i32>} : memref<288x96xf32, #tpu.memory_space<vmem>>, vector<17x96xf32>,
    %c17 = arith.constant 17 : index
    %c0_18 = arith.constant 0 : index
    %40 = vector.load %arg12[%c17, %c0_18] : memref<288x96xf32, #tpu.memory_space<vmem>>, vector<256x32xf32>
    tpu.vector_store %arg12[%c17, %c0_18], %33 {strides = array<i32>} : memref<288x96xf32, #tpu.memory_space<vmem>>, vector<256x32xf32>,
    %c16 = arith.constant 16 : index
    %c32 = arith.constant 32 : index
    %41 = vector.load %arg12[%c16, %c32] : memref<288x96xf32, #tpu.memory_space<vmem>>, vector<256x32xf32>
    tpu.vector_store %arg12[%c16, %c32], %12 {strides = array<i32>} : memref<288x96xf32, #tpu.memory_space<vmem>>, vector<256x32xf32>,
    %c15 = arith.constant 15 : index
    %c64 = arith.constant 64 : index
    %42 = vector.load %arg12[%c15, %c64] : memref<288x96xf32, #tpu.memory_space<vmem>>, vector<256x32xf32>
    tpu.vector_store %arg12[%c15, %c64], %36 {strides = array<i32>} : memref<288x96xf32, #tpu.memory_space<vmem>>, vector<256x32xf32>,
    %cst_19 = arith.constant 0.000000e+00 : f32
    %43 = vector.broadcast %cst_19 : f32 to vector<256x32xf32>
    %c0_20 = arith.constant 0 : index
    %c0_21 = arith.constant 0 : index
    %44 = vector.load %arg12[%c0_20, %c0_21] : memref<288x96xf32, #tpu.memory_space<vmem>>, vector<256x96xf32>
    %c0_22 = arith.constant 0 : index
    %c0_23 = arith.constant 0 : index
    %c0_24 = arith.constant 0 : index
    %45 = vector.load %arg5[%c0_22, %c0_23, %c0_24] : memref<3x96x32xf32, #tpu.memory_space<vmem>>, vector<1x96x32xf32>
    %46 = vector.shape_cast %45 : vector<1x96x32xf32> to vector<96x32xf32>
    %cst_25 = arith.constant dense<0.000000e+00> : vector<256x32xf32>
    %47 = tpu.matmul %44, %46, %cst_25 {dimension_numbers = #tpu.dot_dimension_numbers<[1], [0], [0], [1], [0, 0, 1, 1], [], []>} : vector<256x96xf32>, vector<96x32xf32>, vector<256x32xf32> -> vector<256x32xf32>
    %48 = arith.addf %43, %47 : vector<256x32xf32>
    %c16_26 = arith.constant 16 : index
    %c0_27 = arith.constant 0 : index
    %49 = vector.load %arg12[%c16_26, %c0_27] : memref<288x96xf32, #tpu.memory_space<vmem>>, vector<256x96xf32>
    %c1 = arith.constant 1 : index
    %c0_28 = arith.constant 0 : index
    %c0_29 = arith.constant 0 : index
    %50 = vector.load %arg5[%c1, %c0_28, %c0_29] : memref<3x96x32xf32, #tpu.memory_space<vmem>>, vector<1x96x32xf32>
    %51 = vector.shape_cast %50 : vector<1x96x32xf32> to vector<96x32xf32>
    %cst_30 = arith.constant dense<0.000000e+00> : vector<256x32xf32>
    %52 = tpu.matmul %49, %51, %cst_30 {dimension_numbers = #tpu.dot_dimension_numbers<[1], [0], [0], [1], [0, 0, 1, 1], [], []>} : vector<256x96xf32>, vector<96x32xf32>, vector<256x32xf32> -> vector<256x32xf32>
    %53 = arith.addf %48, %52 : vector<256x32xf32>
    %c32_31 = arith.constant 32 : index
    %c0_32 = arith.constant 0 : index
    %54 = vector.load %arg12[%c32_31, %c0_32] : memref<288x96xf32, #tpu.memory_space<vmem>>, vector<256x96xf32>
    %c2 = arith.constant 2 : index
    %c0_33 = arith.constant 0 : index
    %c0_34 = arith.constant 0 : index
    %55 = vector.load %arg5[%c2, %c0_33, %c0_34] : memref<3x96x32xf32, #tpu.memory_space<vmem>>, vector<1x96x32xf32>
    %56 = vector.shape_cast %55 : vector<1x96x32xf32> to vector<96x32xf32>
    %cst_35 = arith.constant dense<0.000000e+00> : vector<256x32xf32>
    %57 = tpu.matmul %54, %56, %cst_35 {dimension_numbers = #tpu.dot_dimension_numbers<[1], [0], [0], [1], [0, 0, 1, 1], [], []>} : vector<256x96xf32>, vector<96x32xf32>, vector<256x32xf32> -> vector<256x32xf32>
    %58 = arith.addf %53, %57 : vector<256x32xf32>
    %c0_36 = arith.constant 0 : index
    %c0_37 = arith.constant 0 : index
    %59 = vector.load %arg6[%c0_36, %c0_37] : memref<1x32xf32, #tpu.memory_space<vmem>>, vector<1x32xf32>
    %60 = vector.broadcast %59 : vector<1x32xf32> to vector<256x32xf32>
    %61 = arith.mulf %58, %60 : vector<256x32xf32>
    %c0_38 = arith.constant 0 : index
    %c0_39 = arith.constant 0 : index
    %62 = vector.load %arg7[%c0_38, %c0_39] : memref<1x32xf32, #tpu.memory_space<vmem>>, vector<1x32xf32>
    %63 = vector.broadcast %62 : vector<1x32xf32> to vector<256x32xf32>
    %64 = arith.addf %61, %63 : vector<256x32xf32>
    %cst_40 = arith.constant 0.000000e+00 : f32
    %65 = vector.broadcast %cst_40 : f32 to vector<256x32xf32>
    %66 = arith.maximumf %64, %65 : vector<256x32xf32>
    %c0_41 = arith.constant 0 : index
    %c0_42 = arith.constant 0 : index
    %67 = vector.load %arg8[%c0_41, %c0_42] : memref<32x16xf32, #tpu.memory_space<vmem>>, vector<32x16xf32>
    %cst_43 = arith.constant dense<0.000000e+00> : vector<256x16xf32>
    %68 = tpu.matmul %66, %67, %cst_43 {dimension_numbers = #tpu.dot_dimension_numbers<[1], [0], [0], [1], [0, 0, 1, 1], [], []>} : vector<256x32xf32>, vector<32x16xf32>, vector<256x16xf32> -> vector<256x16xf32>
    %c0_44 = arith.constant 0 : index
    %c0_45 = arith.constant 0 : index
    %69 = vector.load %arg9[%c0_44, %c0_45] : memref<1x16xf32, #tpu.memory_space<vmem>>, vector<1x16xf32>
    %70 = vector.broadcast %69 : vector<1x16xf32> to vector<256x16xf32>
    %71 = arith.mulf %68, %70 : vector<256x16xf32>
    %c0_46 = arith.constant 0 : index
    %c0_47 = arith.constant 0 : index
    %72 = vector.load %arg10[%c0_46, %c0_47] : memref<1x16xf32, #tpu.memory_space<vmem>>, vector<1x16xf32>
    %73 = vector.broadcast %72 : vector<1x16xf32> to vector<256x16xf32>
    %74 = arith.addf %71, %73 : vector<256x16xf32>
    %cst_48 = arith.constant 0.000000e+00 : f32
    %75 = vector.broadcast %cst_48 : f32 to vector<256x16xf32>
    %76 = arith.maximumf %74, %75 : vector<256x16xf32>
    %77 = tpu.transpose %76, [1, 0] : vector<256x16xf32> -> vector<16x256xf32>
    %c0_49 = arith.constant 0 : index
    %c0_50 = arith.constant 0 : index
    %c0_51 = arith.constant 0 : index
    %78 = vector.load %arg11[%c0_49, %c0_50, %c0_51] : memref<1x16x256xf32, #tpu.memory_space<vmem>>, vector<1x16x256xf32>
    %79 = vector.shape_cast %78 : vector<1x16x256xf32> to vector<16x256xf32>
    %80 = vector.shape_cast %77 : vector<16x256xf32> to vector<1x16x256xf32>
    tpu.vector_store %arg11[%c0_49, %c0_50, %c0_51], %80 {strides = array<i32>} : memref<1x16x256xf32, #tpu.memory_space<vmem>>, vector<1x16x256xf32>,
    return
  }
  func.func @transform_0(%arg0: i32) -> (i32, i32, i32) {
    %c0_i32 = arith.constant 0 : i32
    %c0_i32_0 = arith.constant 0 : i32
    %c0_i32_1 = arith.constant 0 : i32
    return %arg0, %c0_i32, %c0_i32_0 : i32, i32, i32
  }
  func.func @transform_1(%arg0: i32) -> (i32, i32) {
    %c0_i32 = arith.constant 0 : i32
    %c0_i32_0 = arith.constant 0 : i32
    %c0_i32_1 = arith.constant 0 : i32
    return %c0_i32, %c0_i32_0 : i32, i32
  }
  func.func @transform_2(%arg0: i32) -> (i32, i32) {
    %c0_i32 = arith.constant 0 : i32
    %c0_i32_0 = arith.constant 0 : i32
    %c0_i32_1 = arith.constant 0 : i32
    return %c0_i32, %c0_i32_0 : i32, i32
  }
  func.func @transform_3(%arg0: i32) -> (i32, i32) {
    %c0_i32 = arith.constant 0 : i32
    %c0_i32_0 = arith.constant 0 : i32
    %c0_i32_1 = arith.constant 0 : i32
    return %c0_i32, %c0_i32_0 : i32, i32
  }
  func.func @transform_4(%arg0: i32) -> (i32, i32, i32) {
    %c0_i32 = arith.constant 0 : i32
    %c0_i32_0 = arith.constant 0 : i32
    %c0_i32_1 = arith.constant 0 : i32
    %c0_i32_2 = arith.constant 0 : i32
    return %c0_i32, %c0_i32_0, %c0_i32_1 : i32, i32, i32
  }
  func.func @transform_5(%arg0: i32) -> (i32, i32) {
    %c0_i32 = arith.constant 0 : i32
    %c0_i32_0 = arith.constant 0 : i32
    %c0_i32_1 = arith.constant 0 : i32
    return %c0_i32, %c0_i32_0 : i32, i32
  }
  func.func @transform_6(%arg0: i32) -> (i32, i32) {
    %c0_i32 = arith.constant 0 : i32
    %c0_i32_0 = arith.constant 0 : i32
    %c0_i32_1 = arith.constant 0 : i32
    return %c0_i32, %c0_i32_0 : i32, i32
  }
  func.func @transform_7(%arg0: i32) -> (i32, i32) {
    %c0_i32 = arith.constant 0 : i32
    %c0_i32_0 = arith.constant 0 : i32
    %c0_i32_1 = arith.constant 0 : i32
    return %c0_i32, %c0_i32_0 : i32, i32
  }
  func.func @transform_8(%arg0: i32) -> (i32, i32) {
    %c0_i32 = arith.constant 0 : i32
    %c0_i32_0 = arith.constant 0 : i32
    %c0_i32_1 = arith.constant 0 : i32
    return %c0_i32, %c0_i32_0 : i32, i32
  }
  func.func @transform_9(%arg0: i32) -> (i32, i32) {
    %c0_i32 = arith.constant 0 : i32
    %c0_i32_0 = arith.constant 0 : i32
    %c0_i32_1 = arith.constant 0 : i32
    return %c0_i32, %c0_i32_0 : i32, i32
  }
  func.func @transform_10(%arg0: i32) -> (i32, i32, i32) {
    %c0_i32 = arith.constant 0 : i32
    %c0_i32_0 = arith.constant 0 : i32
    %c0_i32_1 = arith.constant 0 : i32
    return %arg0, %c0_i32, %c0_i32_0 : i32, i32, i32
  }
}

</mosaic_0001>

<llo_original>
// kernel: tpu_custom_call.1
$region0: #{tpu_custom_call.1}
  #allocation0 [shape = 'u32[]', space=smem, size = 0x4, offset = 0x4, fixed_abs, tag = 'smem constant byte address 0x4 - core index']
  #allocation1 [shape = 'u32[144,128]{1,0:T(1,128)}', space=vmem, size = 0x12000, scoped, tag = 'internal scratch']
  #allocation2 [shape = 'f32[288,96]{1,0:T(8,128)}', space=vmem, size = 0x24000, scoped, tag = 'scratch operand']
  %s0 = inlined_call_operand.vmem [shape: f32[2,16,256], index: 0, kind: input, shape index: {}]
  %s1 = inlined_call_operand.vmem [shape: f32[16,32], index: 1, kind: input, shape index: {}]
  %s2 = inlined_call_operand.vmem [shape: f32[1,32], index: 2, kind: input, shape index: {}]
  %s3 = inlined_call_operand.vmem [shape: f32[1,32], index: 3, kind: input, shape index: {}]
  %s4 = inlined_call_operand.vmem [shape: f32[3,96,32], index: 4, kind: input, shape index: {}]
  %s5 = inlined_call_operand.vmem [shape: f32[1,32], index: 5, kind: input, shape index: {}]
  %s6 = inlined_call_operand.vmem [shape: f32[1,32], index: 6, kind: input, shape index: {}]
  %s7 = inlined_call_operand.vmem [shape: f32[32,16], index: 7, kind: input, shape index: {}]
  %s8 = inlined_call_operand.vmem [shape: f32[1,16], index: 8, kind: input, shape index: {}]
  %s9 = inlined_call_operand.vmem [shape: f32[1,16], index: 9, kind: input, shape index: {}]
  %s10 = inlined_call_operand.hbm [shape: f32[2,16,256], index: 10, kind: output, shape index: {}]
  %s11 = sld [smem:[#allocation0]]
  $region73: #{tpu_custom_call.1} parent=0
    _
  %s13 = ssub.s32 1, %s11
  %s14 = scalar_select 0, %s13, %s11
  $region1: #{tpu_custom_call.1} parent=0
    #allocation3 [shape = 'u8[32768]{0}', space=vmem, size = 0x8000, scoped, tag = 'output window, operand 0']
    #allocation4 [shape = 's32[2]{0}', space=sflag, size = 0x8, scoped, tag = 'scoped memory for tpu_custom_call.1']
    %15 = vsyncpa [#allocation4], 0
    %s16 = scalar_lea.sflag [#allocation4], 1
    %17 = vsyncpa %s16, 0
    loop: start=0, step=1, limit=4
    $region2: #{tpu_custom_call.1} parent=1 // loop_pre_header
      _
    $region3: #{tpu_custom_call.1} parent=1 // loop_header
      %s19 = sphi 0, %s23
      %p20 = scmp.ge.s32.totalorder %s19, 4
      %s29 = sphi 0, %s31
      %s32 = sphi 0, %s29
      %s33 = sphi 0, %s32
      %s49 = sphi 0, %s33
      %s53 = sphi 0, %s53
      %s55 = sphi 0, %s53
      %s56 = sphi 0, %s55
      %s70 = sphi 0, %s56
      %s74 = sphi 0, %s74
      %s76 = sphi 0, %s74
      %s77 = sphi 0, %s76
      %s91 = sphi 0, %s77
      %s95 = sphi 0, %s95
      %s97 = sphi 0, %s95
      %s98 = sphi 0, %s97
      %s112 = sphi 0, %s98
      %s116 = sphi 0, %s116
      %s118 = sphi 0, %s116
      %s119 = sphi 0, %s118
      %s133 = sphi 0, %s119
      %s137 = sphi 0, %s137
      %s139 = sphi 0, %s137
      %s140 = sphi 0, %s139
      %s154 = sphi 0, %s140
      %s158 = sphi 0, %s158
      %s160 = sphi 0, %s158
      %s161 = sphi 0, %s160
      %s175 = sphi 0, %s161
      %s179 = sphi 0, %s179
      %s181 = sphi 0, %s179
      %s182 = sphi 0, %s181
      %s196 = sphi 0, %s182
      %s200 = sphi 0, %s200
      %s202 = sphi 0, %s200
      %s203 = sphi 0, %s202
      %s217 = sphi 0, %s203
      %s221 = sphi 0, %s221
      %s223 = sphi 0, %s221
      %s224 = sphi 0, %s223
      %s238 = sphi 0, %s224
      %s244 = sphi 0, %s246
      %s247 = sphi 0, %s244
      %s248 = sphi 0, %s247
      %s264 = sphi 0, %s248
    $region4: #{tpu_custom_call.1} parent=1 // loop_header_branch
      %22 = sbr.rel (%p20) target = $region8
    $region5: #{tpu_custom_call.1} parent=1 // loop_body
      %s24 = ssub.s32 %s19, 1
      %s25 = ssub.s32 %s19, 2
      %s26 = sadd.s32 %s19, 1
      %s27 = ssub.s32 %s19, %s26
      %p28 = scmp.eq.s32.totalorder %s27, 0
      %s30 = sadd.s32 %s29, 1
      %s31 = scalar_select %p28, %s29, %s30
      %p34 = pneg %p28
      %p35 = scmp.eq.s32.totalorder %s19, 1
      %p36 = por %p34, %p35
      %p37 = scmp.ne.s32.totalorder %s29, %s32
      %p38 = scmp.eq.s32.totalorder %s19, 0
      %p39 = por %p37, %p38
      %p40 = scmp.ne.s32.totalorder %s29, %s32
      %p41 = scmp.eq.s32.totalorder %s24, 1
      %p42 = por %p40, %p41
      %p43 = scmp.ne.s32.totalorder %s32, %s33
      %p44 = scmp.eq.s32.totalorder %s24, 0
      %p45 = por %p43, %p44
      %p46 = scmp.ne.s32.totalorder %s32, %s33
      %p47 = scmp.eq.s32.totalorder %s25, 1
      %p48 = por %p46, %p47
      %p50 = scmp.ne.s32.totalorder %s33, %s49
      %p51 = scmp.eq.s32.totalorder %s25, 0
      %p52 = por %p50, %p51
      %s54 = sadd.s32 %s53, 1
      %p57 = scmp.eq.s32.totalorder %s19, 1
      %p58 = scmp.ne.s32.totalorder %s53, %s55
      %p59 = scmp.eq.s32.totalorder %s19, 0
      %p60 = por %p58, %p59
      %p61 = scmp.ne.s32.totalorder %s53, %s55
      %p62 = scmp.eq.s32.totalorder %s24, 1
      %p63 = por %p61, %p62
      %p64 = scmp.ne.s32.totalorder %s55, %s56
      %p65 = scmp.eq.s32.totalorder %s24, 0
      %p66 = por %p64, %p65
      %p67 = scmp.ne.s32.totalorder %s55, %s56
      %p68 = scmp.eq.s32.totalorder %s25, 1
      %p69 = por %p67, %p68
      %p71 = scmp.ne.s32.totalorder %s56, %s70
      %p72 = scmp.eq.s32.totalorder %s25, 0
      %p73 = por %p71, %p72
      %s75 = sadd.s32 %s74, 1
      %p78 = scmp.eq.s32.totalorder %s19, 1
      %p79 = scmp.ne.s32.totalorder %s74, %s76
      %p80 = scmp.eq.s32.totalorder %s19, 0
      %p81 = por %p79, %p80
      %p82 = scmp.ne.s32.totalorder %s74, %s76
      %p83 = scmp.eq.s32.totalorder %s24, 1
      %p84 = por %p82, %p83
      %p85 = scmp.ne.s32.totalorder %s76, %s77
      %p86 = scmp.eq.s32.totalorder %s24, 0
      %p87 = por %p85, %p86
      %p88 = scmp.ne.s32.totalorder %s76, %s77
      %p89 = scmp.eq.s32.totalorder %s25, 1
      %p90 = por %p88, %p89
      %p92 = scmp.ne.s32.totalorder %s77, %s91
      %p93 = scmp.eq.s32.totalorder %s25, 0
      %p94 = por %p92, %p93
      %s96 = sadd.s32 %s95, 1
      %p99 = scmp.eq.s32.totalorder %s19, 1
      %p100 = scmp.ne.s32.totalorder %s95, %s97
      %p101 = scmp.eq.s32.totalorder %s19, 0
      %p102 = por %p100, %p101
      %p103 = scmp.ne.s32.totalorder %s95, %s97
      %p104 = scmp.eq.s32.totalorder %s24, 1
      %p105 = por %p103, %p104
      %p106 = scmp.ne.s32.totalorder %s97, %s98
      %p107 = scmp.eq.s32.totalorder %s24, 0
      %p108 = por %p106, %p107
      %p109 = scmp.ne.s32.totalorder %s97, %s98
      %p110 = scmp.eq.s32.totalorder %s25, 1
      %p111 = por %p109, %p110
      %p113 = scmp.ne.s32.totalorder %s98, %s112
      %p114 = scmp.eq.s32.totalorder %s25, 0
      %p115 = por %p113, %p114
      %s117 = sadd.s32 %s116, 1
      %p120 = scmp.eq.s32.totalorder %s19, 1
      %p121 = scmp.ne.s32.totalorder %s116, %s118
      %p122 = scmp.eq.s32.totalorder %s19, 0
      %p123 = por %p121, %p122
      %p124 = scmp.ne.s32.totalorder %s116, %s118
      %p125 = scmp.eq.s32.totalorder %s24, 1
      %p126 = por %p124, %p125
      %p127 = scmp.ne.s32.totalorder %s118, %s119
      %p128 = scmp.eq.s32.totalorder %s24, 0
      %p129 = por %p127, %p128
      %p130 = scmp.ne.s32.totalorder %s118, %s119
      %p131 = scmp.eq.s32.totalorder %s25, 1
      %p132 = por %p130, %p131
      %p134 = scmp.ne.s32.totalorder %s119, %s133
      %p135 = scmp.eq.s32.totalorder %s25, 0
      %p136 = por %p134, %p135
      %s138 = sadd.s32 %s137, 1
      %p141 = scmp.eq.s32.totalorder %s19, 1
      %p142 = scmp.ne.s32.totalorder %s137, %s139
      %p143 = scmp.eq.s32.totalorder %s19, 0
      %p144 = por %p142, %p143
      %p145 = scmp.ne.s32.totalorder %s137, %s139
      %p146 = scmp.eq.s32.totalorder %s24, 1
      %p147 = por %p145, %p146
      %p148 = scmp.ne.s32.totalorder %s139, %s140
      %p149 = scmp.eq.s32.totalorder %s24, 0
      %p150 = por %p148, %p149
      %p151 = scmp.ne.s32.totalorder %s139, %s140
      %p152 = scmp.eq.s32.totalorder %s25, 1
      %p153 = por %p151, %p152
      %p155 = scmp.ne.s32.totalorder %s140, %s154
      %p156 = scmp.eq.s32.totalorder %s25, 0
      %p157 = por %p155, %p156
      %s159 = sadd.s32 %s158, 1
      %p162 = scmp.eq.s32.totalorder %s19, 1
      %p163 = scmp.ne.s32.totalorder %s158, %s160
      %p164 = scmp.eq.s32.totalorder %s19, 0
      %p165 = por %p163, %p164
      %p166 = scmp.ne.s32.totalorder %s158, %s160
      %p167 = scmp.eq.s32.totalorder %s24, 1
      %p168 = por %p166, %p167
      %p169 = scmp.ne.s32.totalorder %s160, %s161
      %p170 = scmp.eq.s32.totalorder %s24, 0
      %p171 = por %p169, %p170
      %p172 = scmp.ne.s32.totalorder %s160, %s161
      %p173 = scmp.eq.s32.totalorder %s25, 1
      %p174 = por %p172, %p173
      %p176 = scmp.ne.s32.totalorder %s161, %s175
      %p177 = scmp.eq.s32.totalorder %s25, 0
      %p178 = por %p176, %p177
      %s180 = sadd.s32 %s179, 1
      %p183 = scmp.eq.s32.totalorder %s19, 1
      %p184 = scmp.ne.s32.totalorder %s179, %s181
      %p185 = scmp.eq.s32.totalorder %s19, 0
      %p186 = por %p184, %p185
      %p187 = scmp.ne.s32.totalorder %s179, %s181
      %p188 = scmp.eq.s32.totalorder %s24, 1
      %p189 = por %p187, %p188
      %p190 = scmp.ne.s32.totalorder %s181, %s182
      %p191 = scmp.eq.s32.totalorder %s24, 0
      %p192 = por %p190, %p191
      %p193 = scmp.ne.s32.totalorder %s181, %s182
      %p194 = scmp.eq.s32.totalorder %s25, 1
      %p195 = por %p193, %p194
      %p197 = scmp.ne.s32.totalorder %s182, %s196
      %p198 = scmp.eq.s32.totalorder %s25, 0
      %p199 = por %p197, %p198
      %s201 = sadd.s32 %s200, 1
      %p204 = scmp.eq.s32.totalorder %s19, 1
      %p205 = scmp.ne.s32.totalorder %s200, %s202
      %p206 = scmp.eq.s32.totalorder %s19, 0
      %p207 = por %p205, %p206
      %p208 = scmp.ne.s32.totalorder %s200, %s202
      %p209 = scmp.eq.s32.totalorder %s24, 1
      %p210 = por %p208, %p209
      %p211 = scmp.ne.s32.totalorder %s202, %s203
      %p212 = scmp.eq.s32.totalorder %s24, 0
      %p213 = por %p211, %p212
      %p214 = scmp.ne.s32.totalorder %s202, %s203
      %p215 = scmp.eq.s32.totalorder %s25, 1
      %p216 = por %p214, %p215
      %p218 = scmp.ne.s32.totalorder %s203, %s217
      %p219 = scmp.eq.s32.totalorder %s25, 0
      %p220 = por %p218, %p219
      %s222 = sadd.s32 %s221, 1
      %p225 = scmp.eq.s32.totalorder %s19, 1
      %p226 = scmp.ne.s32.totalorder %s221, %s223
      %p227 = scmp.eq.s32.totalorder %s19, 0
      %p228 = por %p226, %p227
      %p229 = scmp.ne.s32.totalorder %s221, %s223
      %p230 = scmp.eq.s32.totalorder %s24, 1
      %p231 = por %p229, %p230
      %p232 = scmp.ne.s32.totalorder %s223, %s224
      %p233 = scmp.eq.s32.totalorder %s24, 0
      %p234 = por %p232, %p233
      %p235 = scmp.ne.s32.totalorder %s223, %s224
      %p236 = scmp.eq.s32.totalorder %s25, 1
      %p237 = por %p235, %p236
      %p239 = scmp.ne.s32.totalorder %s224, %s238
      %p240 = scmp.eq.s32.totalorder %s25, 0
      %p241 = por %p239, %p240
      %s242 = ssub.s32 %s19, %s26
      %p243 = scmp.eq.s32.totalorder %s242, 0
      %s245 = sadd.s32 %s244, 1
      %s246 = scalar_select %p243, %s244, %s245
      %p249 = pneg %p243
      %p250 = scmp.eq.s32.totalorder %s19, 1
      %p251 = por %p249, %p250
      %p252 = scmp.ne.s32.totalorder %s244, %s247
      %p253 = scmp.eq.s32.totalorder %s19, 0
      %p254 = por %p252, %p253
      %p255 = scmp.ne.s32.totalorder %s244, %s247
      %p256 = scmp.eq.s32.totalorder %s24, 1
      %p257 = por %p255, %p256
      %p258 = scmp.ne.s32.totalorder %s247, %s248
      %p259 = scmp.eq.s32.totalorder %s24, 0
      %p260 = por %p258, %p259
      %p261 = scmp.ne.s32.totalorder %s247, %s248
      %p262 = scmp.eq.s32.totalorder %s25, 1
      %p263 = por %p261, %p262
      %p265 = scmp.ne.s32.totalorder %s248, %s264
      %p266 = scmp.eq.s32.totalorder %s25, 0
      %p267 = por %p265, %p266
      %p268 = scmp.le.s32.totalorder 1, %s19
      %p269 = scmp.lt.s32.totalorder %s19, 3
      %p270 = pnand %p268, %p269
      %p271 = pneg %p270
      // Predicated region
      $region9: #{tpu_custom_call.1} parent=5 // pred_check
        _
      $region10: #{tpu_custom_call.1} parent=5 // pred_check_branch
        %273 = sbr.rel (%p270) target = $region12
      $region11: #{tpu_custom_call.1} parent=5 // pred_region
        %s274 = ssub.s32 %s19, 1
        // Predicated region
        $region13: #{tpu_custom_call.1} parent=11 // pred_check
          %p275 = pneg %p66
        $region14: #{tpu_custom_call.1} parent=11 // pred_check_branch
          %277 = sbr.rel (%p275) target = $region16
        $region15: #{tpu_custom_call.1} parent=11 // pred_region
          _
        $region16: #{tpu_custom_call.1} parent=11 // pred_fallthru
          _
        // Predicated region
        $region17: #{tpu_custom_call.1} parent=11 // pred_check
          %p278 = pneg %p87
        $region18: #{tpu_custom_call.1} parent=11 // pred_check_branch
          %280 = sbr.rel (%p278) target = $region20
        $region19: #{tpu_custom_call.1} parent=11 // pred_region
          _
        $region20: #{tpu_custom_call.1} parent=11 // pred_fallthru
          _
        // Predicated region
        $region21: #{tpu_custom_call.1} parent=11 // pred_check
          %p281 = pneg %p108
        $region22: #{tpu_custom_call.1} parent=11 // pred_check_branch
          %283 = sbr.rel (%p281) target = $region24
        $region23: #{tpu_custom_call.1} parent=11 // pred_region
          _
        $region24: #{tpu_custom_call.1} parent=11 // pred_fallthru
          _
        // Predicated region
        $region25: #{tpu_custom_call.1} parent=11 // pred_check
          %p284 = pneg %p129
        $region26: #{tpu_custom_call.1} parent=11 // pred_check_branch
          %286 = sbr.rel (%p284) target = $region28
        $region27: #{tpu_custom_call.1} parent=11 // pred_region
          _
        $region28: #{tpu_custom_call.1} parent=11 // pred_fallthru
          _
        // Predicated region
        $region29: #{tpu_custom_call.1} parent=11 // pred_check
          %p287 = pneg %p150
        $region30: #{tpu_custom_call.1} parent=11 // pred_check_branch
          %289 = sbr.rel (%p287) target = $region32
        $region31: #{tpu_custom_call.1} parent=11 // pred_region
          _
        $region32: #{tpu_custom_call.1} parent=11 // pred_fallthru
          _
        // Predicated region
        $region33: #{tpu_custom_call.1} parent=11 // pred_check
          %p290 = pneg %p171
        $region34: #{tpu_custom_call.1} parent=11 // pred_check_branch
          %292 = sbr.rel (%p290) target = $region36
        $region35: #{tpu_custom_call.1} parent=11 // pred_region
          _
        $region36: #{tpu_custom_call.1} parent=11 // pred_fallthru
          _
        // Predicated region
        $region37: #{tpu_custom_call.1} parent=11 // pred_check
          %p293 = pneg %p192
        $region38: #{tpu_custom_call.1} parent=11 // pred_check_branch
          %295 = sbr.rel (%p293) target = $region40
        $region39: #{tpu_custom_call.1} parent=11 // pred_region
          _
        $region40: #{tpu_custom_call.1} parent=11 // pred_fallthru
          _
        // Predicated region
        $region41: #{tpu_custom_call.1} parent=11 // pred_check
          %p296 = pneg %p213
        $region42: #{tpu_custom_call.1} parent=11 // pred_check_branch
          %298 = sbr.rel (%p296) target = $region44
        $region43: #{tpu_custom_call.1} parent=11 // pred_region
          _
        $region44: #{tpu_custom_call.1} parent=11 // pred_fallthru
          _
        // Predicated region
        $region45: #{tpu_custom_call.1} parent=11 // pred_check
          %p299 = pneg %p234
        $region46: #{tpu_custom_call.1} parent=11 // pred_check_branch
          %301 = sbr.rel (%p299) target = $region48
        $region47: #{tpu_custom_call.1} parent=11 // pred_region
          _
        $region48: #{tpu_custom_call.1} parent=11 // pred_fallthru
          _
      $region12: #{tpu_custom_call.1} parent=5 // pred_fallthru
        _
      %p302 = scmp.lt.s32.totalorder %s19, 2
      // Predicated region
      $region49: #{tpu_custom_call.1} parent=5 // pred_check
        %p303 = pneg %p302
      $region50: #{tpu_custom_call.1} parent=5 // pred_check_branch
        %305 = sbr.rel (%p303) target = $region52
      $region51: #{tpu_custom_call.1} parent=5 // pred_region
        // Predicated region
        $region53: #{tpu_custom_call.1} parent=51 // pred_check
          %p306 = pneg %p39
        $region54: #{tpu_custom_call.1} parent=51 // pred_check_branch
          %308 = sbr.rel (%p306) target = $region56
        $region55: #{tpu_custom_call.1} parent=51 // pred_region
          %p309 = scmp.lt.s32.totalorder %s19, 1
          %s310 = scalar_select %p309, %s19, 1
          %s311 = smul.addr %s310, 4
          %s312 = smul.addr %s311, 8
          %s313 = scalar_lea.vmem %s0, %s312
        $region56: #{tpu_custom_call.1} parent=51 // pred_fallthru
          _
      $region52: #{tpu_custom_call.1} parent=5 // pred_fallthru
        _
      %p314 = scmp.le.s32.totalorder 1, %s19
      %p315 = scmp.lt.s32.totalorder %s19, 3
      %p316 = pnand %p314, %p315
      %p317 = pneg %p316
      // Predicated region
      $region57: #{tpu_custom_call.1} parent=5 // pred_check
        _
      $region58: #{tpu_custom_call.1} parent=5 // pred_check_branch
        %319 = sbr.rel (%p316) target = $region60
      $region59: #{tpu_custom_call.1} parent=5 // pred_region
        %s320 = ssub.s32 %s19, 1
        %p321 = scmp.lt.s32.totalorder %s24, 1
        %s322 = scalar_select %p321, %s24, 1
        %s323 = smul.addr %s322, 4
        %s324 = smul.addr %s323, 8
        %s325 = scalar_lea.vmem %s0, %s324
        %p326 = pneg %p45
        %p327 = pneg %p42
        %p328 = pneg %p66
        %p329 = pneg %p63
        %p330 = pneg %p87
        %p331 = pneg %p84
        %p332 = pneg %p108
        %p333 = pneg %p105
        %p334 = pneg %p129
        %p335 = pneg %p126
        %p336 = pneg %p150
        %p337 = pneg %p147
        %p338 = pneg %p171
        %p339 = pneg %p168
        %p340 = pneg %p192
        %p341 = pneg %p189
        %p342 = pneg %p213
        %p343 = pneg %p210
        %p344 = pneg %p234
        %p345 = pneg %p231
        %p346 = pneg %p260
        %p347 = pneg %p257
        %s348 = sand.u32 %s247, 1
        %s349 = scalar_lea.sflag [#allocation4], %s348
        %s350 = sand.u32 %s247, 1
        %s351 = smul.addr %s350, 32
        %s352 = scalar_lea.vmem [#allocation3], %s351
        %p353 = scmp.lt.s32.totalorder %s24, 1
        %s354 = scalar_select %p353, %s24, 1
        %s355 = smul.addr %s354, 4
        %s356 = smul.addr %s355, 8
        %s357 = scalar_lea.vmem %s0, %s356
        %v358 = vld [vmem:[%s357] sm:$0xff]
        %v359 = vld [vmem:[%s357 + $0x8] sm:$0xff]
        %v360 = vld [vmem:[%s357 + $0x10] sm:$0xff]
        %v361 = vld [vmem:[%s357 + $0x18] sm:$0xff]
        %362 = vxpose.xlu0.b32.start [1/16] %v358, 128
        %363 = vxpose.xlu0.b32.cont [2/16] %v360, 128
        %364 = vxpose.xlu0.b32.cont [3/16] 0.0, 128
        %365 = vxpose.xlu0.b32.cont [4/16] 0.0, 128
        %366 = vxpose.xlu0.b32.cont [5/16] 0.0, 128
        %367 = vxpose.xlu0.b32.cont [6/16] 0.0, 128
        %368 = vxpose.xlu0.b32.cont [7/16] 0.0, 128
        %369 = vxpose.xlu0.b32.cont [8/16] 0.0, 128
        %370 = vxpose.xlu0.b32.cont [9/16] 0.0, 128
        %371 = vxpose.xlu0.b32.cont [10/16] 0.0, 128
        %372 = vxpose.xlu0.b32.cont [11/16] 0.0, 128
        %373 = vxpose.xlu0.b32.cont [12/16] 0.0, 128
        %374 = vxpose.xlu0.b32.cont [13/16] 0.0, 128
        %375 = vxpose.xlu0.b32.cont [14/16] 0.0, 128
        %376 = vxpose.xlu0.b32.cont [15/16] 0.0, 128
        %377 = vxpose.xlu0.b32.end [16/16] 0.0, 128
        %v378 = vpop.trf.xlu0
        %v379 = vpop.trf.xlu0
        %v380 = vpop.trf.xlu0
        %v381 = vpop.trf.xlu0
        %v382 = vpop.trf.xlu0
        %v383 = vpop.trf.xlu0
        %v384 = vpop.trf.xlu0
        %v385 = vpop.trf.xlu0
        %v386 = vpop.trf.xlu0
        %v387 = vpop.trf.xlu0
        %v388 = vpop.trf.xlu0
        %v389 = vpop.trf.xlu0
        %v390 = vpop.trf.xlu0
        %v391 = vpop.trf.xlu0
        %v392 = vpop.trf.xlu0
        %v393 = vpop.trf.xlu0
        %394 = vxpose.xlu0.b32.start [1/16] %v359, 128
        %395 = vxpose.xlu0.b32.cont [2/16] %v361, 128
        %396 = vxpose.xlu0.b32.cont [3/16] 0.0, 128
        %397 = vxpose.xlu0.b32.cont [4/16] 0.0, 128
        %398 = vxpose.xlu0.b32.cont [5/16] 0.0, 128
        %399 = vxpose.xlu0.b32.cont [6/16] 0.0, 128
        %400 = vxpose.xlu0.b32.cont [7/16] 0.0, 128
        %401 = vxpose.xlu0.b32.cont [8/16] 0.0, 128
        %402 = vxpose.xlu0.b32.cont [9/16] 0.0, 128
        %403 = vxpose.xlu0.b32.cont [10/16] 0.0, 128
        %404 = vxpose.xlu0.b32.cont [11/16] 0.0, 128
        %405 = vxpose.xlu0.b32.cont [12/16] 0.0, 128
        %406 = vxpose.xlu0.b32.cont [13/16] 0.0, 128
        %407 = vxpose.xlu0.b32.cont [14/16] 0.0, 128
        %408 = vxpose.xlu0.b32.cont [15/16] 0.0, 128
        %409 = vxpose.xlu0.b32.end [16/16] 0.0, 128
        %v410 = vpop.trf.xlu0
        %v411 = vpop.trf.xlu0
        %v412 = vpop.trf.xlu0
        %v413 = vpop.trf.xlu0
        %v414 = vpop.trf.xlu0
        %v415 = vpop.trf.xlu0
        %v416 = vpop.trf.xlu0
        %v417 = vpop.trf.xlu0
        %v418 = vpop.trf.xlu0
        %v419 = vpop.trf.xlu0
        %v420 = vpop.trf.xlu0
        %v421 = vpop.trf.xlu0
        %v422 = vpop.trf.xlu0
        %v423 = vpop.trf.xlu0
        %v424 = vpop.trf.xlu0
        %v425 = vpop.trf.xlu0
        %v426 = vld [vmem:[%s1] sm:$0xff]
        %v427 = vld [vmem:[%s1 + $0x8] sm:$0xff]
        %vm428 = vcmask 130048
        %v430 = vsel %vm428, %v378, 0
        %v433 = vsel %vm428, %v379, 0
        %v436 = vsel %vm428, %v380, 0
        %v439 = vsel %vm428, %v381, 0
        %v442 = vsel %vm428, %v382, 0
        %v445 = vsel %vm428, %v383, 0
        %v448 = vsel %vm428, %v384, 0
        %v451 = vsel %vm428, %v385, 0
        %v454 = vsel %vm428, %v386, 0
        %v457 = vsel %vm428, %v387, 0
        %v460 = vsel %vm428, %v388, 0
        %v463 = vsel %vm428, %v389, 0
        %v466 = vsel %vm428, %v390, 0
        %v469 = vsel %vm428, %v391, 0
        %v472 = vsel %vm428, %v392, 0
        %v475 = vsel %vm428, %v393, 0
        %v478 = vsel %vm428, %v410, 0
        %v481 = vsel %vm428, %v411, 0
        %v484 = vsel %vm428, %v412, 0
        %v487 = vsel %vm428, %v413, 0
        %v490 = vsel %vm428, %v414, 0
        %v493 = vsel %vm428, %v415, 0
        %v496 = vsel %vm428, %v416, 0
        %v499 = vsel %vm428, %v417, 0
        %v502 = vsel %vm428, %v418, 0
        %v505 = vsel %vm428, %v419, 0
        %v508 = vsel %vm428, %v420, 0
        %v511 = vsel %vm428, %v421, 0
        %v514 = vsel %vm428, %v422, 0
        %v517 = vsel %vm428, %v423, 0
        %v520 = vsel %vm428, %v424, 0
        %v523 = vsel %vm428, %v425, 0
        %525 = vmatprep.subr.mxu0 0.0
        %526 = vmatpush1.msra.mxu0 0.0
        %527 = vmatprep.subr.mxu0 0.0
        %528 = vmatpush1.msra.mxu0 0.0
        %529 = vmatprep.subr.mxu0 0.0
        %530 = vmatpush1.msra.mxu0 0.0
        %531 = vmatprep.subr.mxu0 0.0
        %532 = vmatpush1.msra.mxu0 0.0
        %533 = vmatprep.subr.mxu0 0.0
        %534 = vmatpush1.msra.mxu0 0.0
        %535 = vmatprep.subr.mxu0 0.0
        %536 = vmatpush1.msra.mxu0 0.0
        %537 = vmatprep.subr.mxu0 0.0
        %538 = vmatpush1.msra.mxu0 0.0
        %539 = vmatprep.subr.mxu0 0.0
        %540 = vmatpush1.msra.mxu0 0.0
        %541 = vmatprep.subr.mxu0 0.0
        %542 = vmatpush1.msra.mxu0 0.0
        %543 = vmatprep.subr.mxu0 0.0
        %544 = vmatpush1.msra.mxu0 0.0
        %545 = vmatprep.subr.mxu0 0.0
        %546 = vmatpush1.msra.mxu0 0.0
        %547 = vmatprep.subr.mxu0 0.0
        %548 = vmatpush1.msra.mxu0 0.0
        %549 = vmatprep.subr.mxu0 0.0
        %550 = vmatpush1.msra.mxu0 0.0
        %551 = vmatprep.subr.mxu0 0.0
        %552 = vmatpush1.msra.mxu0 0.0
        %553 = vmatprep.subr.mxu0 0.0
        %554 = vmatpush1.msra.mxu0 %v427
        %555 = vmatprep.subr.mxu0 0.0
        %556 = vmatpush1.msra.mxu0 %v426
        %557 = vmatprep.subr.mxu0 0.0
        %558 = vmatpush2.msra.mxu0 0.0
        %559 = vmatprep.subr.mxu0 0.0
        %560 = vmatpush2.msra.mxu0 0.0
        %561 = vmatprep.subr.mxu0 0.0
        %562 = vmatpush2.msra.mxu0 0.0
        %563 = vmatprep.subr.mxu0 0.0
        %564 = vmatpush2.msra.mxu0 0.0
        %565 = vmatprep.subr.mxu0 0.0
        %566 = vmatpush2.msra.mxu0 0.0
        %567 = vmatprep.subr.mxu0 0.0
        %568 = vmatpush2.msra.mxu0 0.0
        %569 = vmatprep.subr.mxu0 0.0
        %570 = vmatpush2.msra.mxu0 0.0
        %571 = vmatprep.subr.mxu0 0.0
        %572 = vmatpush2.msra.mxu0 0.0
        %573 = vmatprep.subr.mxu0 0.0
        %574 = vmatpush2.msra.mxu0 0.0
        %575 = vmatprep.subr.mxu0 0.0
        %576 = vmatpush2.msra.mxu0 0.0
        %577 = vmatprep.subr.mxu0 0.0
        %578 = vmatpush2.msra.mxu0 0.0
        %579 = vmatprep.subr.mxu0 0.0
        %580 = vmatpush2.msra.mxu0 0.0
        %581 = vmatprep.subr.mxu0 0.0
        %582 = vmatpush2.msra.mxu0 0.0
        %583 = vmatprep.subr.mxu0 0.0
        %584 = vmatpush2.msra.mxu0 0.0
        %585 = vmatprep.subr.mxu0 0.0
        %586 = vmatpush2.msra.mxu0 0.0
        %587 = vmatprep.subr.mxu0 0.0
        %588 = vmatpush2.msra.mxu0 0.0
        %589 = vmatprep.mubr.f32.mxu0 0.0
        %590 = vmatmul.mubr.f32.gmra.mxu0 %v430
        %v591 = vpop.f32.mrf.mxu0
        %v592 = vadd.f32 0.0, %v591
        %v593 = vpop.f32.mrf.mxu0
        %594 = vmatprep.mubr.f32.mxu0 0.0
        %595 = vmatmul.mubr.f32.gmra.mxu0 %v433
        %v596 = vpop.f32.mrf.mxu0
        %v597 = vadd.f32 0.0, %v596
        %v598 = vpop.f32.mrf.mxu0
        %599 = vmatprep.mubr.f32.mxu0 0.0
        %600 = vmatmul.mubr.f32.gmra.mxu0 %v436
        %v601 = vpop.f32.mrf.mxu0
        %v602 = vadd.f32 0.0, %v601
        %v603 = vpop.f32.mrf.mxu0
        %604 = vmatprep.mubr.f32.mxu0 0.0
        %605 = vmatmul.mubr.f32.gmra.mxu0 %v439
        %v606 = vpop.f32.mrf.mxu0
        %v607 = vadd.f32 0.0, %v606
        %v608 = vpop.f32.mrf.mxu0
        %609 = vmatprep.mubr.f32.mxu0 0.0
        %610 = vmatmul.mubr.f32.gmra.mxu0 %v442
        %v611 = vpop.f32.mrf.mxu0
        %v612 = vadd.f32 0.0, %v611
        %v613 = vpop.f32.mrf.mxu0
        %614 = vmatprep.mubr.f32.mxu0 0.0
        %615 = vmatmul.mubr.f32.gmra.mxu0 %v445
        %v616 = vpop.f32.mrf.mxu0
        %v617 = vadd.f32 0.0, %v616
        %v618 = vpop.f32.mrf.mxu0
        %619 = vmatprep.mubr.f32.mxu0 0.0
        %620 = vmatmul.mubr.f32.gmra.mxu0 %v448
        %v621 = vpop.f32.mrf.mxu0
        %v622 = vadd.f32 0.0, %v621
        %v623 = vpop.f32.mrf.mxu0
        %624 = vmatprep.mubr.f32.mxu0 0.0
        %625 = vmatmul.mubr.f32.gmra.mxu0 %v451
        %v626 = vpop.f32.mrf.mxu0
        %v627 = vadd.f32 0.0, %v626
        %v628 = vpop.f32.mrf.mxu0
        %629 = vmatprep.mubr.f32.mxu0 0.0
        %630 = vmatmul.mubr.f32.gmra.mxu0 %v454
        %v631 = vpop.f32.mrf.mxu0
        %v632 = vadd.f32 0.0, %v631
        %v633 = vpop.f32.mrf.mxu0
        %634 = vmatprep.mubr.f32.mxu0 0.0
        %635 = vmatmul.mubr.f32.gmra.mxu0 %v457
        %v636 = vpop.f32.mrf.mxu0
        %v637 = vadd.f32 0.0, %v636
        %v638 = vpop.f32.mrf.mxu0
        %639 = vmatprep.mubr.f32.mxu0 0.0
        %640 = vmatmul.mubr.f32.gmra.mxu0 %v460
        %v641 = vpop.f32.mrf.mxu0
        %v642 = vadd.f32 0.0, %v641
        %v643 = vpop.f32.mrf.mxu0
        %644 = vmatprep.mubr.f32.mxu0 0.0
        %645 = vmatmul.mubr.f32.gmra.mxu0 %v463
        %v646 = vpop.f32.mrf.mxu0
        %v647 = vadd.f32 0.0, %v646
        %v648 = vpop.f32.mrf.mxu0
        %649 = vmatprep.mubr.f32.mxu0 0.0
        %650 = vmatmul.mubr.f32.gmra.mxu0 %v466
        %v651 = vpop.f32.mrf.mxu0
        %v652 = vadd.f32 0.0, %v651
        %v653 = vpop.f32.mrf.mxu0
        %654 = vmatprep.mubr.f32.mxu0 0.0
        %655 = vmatmul.mubr.f32.gmra.mxu0 %v469
        %v656 = vpop.f32.mrf.mxu0
        %v657 = vadd.f32 0.0, %v656
        %v658 = vpop.f32.mrf.mxu0
        %659 = vmatprep.mubr.f32.mxu0 0.0
        %660 = vmatmul.mubr.f32.gmra.mxu0 %v472
        %v661 = vpop.f32.mrf.mxu0
        %v662 = vadd.f32 0.0, %v661
        %v663 = vpop.f32.mrf.mxu0
        %664 = vmatprep.mubr.f32.mxu0 0.0
        %665 = vmatmul.mubr.f32.gmra.mxu0 %v475
        %v666 = vpop.f32.mrf.mxu0
        %v667 = vadd.f32 0.0, %v666
        %v668 = vpop.f32.mrf.mxu0
        %669 = vmatprep.mubr.f32.mxu0 0.0
        %670 = vmatmul.mubr.f32.gmra.mxu0 %v478
        %v671 = vpop.f32.mrf.mxu0
        %v672 = vadd.f32 0.0, %v671
        %v673 = vpop.f32.mrf.mxu0
        %674 = vmatprep.mubr.f32.mxu0 0.0
        %675 = vmatmul.mubr.f32.gmra.mxu0 %v481
        %v676 = vpop.f32.mrf.mxu0
        %v677 = vadd.f32 0.0, %v676
        %v678 = vpop.f32.mrf.mxu0
        %679 = vmatprep.mubr.f32.mxu0 0.0
        %680 = vmatmul.mubr.f32.gmra.mxu0 %v484
        %v681 = vpop.f32.mrf.mxu0
        %v682 = vadd.f32 0.0, %v681
        %v683 = vpop.f32.mrf.mxu0
        %684 = vmatprep.mubr.f32.mxu0 0.0
        %685 = vmatmul.mubr.f32.gmra.mxu0 %v487
        %v686 = vpop.f32.mrf.mxu0
        %v687 = vadd.f32 0.0, %v686
        %v688 = vpop.f32.mrf.mxu0
        %689 = vmatprep.mubr.f32.mxu0 0.0
        %690 = vmatmul.mubr.f32.gmra.mxu0 %v490
        %v691 = vpop.f32.mrf.mxu0
        %v692 = vadd.f32 0.0, %v691
        %v693 = vpop.f32.mrf.mxu0
        %694 = vmatprep.mubr.f32.mxu0 0.0
        %695 = vmatmul.mubr.f32.gmra.mxu0 %v493
        %v696 = vpop.f32.mrf.mxu0
        %v697 = vadd.f32 0.0, %v696
        %v698 = vpop.f32.mrf.mxu0
        %699 = vmatprep.mubr.f32.mxu0 0.0
        %700 = vmatmul.mubr.f32.gmra.mxu0 %v496
        %v701 = vpop.f32.mrf.mxu0
        %v702 = vadd.f32 0.0, %v701
        %v703 = vpop.f32.mrf.mxu0
        %704 = vmatprep.mubr.f32.mxu0 0.0
        %705 = vmatmul.mubr.f32.gmra.mxu0 %v499
        %v706 = vpop.f32.mrf.mxu0
        %v707 = vadd.f32 0.0, %v706
        %v708 = vpop.f32.mrf.mxu0
        %709 = vmatprep.mubr.f32.mxu0 0.0
        %710 = vmatmul.mubr.f32.gmra.mxu0 %v502
        %v711 = vpop.f32.mrf.mxu0
        %v712 = vadd.f32 0.0, %v711
        %v713 = vpop.f32.mrf.mxu0
        %714 = vmatprep.mubr.f32.mxu0 0.0
        %715 = vmatmul.mubr.f32.gmra.mxu0 %v505
        %v716 = vpop.f32.mrf.mxu0
        %v717 = vadd.f32 0.0, %v716
        %v718 = vpop.f32.mrf.mxu0
        %719 = vmatprep.mubr.f32.mxu0 0.0
        %720 = vmatmul.mubr.f32.gmra.mxu0 %v508
        %v721 = vpop.f32.mrf.mxu0
        %v722 = vadd.f32 0.0, %v721
        %v723 = vpop.f32.mrf.mxu0
        %724 = vmatprep.mubr.f32.mxu0 0.0
        %725 = vmatmul.mubr.f32.gmra.mxu0 %v511
        %v726 = vpop.f32.mrf.mxu0
        %v727 = vadd.f32 0.0, %v726
        %v728 = vpop.f32.mrf.mxu0
        %729 = vmatprep.mubr.f32.mxu0 0.0
        %730 = vmatmul.mubr.f32.gmra.mxu0 %v514
        %v731 = vpop.f32.mrf.mxu0
        %v732 = vadd.f32 0.0, %v731
        %v733 = vpop.f32.mrf.mxu0
        %734 = vmatprep.mubr.f32.mxu0 0.0
        %735 = vmatmul.mubr.f32.gmra.mxu0 %v517
        %v736 = vpop.f32.mrf.mxu0
        %v737 = vadd.f32 0.0, %v736
        %v738 = vpop.f32.mrf.mxu0
        %739 = vmatprep.mubr.f32.mxu0 0.0
        %740 = vmatmul.mubr.f32.gmra.mxu0 %v520
        %v741 = vpop.f32.mrf.mxu0
        %v742 = vadd.f32 0.0, %v741
        %v743 = vpop.f32.mrf.mxu0
        %744 = vmatprep.mubr.f32.mxu0 0.0
        %745 = vmatmul.mubr.f32.gmra.mxu0 %v523
        %v746 = vpop.f32.mrf.mxu0
        %v747 = vadd.f32 0.0, %v746
        %v748 = vpop.f32.mrf.mxu0
        %749 = vdwg.mxu0
        %v750 = vld [vmem:[%s2] sm:$0x1]
        %v752 = vlaneseq
        %v753 = vshrl.u32 %v752, 7
        %v754 = vsub.s32 0, %v753
        %v755 = vrot.slane %v750, %v754
        %v757 = vmul.f32 %v592, %v755
        %v758 = vmul.f32 %v597, %v755
        %v759 = vmul.f32 %v602, %v755
        %v760 = vmul.f32 %v607, %v755
        %v761 = vmul.f32 %v612, %v755
        %v762 = vmul.f32 %v617, %v755
        %v763 = vmul.f32 %v622, %v755
        %v764 = vmul.f32 %v627, %v755
        %v765 = vmul.f32 %v632, %v755
        %v766 = vmul.f32 %v637, %v755
        %v767 = vmul.f32 %v642, %v755
        %v768 = vmul.f32 %v647, %v755
        %v769 = vmul.f32 %v652, %v755
        %v770 = vmul.f32 %v657, %v755
        %v771 = vmul.f32 %v662, %v755
        %v772 = vmul.f32 %v667, %v755
        %v773 = vmul.f32 %v672, %v755
        %v774 = vmul.f32 %v677, %v755
        %v775 = vmul.f32 %v682, %v755
        %v776 = vmul.f32 %v687, %v755
        %v777 = vmul.f32 %v692, %v755
        %v778 = vmul.f32 %v697, %v755
        %v779 = vmul.f32 %v702, %v755
        %v780 = vmul.f32 %v707, %v755
        %v781 = vmul.f32 %v712, %v755
        %v782 = vmul.f32 %v717, %v755
        %v783 = vmul.f32 %v722, %v755
        %v784 = vmul.f32 %v727, %v755
        %v785 = vmul.f32 %v732, %v755
        %v786 = vmul.f32 %v737, %v755
        %v787 = vmul.f32 %v742, %v755
        %v788 = vmul.f32 %v747, %v755
        %v789 = vld [vmem:[%s3] sm:$0x1]
        %v791 = vlaneseq
        %v792 = vshrl.u32 %v791, 7
        %v793 = vsub.s32 0, %v792
        %v794 = vrot.slane %v789, %v793
        %v796 = vadd.f32 %v757, %v794
        %v797 = vadd.f32 %v758, %v794
        %v798 = vadd.f32 %v759, %v794
        %v799 = vadd.f32 %v760, %v794
        %v800 = vadd.f32 %v761, %v794
        %v801 = vadd.f32 %v762, %v794
        %v802 = vadd.f32 %v763, %v794
        %v803 = vadd.f32 %v764, %v794
        %v804 = vadd.f32 %v765, %v794
        %v805 = vadd.f32 %v766, %v794
        %v806 = vadd.f32 %v767, %v794
        %v807 = vadd.f32 %v768, %v794
        %v808 = vadd.f32 %v769, %v794
        %v809 = vadd.f32 %v770, %v794
        %v810 = vadd.f32 %v771, %v794
        %v811 = vadd.f32 %v772, %v794
        %v812 = vadd.f32 %v773, %v794
        %v813 = vadd.f32 %v774, %v794
        %v814 = vadd.f32 %v775, %v794
        %v815 = vadd.f32 %v776, %v794
        %v816 = vadd.f32 %v777, %v794
        %v817 = vadd.f32 %v778, %v794
        %v818 = vadd.f32 %v779, %v794
        %v819 = vadd.f32 %v780, %v794
        %v820 = vadd.f32 %v781, %v794
        %v821 = vadd.f32 %v782, %v794
        %v822 = vadd.f32 %v783, %v794
        %v823 = vadd.f32 %v784, %v794
        %v824 = vadd.f32 %v785, %v794
        %v825 = vadd.f32 %v786, %v794
        %v826 = vadd.f32 %v787, %v794
        %v827 = vadd.f32 %v788, %v794
        %v828 = vmax.f32 %v796, 0.0
        %v829 = vmax.f32 %v797, 0.0
        %v830 = vmax.f32 %v798, 0.0
        %v831 = vmax.f32 %v799, 0.0
        %v832 = vmax.f32 %v800, 0.0
        %v833 = vmax.f32 %v801, 0.0
        %v834 = vmax.f32 %v802, 0.0
        %v835 = vmax.f32 %v803, 0.0
        %v836 = vmax.f32 %v804, 0.0
        %v837 = vmax.f32 %v805, 0.0
        %v838 = vmax.f32 %v806, 0.0
        %v839 = vmax.f32 %v807, 0.0
        %v840 = vmax.f32 %v808, 0.0
        %v841 = vmax.f32 %v809, 0.0
        %v842 = vmax.f32 %v810, 0.0
        %v843 = vmax.f32 %v811, 0.0
        %v844 = vmax.f32 %v812, 0.0
        %v845 = vmax.f32 %v813, 0.0
        %v846 = vmax.f32 %v814, 0.0
        %v847 = vmax.f32 %v815, 0.0
        %v848 = vmax.f32 %v816, 0.0
        %v849 = vmax.f32 %v817, 0.0
        %v850 = vmax.f32 %v818, 0.0
        %v851 = vmax.f32 %v819, 0.0
        %v852 = vmax.f32 %v820, 0.0
        %v853 = vmax.f32 %v821, 0.0
        %v854 = vmax.f32 %v822, 0.0
        %v855 = vmax.f32 %v823, 0.0
        %v856 = vmax.f32 %v824, 0.0
        %v857 = vmax.f32 %v825, 0.0
        %v858 = vmax.f32 %v826, 0.0
        %v859 = vmax.f32 %v827, 0.0
        %v860 = vlaneseq
        %v861 = vshrl.u32 %v860, 7
        %v862 = vadd.s32 %v861, 8
        %v863 = vadd.s32 %v861, 16
        %v864 = vadd.s32 %v861, 24
        %v865 = vadd.s32 %v861, 32
        %v866 = vadd.s32 %v861, 40
        %v867 = vadd.s32 %v861, 48
        %v868 = vadd.s32 %v861, 56
        %v869 = vadd.s32 %v861, 64
        %v870 = vadd.s32 %v861, 72
        %v871 = vadd.s32 %v861, 80
        %v872 = vadd.s32 %v861, 88
        %v873 = vadd.s32 %v861, 96
        %v874 = vadd.s32 %v861, 104
        %v875 = vadd.s32 %v861, 112
        %v876 = vadd.s32 %v861, 120
        %v877 = vadd.s32 %v861, 128
        %v878 = vadd.s32 %v861, 136
        %v879 = vadd.s32 %v861, 144
        %v880 = vadd.s32 %v861, 152
        %v881 = vadd.s32 %v861, 160
        %v882 = vadd.s32 %v861, 168
        %v883 = vadd.s32 %v861, 176
        %v884 = vadd.s32 %v861, 184
        %v885 = vadd.s32 %v861, 192
        %v886 = vadd.s32 %v861, 200
        %v887 = vadd.s32 %v861, 208
        %v888 = vadd.s32 %v861, 216
        %v889 = vadd.s32 %v861, 224
        %v890 = vadd.s32 %v861, 232
        %v891 = vadd.s32 %v861, 240
        %v892 = vadd.s32 %v861, 248
        %vm893 = vcmp.lt.s32.totalorder %v861, 0
        %v894 = vsub.s32 0, %v861
        %v895 = vsel %vm893, %v894, %v861
        %v896 = vshrl.u32 %v895, 4
        %v897 = vand.u32 %v895, 15
        %v898 = vsub.s32 0, %v897
        %v899 = vsel %vm893, %v898, %v897
        %vm900 = vcmp.lt.s32.totalorder %v862, 0
        %v901 = vsub.s32 0, %v862
        %v902 = vsel %vm900, %v901, %v862
        %v903 = vshrl.u32 %v902, 4
        %v904 = vand.u32 %v902, 15
        %v905 = vsub.s32 0, %v904
        %v906 = vsel %vm900, %v905, %v904
        %vm907 = vcmp.lt.s32.totalorder %v863, 0
        %v908 = vsub.s32 0, %v863
        %v909 = vsel %vm907, %v908, %v863
        %v910 = vshrl.u32 %v909, 4
        %v911 = vand.u32 %v909, 15
        %v912 = vsub.s32 0, %v911
        %v913 = vsel %vm907, %v912, %v911
        %vm914 = vcmp.lt.s32.totalorder %v864, 0
        %v915 = vsub.s32 0, %v864
        %v916 = vsel %vm914, %v915, %v864
        %v917 = vshrl.u32 %v916, 4
        %v918 = vand.u32 %v916, 15
        %v919 = vsub.s32 0, %v918
        %v920 = vsel %vm914, %v919, %v918
        %vm921 = vcmp.lt.s32.totalorder %v865, 0
        %v922 = vsub.s32 0, %v865
        %v923 = vsel %vm921, %v922, %v865
        %v924 = vshrl.u32 %v923, 4
        %v925 = vand.u32 %v923, 15
        %v926 = vsub.s32 0, %v925
        %v927 = vsel %vm921, %v926, %v925
        %vm928 = vcmp.lt.s32.totalorder %v866, 0
        %v929 = vsub.s32 0, %v866
        %v930 = vsel %vm928, %v929, %v866
        %v931 = vshrl.u32 %v930, 4
        %v932 = vand.u32 %v930, 15
        %v933 = vsub.s32 0, %v932
        %v934 = vsel %vm928, %v933, %v932
        %vm935 = vcmp.lt.s32.totalorder %v867, 0
        %v936 = vsub.s32 0, %v867
        %v937 = vsel %vm935, %v936, %v867
        %v938 = vshrl.u32 %v937, 4
        %v939 = vand.u32 %v937, 15
        %v940 = vsub.s32 0, %v939
        %v941 = vsel %vm935, %v940, %v939
        %vm942 = vcmp.lt.s32.totalorder %v868, 0
        %v943 = vsub.s32 0, %v868
        %v944 = vsel %vm942, %v943, %v868
        %v945 = vshrl.u32 %v944, 4
        %v946 = vand.u32 %v944, 15
        %v947 = vsub.s32 0, %v946
        %v948 = vsel %vm942, %v947, %v946
        %vm949 = vcmp.lt.s32.totalorder %v869, 0
        %v950 = vsub.s32 0, %v869
        %v951 = vsel %vm949, %v950, %v869
        %v952 = vshrl.u32 %v951, 4
        %v953 = vand.u32 %v951, 15
        %v954 = vsub.s32 0, %v953
        %v955 = vsel %vm949, %v954, %v953
        %vm956 = vcmp.lt.s32.totalorder %v870, 0
        %v957 = vsub.s32 0, %v870
        %v958 = vsel %vm956, %v957, %v870
        %v959 = vshrl.u32 %v958, 4
        %v960 = vand.u32 %v958, 15
        %v961 = vsub.s32 0, %v960
        %v962 = vsel %vm956, %v961, %v960
        %vm963 = vcmp.lt.s32.totalorder %v871, 0
        %v964 = vsub.s32 0, %v871
        %v965 = vsel %vm963, %v964, %v871
        %v966 = vshrl.u32 %v965, 4
        %v967 = vand.u32 %v965, 15
        %v968 = vsub.s32 0, %v967
        %v969 = vsel %vm963, %v968, %v967
        %vm970 = vcmp.lt.s32.totalorder %v872, 0
        %v971 = vsub.s32 0, %v872
        %v972 = vsel %vm970, %v971, %v872
        %v973 = vshrl.u32 %v972, 4
        %v974 = vand.u32 %v972, 15
        %v975 = vsub.s32 0, %v974
        %v976 = vsel %vm970, %v975, %v974
        %vm977 = vcmp.lt.s32.totalorder %v873, 0
        %v978 = vsub.s32 0, %v873
        %v979 = vsel %vm977, %v978, %v873
        %v980 = vshrl.u32 %v979, 4
        %v981 = vand.u32 %v979, 15
        %v982 = vsub.s32 0, %v981
        %v983 = vsel %vm977, %v982, %v981
        %vm984 = vcmp.lt.s32.totalorder %v874, 0
        %v985 = vsub.s32 0, %v874
        %v986 = vsel %vm984, %v985, %v874
        %v987 = vshrl.u32 %v986, 4
        %v988 = vand.u32 %v986, 15
        %v989 = vsub.s32 0, %v988
        %v990 = vsel %vm984, %v989, %v988
        %vm991 = vcmp.lt.s32.totalorder %v875, 0
        %v992 = vsub.s32 0, %v875
        %v993 = vsel %vm991, %v992, %v875
        %v994 = vshrl.u32 %v993, 4
        %v995 = vand.u32 %v993, 15
        %v996 = vsub.s32 0, %v995
        %v997 = vsel %vm991, %v996, %v995
        %vm998 = vcmp.lt.s32.totalorder %v876, 0
        %v999 = vsub.s32 0, %v876
        %v1000 = vsel %vm998, %v999, %v876
        %v1001 = vshrl.u32 %v1000, 4
        %v1002 = vand.u32 %v1000, 15
        %v1003 = vsub.s32 0, %v1002
        %v1004 = vsel %vm998, %v1003, %v1002
        %vm1005 = vcmp.lt.s32.totalorder %v877, 0
        %v1006 = vsub.s32 0, %v877
        %v1007 = vsel %vm1005, %v1006, %v877
        %v1008 = vshrl.u32 %v1007, 4
        %v1009 = vand.u32 %v1007, 15
        %v1010 = vsub.s32 0, %v1009
        %v1011 = vsel %vm1005, %v1010, %v1009
        %vm1012 = vcmp.lt.s32.totalorder %v878, 0
        %v1013 = vsub.s32 0, %v878
        %v1014 = vsel %vm1012, %v1013, %v878
        %v1015 = vshrl.u32 %v1014, 4
        %v1016 = vand.u32 %v1014, 15
        %v1017 = vsub.s32 0, %v1016
        %v1018 = vsel %vm1012, %v1017, %v1016
        %vm1019 = vcmp.lt.s32.totalorder %v879, 0
        %v1020 = vsub.s32 0, %v879
        %v1021 = vsel %vm1019, %v1020, %v879
        %v1022 = vshrl.u32 %v1021, 4
        %v1023 = vand.u32 %v1021, 15
        %v1024 = vsub.s32 0, %v1023
        %v1025 = vsel %vm1019, %v1024, %v1023
        %vm1026 = vcmp.lt.s32.totalorder %v880, 0
        %v1027 = vsub.s32 0, %v880
        %v1028 = vsel %vm1026, %v1027, %v880
        %v1029 = vshrl.u32 %v1028, 4
        %v1030 = vand.u32 %v1028, 15
        %v1031 = vsub.s32 0, %v1030
        %v1032 = vsel %vm1026, %v1031, %v1030
        %vm1033 = vcmp.lt.s32.totalorder %v881, 0
        %v1034 = vsub.s32 0, %v881
        %v1035 = vsel %vm1033, %v1034, %v881
        %v1036 = vshrl.u32 %v1035, 4
        %v1037 = vand.u32 %v1035, 15
        %v1038 = vsub.s32 0, %v1037
        %v1039 = vsel %vm1033, %v1038, %v1037
        %vm1040 = vcmp.lt.s32.totalorder %v882, 0
        %v1041 = vsub.s32 0, %v882
        %v1042 = vsel %vm1040, %v1041, %v882
        %v1043 = vshrl.u32 %v1042, 4
        %v1044 = vand.u32 %v1042, 15
        %v1045 = vsub.s32 0, %v1044
        %v1046 = vsel %vm1040, %v1045, %v1044
        %vm1047 = vcmp.lt.s32.totalorder %v883, 0
        %v1048 = vsub.s32 0, %v883
        %v1049 = vsel %vm1047, %v1048, %v883
        %v1050 = vshrl.u32 %v1049, 4
        %v1051 = vand.u32 %v1049, 15
        %v1052 = vsub.s32 0, %v1051
        %v1053 = vsel %vm1047, %v1052, %v1051
        %vm1054 = vcmp.lt.s32.totalorder %v884, 0
        %v1055 = vsub.s32 0, %v884
        %v1056 = vsel %vm1054, %v1055, %v884
        %v1057 = vshrl.u32 %v1056, 4
        %v1058 = vand.u32 %v1056, 15
        %v1059 = vsub.s32 0, %v1058
        %v1060 = vsel %vm1054, %v1059, %v1058
        %vm1061 = vcmp.lt.s32.totalorder %v885, 0
        %v1062 = vsub.s32 0, %v885
        %v1063 = vsel %vm1061, %v1062, %v885
        %v1064 = vshrl.u32 %v1063, 4
        %v1065 = vand.u32 %v1063, 15
        %v1066 = vsub.s32 0, %v1065
        %v1067 = vsel %vm1061, %v1066, %v1065
        %vm1068 = vcmp.lt.s32.totalorder %v886, 0
        %v1069 = vsub.s32 0, %v886
        %v1070 = vsel %vm1068, %v1069, %v886
        %v1071 = vshrl.u32 %v1070, 4
        %v1072 = vand.u32 %v1070, 15
        %v1073 = vsub.s32 0, %v1072
        %v1074 = vsel %vm1068, %v1073, %v1072
        %vm1075 = vcmp.lt.s32.totalorder %v887, 0
        %v1076 = vsub.s32 0, %v887
        %v1077 = vsel %vm1075, %v1076, %v887
        %v1078 = vshrl.u32 %v1077, 4
        %v1079 = vand.u32 %v1077, 15
        %v1080 = vsub.s32 0, %v1079
        %v1081 = vsel %vm1075, %v1080, %v1079
        %vm1082 = vcmp.lt.s32.totalorder %v888, 0
        %v1083 = vsub.s32 0, %v888
        %v1084 = vsel %vm1082, %v1083, %v888
        %v1085 = vshrl.u32 %v1084, 4
        %v1086 = vand.u32 %v1084, 15
        %v1087 = vsub.s32 0, %v1086
        %v1088 = vsel %vm1082, %v1087, %v1086
        %vm1089 = vcmp.lt.s32.totalorder %v889, 0
        %v1090 = vsub.s32 0, %v889
        %v1091 = vsel %vm1089, %v1090, %v889
        %v1092 = vshrl.u32 %v1091, 4
        %v1093 = vand.u32 %v1091, 15
        %v1094 = vsub.s32 0, %v1093
        %v1095 = vsel %vm1089, %v1094, %v1093
        %vm1096 = vcmp.lt.s32.totalorder %v890, 0
        %v1097 = vsub.s32 0, %v890
        %v1098 = vsel %vm1096, %v1097, %v890
        %v1099 = vshrl.u32 %v1098, 4
        %v1100 = vand.u32 %v1098, 15
        %v1101 = vsub.s32 0, %v1100
        %v1102 = vsel %vm1096, %v1101, %v1100
        %vm1103 = vcmp.lt.s32.totalorder %v891, 0
        %v1104 = vsub.s32 0, %v891
        %v1105 = vsel %vm1103, %v1104, %v891
        %v1106 = vshrl.u32 %v1105, 4
        %v1107 = vand.u32 %v1105, 15
        %v1108 = vsub.s32 0, %v1107
        %v1109 = vsel %vm1103, %v1108, %v1107
        %vm1110 = vcmp.lt.s32.totalorder %v892, 0
        %v1111 = vsub.s32 0, %v892
        %v1112 = vsel %vm1110, %v1111, %v892
        %v1113 = vshrl.u32 %v1112, 4
        %v1114 = vand.u32 %v1112, 15
        %v1115 = vsub.s32 0, %v1114
        %v1116 = vsel %vm1110, %v1115, %v1114
        %vm1117 = vcmp.ne.s32.totalorder %v899, 0
        %vm1118 = vcmp.ne.s32.totalorder %v906, 0
        %vm1119 = vcmp.ne.s32.totalorder %v913, 0
        %vm1120 = vcmp.ne.s32.totalorder %v920, 0
        %vm1121 = vcmp.ne.s32.totalorder %v927, 0
        %vm1122 = vcmp.ne.s32.totalorder %v934, 0
        %vm1123 = vcmp.ne.s32.totalorder %v941, 0
        %vm1124 = vcmp.ne.s32.totalorder %v948, 0
        %vm1125 = vcmp.ne.s32.totalorder %v955, 0
        %vm1126 = vcmp.ne.s32.totalorder %v962, 0
        %vm1127 = vcmp.ne.s32.totalorder %v969, 0
        %vm1128 = vcmp.ne.s32.totalorder %v976, 0
        %vm1129 = vcmp.ne.s32.totalorder %v983, 0
        %vm1130 = vcmp.ne.s32.totalorder %v990, 0
        %vm1131 = vcmp.ne.s32.totalorder %v997, 0
        %vm1132 = vcmp.ne.s32.totalorder %v1004, 0
        %vm1133 = vcmp.ne.s32.totalorder %v1011, 0
        %vm1134 = vcmp.ne.s32.totalorder %v1018, 0
        %vm1135 = vcmp.ne.s32.totalorder %v1025, 0
        %vm1136 = vcmp.ne.s32.totalorder %v1032, 0
        %vm1137 = vcmp.ne.s32.totalorder %v1039, 0
        %vm1138 = vcmp.ne.s32.totalorder %v1046, 0
        %vm1139 = vcmp.ne.s32.totalorder %v1053, 0
        %vm1140 = vcmp.ne.s32.totalorder %v1060, 0
        %vm1141 = vcmp.ne.s32.totalorder %v1067, 0
        %vm1142 = vcmp.ne.s32.totalorder %v1074, 0
        %vm1143 = vcmp.ne.s32.totalorder %v1081, 0
        %vm1144 = vcmp.ne.s32.totalorder %v1088, 0
        %vm1145 = vcmp.ne.s32.totalorder %v1095, 0
        %vm1146 = vcmp.ne.s32.totalorder %v1102, 0
        %vm1147 = vcmp.ne.s32.totalorder %v1109, 0
        %vm1148 = vcmp.ne.s32.totalorder %v1116, 0
        %vm1149 = vcmp.lt.s32.totalorder %v899, 0
        %vm1150 = vcmp.lt.s32.totalorder %v906, 0
        %vm1151 = vcmp.lt.s32.totalorder %v913, 0
        %vm1152 = vcmp.lt.s32.totalorder %v920, 0
        %vm1153 = vcmp.lt.s32.totalorder %v927, 0
        %vm1154 = vcmp.lt.s32.totalorder %v934, 0
        %vm1155 = vcmp.lt.s32.totalorder %v941, 0
        %vm1156 = vcmp.lt.s32.totalorder %v948, 0
        %vm1157 = vcmp.lt.s32.totalorder %v955, 0
        %vm1158 = vcmp.lt.s32.totalorder %v962, 0
        %vm1159 = vcmp.lt.s32.totalorder %v969, 0
        %vm1160 = vcmp.lt.s32.totalorder %v976, 0
        %vm1161 = vcmp.lt.s32.totalorder %v983, 0
        %vm1162 = vcmp.lt.s32.totalorder %v990, 0
        %vm1163 = vcmp.lt.s32.totalorder %v997, 0
        %vm1164 = vcmp.lt.s32.totalorder %v1004, 0
        %vm1165 = vcmp.lt.s32.totalorder %v1011, 0
        %vm1166 = vcmp.lt.s32.totalorder %v1018, 0
        %vm1167 = vcmp.lt.s32.totalorder %v1025, 0
        %vm1168 = vcmp.lt.s32.totalorder %v1032, 0
        %vm1169 = vcmp.lt.s32.totalorder %v1039, 0
        %vm1170 = vcmp.lt.s32.totalorder %v1046, 0
        %vm1171 = vcmp.lt.s32.totalorder %v1053, 0
        %vm1172 = vcmp.lt.s32.totalorder %v1060, 0
        %vm1173 = vcmp.lt.s32.totalorder %v1067, 0
        %vm1174 = vcmp.lt.s32.totalorder %v1074, 0
        %vm1175 = vcmp.lt.s32.totalorder %v1081, 0
        %vm1176 = vcmp.lt.s32.totalorder %v1088, 0
        %vm1177 = vcmp.lt.s32.totalorder %v1095, 0
        %vm1178 = vcmp.lt.s32.totalorder %v1102, 0
        %vm1179 = vcmp.lt.s32.totalorder %v1109, 0
        %vm1180 = vcmp.lt.s32.totalorder %v1116, 0
        %vm1181 = vmand %vm1149, %vm1117
        %vm1182 = vmand %vm1150, %vm1118
        %vm1183 = vmand %vm1151, %vm1119
        %vm1184 = vmand %vm1152, %vm1120
        %vm1185 = vmand %vm1153, %vm1121
        %vm1186 = vmand %vm1154, %vm1122
        %vm1187 = vmand %vm1155, %vm1123
        %vm1188 = vmand %vm1156, %vm1124
        %vm1189 = vmand %vm1157, %vm1125
        %vm1190 = vmand %vm1158, %vm1126
        %vm1191 = vmand %vm1159, %vm1127
        %vm1192 = vmand %vm1160, %vm1128
        %vm1193 = vmand %vm1161, %vm1129
        %vm1194 = vmand %vm1162, %vm1130
        %vm1195 = vmand %vm1163, %vm1131
        %vm1196 = vmand %vm1164, %vm1132
        %vm1197 = vmand %vm1165, %vm1133
        %vm1198 = vmand %vm1166, %vm1134
        %vm1199 = vmand %vm1167, %vm1135
        %vm1200 = vmand %vm1168, %vm1136
        %vm1201 = vmand %vm1169, %vm1137
        %vm1202 = vmand %vm1170, %vm1138
        %vm1203 = vmand %vm1171, %vm1139
        %vm1204 = vmand %vm1172, %vm1140
        %vm1205 = vmand %vm1173, %vm1141
        %vm1206 = vmand %vm1174, %vm1142
        %vm1207 = vmand %vm1175, %vm1143
        %vm1208 = vmand %vm1176, %vm1144
        %vm1209 = vmand %vm1177, %vm1145
        %vm1210 = vmand %vm1178, %vm1146
        %vm1211 = vmand %vm1179, %vm1147
        %vm1212 = vmand %vm1180, %vm1148
        %v1213 = vadd.s32 %v899, 16
        %v1214 = vadd.s32 %v906, 16
        %v1215 = vadd.s32 %v913, 16
        %v1216 = vadd.s32 %v920, 16
        %v1217 = vadd.s32 %v927, 16
        %v1218 = vadd.s32 %v934, 16
        %v1219 = vadd.s32 %v941, 16
        %v1220 = vadd.s32 %v948, 16
        %v1221 = vadd.s32 %v955, 16
        %v1222 = vadd.s32 %v962, 16
        %v1223 = vadd.s32 %v969, 16
        %v1224 = vadd.s32 %v976, 16
        %v1225 = vadd.s32 %v983, 16
        %v1226 = vadd.s32 %v990, 16
        %v1227 = vadd.s32 %v997, 16
        %v1228 = vadd.s32 %v1004, 16
        %v1229 = vadd.s32 %v1011, 16
        %v1230 = vadd.s32 %v1018, 16
        %v1231 = vadd.s32 %v1025, 16
        %v1232 = vadd.s32 %v1032, 16
        %v1233 = vadd.s32 %v1039, 16
        %v1234 = vadd.s32 %v1046, 16
        %v1235 = vadd.s32 %v1053, 16
        %v1236 = vadd.s32 %v1060, 16
        %v1237 = vadd.s32 %v1067, 16
        %v1238 = vadd.s32 %v1074, 16
        %v1239 = vadd.s32 %v1081, 16
        %v1240 = vadd.s32 %v1088, 16
        %v1241 = vadd.s32 %v1095, 16
        %v1242 = vadd.s32 %v1102, 16
        %v1243 = vadd.s32 %v1109, 16
        %v1244 = vadd.s32 %v1116, 16
        %v1245 = vsel %vm1181, %v1213, %v899
        %v1246 = vsel %vm1182, %v1214, %v906
        %v1247 = vsel %vm1183, %v1215, %v913
        %v1248 = vsel %vm1184, %v1216, %v920
        %v1249 = vsel %vm1185, %v1217, %v927
        %v1250 = vsel %vm1186, %v1218, %v934
        %v1251 = vsel %vm1187, %v1219, %v941
        %v1252 = vsel %vm1188, %v1220, %v948
        %v1253 = vsel %vm1189, %v1221, %v955
        %v1254 = vsel %vm1190, %v1222, %v962
        %v1255 = vsel %vm1191, %v1223, %v969
        %v1256 = vsel %vm1192, %v1224, %v976
        %v1257 = vsel %vm1193, %v1225, %v983
        %v1258 = vsel %vm1194, %v1226, %v990
        %v1259 = vsel %vm1195, %v1227, %v997
        %v1260 = vsel %vm1196, %v1228, %v1004
        %v1261 = vsel %vm1197, %v1229, %v1011
        %v1262 = vsel %vm1198, %v1230, %v1018
        %v1263 = vsel %vm1199, %v1231, %v1025
        %v1264 = vsel %vm1200, %v1232, %v1032
        %v1265 = vsel %vm1201, %v1233, %v1039
        %v1266 = vsel %vm1202, %v1234, %v1046
        %v1267 = vsel %vm1203, %v1235, %v1053
        %v1268 = vsel %vm1204, %v1236, %v1060
        %v1269 = vsel %vm1205, %v1237, %v1067
        %v1270 = vsel %vm1206, %v1238, %v1074
        %v1271 = vsel %vm1207, %v1239, %v1081
        %v1272 = vsel %vm1208, %v1240, %v1088
        %v1273 = vsel %vm1209, %v1241, %v1095
        %v1274 = vsel %vm1210, %v1242, %v1102
        %v1275 = vsel %vm1211, %v1243, %v1109
        %v1276 = vsel %vm1212, %v1244, %v1116
        %vm1277 = vcmp.ne.s32.totalorder %v1245, 15
        %vm1278 = vcmp.ne.s32.totalorder %v1246, 15
        %vm1279 = vcmp.ne.s32.totalorder %v1247, 15
        %vm1280 = vcmp.ne.s32.totalorder %v1248, 15
        %vm1281 = vcmp.ne.s32.totalorder %v1249, 15
        %vm1282 = vcmp.ne.s32.totalorder %v1250, 15
        %vm1283 = vcmp.ne.s32.totalorder %v1251, 15
        %vm1284 = vcmp.ne.s32.totalorder %v1252, 15
        %vm1285 = vcmp.ne.s32.totalorder %v1253, 15
        %vm1286 = vcmp.ne.s32.totalorder %v1254, 15
        %vm1287 = vcmp.ne.s32.totalorder %v1255, 15
        %vm1288 = vcmp.ne.s32.totalorder %v1256, 15
        %vm1289 = vcmp.ne.s32.totalorder %v1257, 15
        %vm1290 = vcmp.ne.s32.totalorder %v1258, 15
        %vm1291 = vcmp.ne.s32.totalorder %v1259, 15
        %vm1292 = vcmp.ne.s32.totalorder %v1260, 15
        %vm1293 = vcmp.ne.s32.totalorder %v1261, 15
        %vm1294 = vcmp.ne.s32.totalorder %v1262, 15
        %vm1295 = vcmp.ne.s32.totalorder %v1263, 15
        %vm1296 = vcmp.ne.s32.totalorder %v1264, 15
        %vm1297 = vcmp.ne.s32.totalorder %v1265, 15
        %vm1298 = vcmp.ne.s32.totalorder %v1266, 15
        %vm1299 = vcmp.ne.s32.totalorder %v1267, 15
        %vm1300 = vcmp.ne.s32.totalorder %v1268, 15
        %vm1301 = vcmp.ne.s32.totalorder %v1269, 15
        %vm1302 = vcmp.ne.s32.totalorder %v1270, 15
        %vm1303 = vcmp.ne.s32.totalorder %v1271, 15
        %vm1304 = vcmp.ne.s32.totalorder %v1272, 15
        %vm1305 = vcmp.ne.s32.totalorder %v1273, 15
        %vm1306 = vcmp.ne.s32.totalorder %v1274, 15
        %vm1307 = vcmp.ne.s32.totalorder %v1275, 15
        %vm1308 = vcmp.ne.s32.totalorder %v1276, 15
        %v1309 = vsel %vm1277, %v828, 0.0
        %v1310 = vsel %vm1278, %v829, 0.0
        %v1311 = vsel %vm1279, %v830, 0.0
        %v1312 = vsel %vm1280, %v831, 0.0
        %v1313 = vsel %vm1281, %v832, 0.0
        %v1314 = vsel %vm1282, %v833, 0.0
        %v1315 = vsel %vm1283, %v834, 0.0
        %v1316 = vsel %vm1284, %v835, 0.0
        %v1317 = vsel %vm1285, %v836, 0.0
        %v1318 = vsel %vm1286, %v837, 0.0
        %v1319 = vsel %vm1287, %v838, 0.0
        %v1320 = vsel %vm1288, %v839, 0.0
        %v1321 = vsel %vm1289, %v840, 0.0
        %v1322 = vsel %vm1290, %v841, 0.0
        %v1323 = vsel %vm1291, %v842, 0.0
        %v1324 = vsel %vm1292, %v843, 0.0
        %v1325 = vsel %vm1293, %v844, 0.0
        %v1326 = vsel %vm1294, %v845, 0.0
        %v1327 = vsel %vm1295, %v846, 0.0
        %v1328 = vsel %vm1296, %v847, 0.0
        %v1329 = vsel %vm1297, %v848, 0.0
        %v1330 = vsel %vm1298, %v849, 0.0
        %v1331 = vsel %vm1299, %v850, 0.0
        %v1332 = vsel %vm1300, %v851, 0.0
        %v1333 = vsel %vm1301, %v852, 0.0
        %v1334 = vsel %vm1302, %v853, 0.0
        %v1335 = vsel %vm1303, %v854, 0.0
        %v1336 = vsel %vm1304, %v855, 0.0
        %v1337 = vsel %vm1305, %v856, 0.0
        %v1338 = vsel %vm1306, %v857, 0.0
        %v1339 = vsel %vm1307, %v858, 0.0
        %v1340 = vsel %vm1308, %v859, 0.0
        %vm1341 = vcmp.ne.s32.totalorder %v1245, 0
        %vm1342 = vcmp.ne.s32.totalorder %v1246, 0
        %vm1343 = vcmp.ne.s32.totalorder %v1247, 0
        %vm1344 = vcmp.ne.s32.totalorder %v1248, 0
        %vm1345 = vcmp.ne.s32.totalorder %v1249, 0
        %vm1346 = vcmp.ne.s32.totalorder %v1250, 0
        %vm1347 = vcmp.ne.s32.totalorder %v1251, 0
        %vm1348 = vcmp.ne.s32.totalorder %v1252, 0
        %vm1349 = vcmp.ne.s32.totalorder %v1253, 0
        %vm1350 = vcmp.ne.s32.totalorder %v1254, 0
        %vm1351 = vcmp.ne.s32.totalorder %v1255, 0
        %vm1352 = vcmp.ne.s32.totalorder %v1256, 0
        %vm1353 = vcmp.ne.s32.totalorder %v1257, 0
        %vm1354 = vcmp.ne.s32.totalorder %v1258, 0
        %vm1355 = vcmp.ne.s32.totalorder %v1259, 0
        %vm1356 = vcmp.ne.s32.totalorder %v1260, 0
        %vm1357 = vcmp.ne.s32.totalorder %v1261, 0
        %vm1358 = vcmp.ne.s32.totalorder %v1262, 0
        %vm1359 = vcmp.ne.s32.totalorder %v1263, 0
        %vm1360 = vcmp.ne.s32.totalorder %v1264, 0
        %vm1361 = vcmp.ne.s32.totalorder %v1265, 0
        %vm1362 = vcmp.ne.s32.totalorder %v1266, 0
        %vm1363 = vcmp.ne.s32.totalorder %v1267, 0
        %vm1364 = vcmp.ne.s32.totalorder %v1268, 0
        %vm1365 = vcmp.ne.s32.totalorder %v1269, 0
        %vm1366 = vcmp.ne.s32.totalorder %v1270, 0
        %vm1367 = vcmp.ne.s32.totalorder %v1271, 0
        %vm1368 = vcmp.ne.s32.totalorder %v1272, 0
        %vm1369 = vcmp.ne.s32.totalorder %v1273, 0
        %vm1370 = vcmp.ne.s32.totalorder %v1274, 0
        %vm1371 = vcmp.ne.s32.totalorder %v1275, 0
        %vm1372 = vcmp.ne.s32.totalorder %v1276, 0
        %v1373 = vsel %vm1341, %v828, 0.0
        %v1374 = vsel %vm1342, %v829, 0.0
        %v1375 = vsel %vm1343, %v830, 0.0
        %v1376 = vsel %vm1344, %v831, 0.0
        %v1377 = vsel %vm1345, %v832, 0.0
        %v1378 = vsel %vm1346, %v833, 0.0
        %v1379 = vsel %vm1347, %v834, 0.0
        %v1380 = vsel %vm1348, %v835, 0.0
        %v1381 = vsel %vm1349, %v836, 0.0
        %v1382 = vsel %vm1350, %v837, 0.0
        %v1383 = vsel %vm1351, %v838, 0.0
        %v1384 = vsel %vm1352, %v839, 0.0
        %v1385 = vsel %vm1353, %v840, 0.0
        %v1386 = vsel %vm1354, %v841, 0.0
        %v1387 = vsel %vm1355, %v842, 0.0
        %v1388 = vsel %vm1356, %v843, 0.0
        %v1389 = vsel %vm1357, %v844, 0.0
        %v1390 = vsel %vm1358, %v845, 0.0
        %v1391 = vsel %vm1359, %v846, 0.0
        %v1392 = vsel %vm1360, %v847, 0.0
        %v1393 = vsel %vm1361, %v848, 0.0
        %v1394 = vsel %vm1362, %v849, 0.0
        %v1395 = vsel %vm1363, %v850, 0.0
        %v1396 = vsel %vm1364, %v851, 0.0
        %v1397 = vsel %vm1365, %v852, 0.0
        %v1398 = vsel %vm1366, %v853, 0.0
        %v1399 = vsel %vm1367, %v854, 0.0
        %v1400 = vsel %vm1368, %v855, 0.0
        %v1401 = vsel %vm1369, %v856, 0.0
        %v1402 = vsel %vm1370, %v857, 0.0
        %v1403 = vsel %vm1371, %v858, 0.0
        %v1404 = vsel %vm1372, %v859, 0.0
        %vm1405 = vcmask 785408
        %1406 = vst.msk [vmem:[#allocation2] sm:$0xff] %vm1405, 0.0
        %1407 = vst.msk [vmem:[#allocation2 + $0x8] sm:$0xff] %vm1405, 0.0
        %vm1408 = vcmask 778240
        %1409 = vst.msk [vmem:[#allocation2 + $0x10] sm:$0x1] %vm1408, 0.0
        %1410 = vst.msk [vmem:[#allocation2 + $0x10f] sm:$0xff] %vm1405, 0.0
        %1411 = vst.msk [vmem:[#allocation2 + $0x117] sm:$0xff] %vm1405, 0.0
        %1412 = vst.msk [vmem:[#allocation2 + $0x11f] sm:$0x1] %vm1408, 0.0
        %vm1413 = vcmask 261120
        %1414 = vst.msk [vmem:[#allocation2 + $0x11] sm:$0xff] %vm1413, %v1309
        %1415 = vst.msk [vmem:[#allocation2 + $0x19] sm:$0xff] %vm1413, %v1310
        %1416 = vst.msk [vmem:[#allocation2 + $0x21] sm:$0xff] %vm1413, %v1311
        %1417 = vst.msk [vmem:[#allocation2 + $0x29] sm:$0xff] %vm1413, %v1312
        %1418 = vst.msk [vmem:[#allocation2 + $0x31] sm:$0xff] %vm1413, %v1313
        %1419 = vst.msk [vmem:[#allocation2 + $0x39] sm:$0xff] %vm1413, %v1314
        %1420 = vst.msk [vmem:[#allocation2 + $0x41] sm:$0xff] %vm1413, %v1315
        %1421 = vst.msk [vmem:[#allocation2 + $0x49] sm:$0xff] %vm1413, %v1316
        %1422 = vst.msk [vmem:[#allocation2 + $0x51] sm:$0xff] %vm1413, %v1317
        %1423 = vst.msk [vmem:[#allocation2 + $0x59] sm:$0xff] %vm1413, %v1318
        %1424 = vst.msk [vmem:[#allocation2 + $0x61] sm:$0xff] %vm1413, %v1319
        %1425 = vst.msk [vmem:[#allocation2 + $0x69] sm:$0xff] %vm1413, %v1320
        %1426 = vst.msk [vmem:[#allocation2 + $0x71] sm:$0xff] %vm1413, %v1321
        %1427 = vst.msk [vmem:[#allocation2 + $0x79] sm:$0xff] %vm1413, %v1322
        %1428 = vst.msk [vmem:[#allocation2 + $0x81] sm:$0xff] %vm1413, %v1323
        %1429 = vst.msk [vmem:[#allocation2 + $0x89] sm:$0xff] %vm1413, %v1324
        %1430 = vst.msk [vmem:[#allocation2 + $0x91] sm:$0xff] %vm1413, %v1325
        %1431 = vst.msk [vmem:[#allocation2 + $0x99] sm:$0xff] %vm1413, %v1326
        %1432 = vst.msk [vmem:[#allocation2 + $0xa1] sm:$0xff] %vm1413, %v1327
        %1433 = vst.msk [vmem:[#allocation2 + $0xa9] sm:$0xff] %vm1413, %v1328
        %1434 = vst.msk [vmem:[#allocation2 + $0xb1] sm:$0xff] %vm1413, %v1329
        %1435 = vst.msk [vmem:[#allocation2 + $0xb9] sm:$0xff] %vm1413, %v1330
        %1436 = vst.msk [vmem:[#allocation2 + $0xc1] sm:$0xff] %vm1413, %v1331
        %1437 = vst.msk [vmem:[#allocation2 + $0xc9] sm:$0xff] %vm1413, %v1332
        %1438 = vst.msk [vmem:[#allocation2 + $0xd1] sm:$0xff] %vm1413, %v1333
        %1439 = vst.msk [vmem:[#allocation2 + $0xd9] sm:$0xff] %vm1413, %v1334
        %1440 = vst.msk [vmem:[#allocation2 + $0xe1] sm:$0xff] %vm1413, %v1335
        %1441 = vst.msk [vmem:[#allocation2 + $0xe9] sm:$0xff] %vm1413, %v1336
        %1442 = vst.msk [vmem:[#allocation2 + $0xf1] sm:$0xff] %vm1413, %v1337
        %1443 = vst.msk [vmem:[#allocation2 + $0xf9] sm:$0xff] %vm1413, %v1338
        %1444 = vst.msk [vmem:[#allocation2 + $0x101] sm:$0xff] %vm1413, %v1339
        %1445 = vst.msk [vmem:[#allocation2 + $0x109] sm:$0xff] %vm1413, %v1340
        %1478 = vrot.lane.b32.xlu0 %v828, 32
        %v1479 = vpop.permute.xlu0 %1478
        %1480 = vrot.lane.b32.xlu0 %v829, 32
        %v1481 = vpop.permute.xlu0 %1480
        %1482 = vrot.lane.b32.xlu0 %v830, 32
        %v1483 = vpop.permute.xlu0 %1482
        %1484 = vrot.lane.b32.xlu0 %v831, 32
        %v1485 = vpop.permute.xlu0 %1484
        %1486 = vrot.lane.b32.xlu0 %v832, 32
        %v1487 = vpop.permute.xlu0 %1486
        %1488 = vrot.lane.b32.xlu0 %v833, 32
        %v1489 = vpop.permute.xlu0 %1488
        %1490 = vrot.lane.b32.xlu0 %v834, 32
        %v1491 = vpop.permute.xlu0 %1490
        %1492 = vrot.lane.b32.xlu0 %v835, 32
        %v1493 = vpop.permute.xlu0 %1492
        %1494 = vrot.lane.b32.xlu0 %v836, 32
        %v1495 = vpop.permute.xlu0 %1494
        %1496 = vrot.lane.b32.xlu0 %v837, 32
        %v1497 = vpop.permute.xlu0 %1496
        %1498 = vrot.lane.b32.xlu0 %v838, 32
        %v1499 = vpop.permute.xlu0 %1498
        %1500 = vrot.lane.b32.xlu0 %v839, 32
        %v1501 = vpop.permute.xlu0 %1500
        %1502 = vrot.lane.b32.xlu0 %v840, 32
        %v1503 = vpop.permute.xlu0 %1502
        %1504 = vrot.lane.b32.xlu0 %v841, 32
        %v1505 = vpop.permute.xlu0 %1504
        %1506 = vrot.lane.b32.xlu0 %v842, 32
        %v1507 = vpop.permute.xlu0 %1506
        %1508 = vrot.lane.b32.xlu0 %v843, 32
        %v1509 = vpop.permute.xlu0 %1508
        %1510 = vrot.lane.b32.xlu0 %v844, 32
        %v1511 = vpop.permute.xlu0 %1510
        %1512 = vrot.lane.b32.xlu0 %v845, 32
        %v1513 = vpop.permute.xlu0 %1512
        %1514 = vrot.lane.b32.xlu0 %v846, 32
        %v1515 = vpop.permute.xlu0 %1514
        %1516 = vrot.lane.b32.xlu0 %v847, 32
        %v1517 = vpop.permute.xlu0 %1516
        %1518 = vrot.lane.b32.xlu0 %v848, 32
        %v1519 = vpop.permute.xlu0 %1518
        %1520 = vrot.lane.b32.xlu0 %v849, 32
        %v1521 = vpop.permute.xlu0 %1520
        %1522 = vrot.lane.b32.xlu0 %v850, 32
        %v1523 = vpop.permute.xlu0 %1522
        %1524 = vrot.lane.b32.xlu0 %v851, 32
        %v1525 = vpop.permute.xlu0 %1524
        %1526 = vrot.lane.b32.xlu0 %v852, 32
        %v1527 = vpop.permute.xlu0 %1526
        %1528 = vrot.lane.b32.xlu0 %v853, 32
        %v1529 = vpop.permute.xlu0 %1528
        %1530 = vrot.lane.b32.xlu0 %v854, 32
        %v1531 = vpop.permute.xlu0 %1530
        %1532 = vrot.lane.b32.xlu0 %v855, 32
        %v1533 = vpop.permute.xlu0 %1532
        %1534 = vrot.lane.b32.xlu0 %v856, 32
        %v1535 = vpop.permute.xlu0 %1534
        %1536 = vrot.lane.b32.xlu0 %v857, 32
        %v1537 = vpop.permute.xlu0 %1536
        %1538 = vrot.lane.b32.xlu0 %v858, 32
        %v1539 = vpop.permute.xlu0 %1538
        %1540 = vrot.lane.b32.xlu0 %v859, 32
        %v1541 = vpop.permute.xlu0 %1540
        %vm1574 = vcmask 523520
        %1575 = vst.msk [vmem:[#allocation2 + $0x10] sm:$0xff] %vm1574, %v1479
        %1576 = vst.msk [vmem:[#allocation2 + $0x18] sm:$0xff] %vm1574, %v1481
        %1577 = vst.msk [vmem:[#allocation2 + $0x20] sm:$0xff] %vm1574, %v1483
        %1578 = vst.msk [vmem:[#allocation2 + $0x28] sm:$0xff] %vm1574, %v1485
        %1579 = vst.msk [vmem:[#allocation2 + $0x30] sm:$0xff] %vm1574, %v1487
        %1580 = vst.msk [vmem:[#allocation2 + $0x38] sm:$0xff] %vm1574, %v1489
        %1581 = vst.msk [vmem:[#allocation2 + $0x40] sm:$0xff] %vm1574, %v1491
        %1582 = vst.msk [vmem:[#allocation2 + $0x48] sm:$0xff] %vm1574, %v1493
        %1583 = vst.msk [vmem:[#allocation2 + $0x50] sm:$0xff] %vm1574, %v1495
        %1584 = vst.msk [vmem:[#allocation2 + $0x58] sm:$0xff] %vm1574, %v1497
        %1585 = vst.msk [vmem:[#allocation2 + $0x60] sm:$0xff] %vm1574, %v1499
        %1586 = vst.msk [vmem:[#allocation2 + $0x68] sm:$0xff] %vm1574, %v1501
        %1587 = vst.msk [vmem:[#allocation2 + $0x70] sm:$0xff] %vm1574, %v1503
        %1588 = vst.msk [vmem:[#allocation2 + $0x78] sm:$0xff] %vm1574, %v1505
        %1589 = vst.msk [vmem:[#allocation2 + $0x80] sm:$0xff] %vm1574, %v1507
        %1590 = vst.msk [vmem:[#allocation2 + $0x88] sm:$0xff] %vm1574, %v1509
        %1591 = vst.msk [vmem:[#allocation2 + $0x90] sm:$0xff] %vm1574, %v1511
        %1592 = vst.msk [vmem:[#allocation2 + $0x98] sm:$0xff] %vm1574, %v1513
        %1593 = vst.msk [vmem:[#allocation2 + $0xa0] sm:$0xff] %vm1574, %v1515
        %1594 = vst.msk [vmem:[#allocation2 + $0xa8] sm:$0xff] %vm1574, %v1517
        %1595 = vst.msk [vmem:[#allocation2 + $0xb0] sm:$0xff] %vm1574, %v1519
        %1596 = vst.msk [vmem:[#allocation2 + $0xb8] sm:$0xff] %vm1574, %v1521
        %1597 = vst.msk [vmem:[#allocation2 + $0xc0] sm:$0xff] %vm1574, %v1523
        %1598 = vst.msk [vmem:[#allocation2 + $0xc8] sm:$0xff] %vm1574, %v1525
        %1599 = vst.msk [vmem:[#allocation2 + $0xd0] sm:$0xff] %vm1574, %v1527
        %1600 = vst.msk [vmem:[#allocation2 + $0xd8] sm:$0xff] %vm1574, %v1529
        %1601 = vst.msk [vmem:[#allocation2 + $0xe0] sm:$0xff] %vm1574, %v1531
        %1602 = vst.msk [vmem:[#allocation2 + $0xe8] sm:$0xff] %vm1574, %v1533
        %1603 = vst.msk [vmem:[#allocation2 + $0xf0] sm:$0xff] %vm1574, %v1535
        %1604 = vst.msk [vmem:[#allocation2 + $0xf8] sm:$0xff] %vm1574, %v1537
        %1605 = vst.msk [vmem:[#allocation2 + $0x100] sm:$0xff] %vm1574, %v1539
        %1606 = vst.msk [vmem:[#allocation2 + $0x108] sm:$0xff] %vm1574, %v1541
        %1639 = vrot.lane.b32.xlu0 %v1373, 64
        %v1640 = vpop.permute.xlu0 %1639
        %1641 = vrot.lane.b32.xlu0 %v1374, 64
        %v1642 = vpop.permute.xlu0 %1641
        %1643 = vrot.lane.b32.xlu0 %v1375, 64
        %v1644 = vpop.permute.xlu0 %1643
        %1645 = vrot.lane.b32.xlu0 %v1376, 64
        %v1646 = vpop.permute.xlu0 %1645
        %1647 = vrot.lane.b32.xlu0 %v1377, 64
        %v1648 = vpop.permute.xlu0 %1647
        %1649 = vrot.lane.b32.xlu0 %v1378, 64
        %v1650 = vpop.permute.xlu0 %1649
        %1651 = vrot.lane.b32.xlu0 %v1379, 64
        %v1652 = vpop.permute.xlu0 %1651
        %1653 = vrot.lane.b32.xlu0 %v1380, 64
        %v1654 = vpop.permute.xlu0 %1653
        %1655 = vrot.lane.b32.xlu0 %v1381, 64
        %v1656 = vpop.permute.xlu0 %1655
        %1657 = vrot.lane.b32.xlu0 %v1382, 64
        %v1658 = vpop.permute.xlu0 %1657
        %1659 = vrot.lane.b32.xlu0 %v1383, 64
        %v1660 = vpop.permute.xlu0 %1659
        %1661 = vrot.lane.b32.xlu0 %v1384, 64
        %v1662 = vpop.permute.xlu0 %1661
        %1663 = vrot.lane.b32.xlu0 %v1385, 64
        %v1664 = vpop.permute.xlu0 %1663
        %1665 = vrot.lane.b32.xlu0 %v1386, 64
        %v1666 = vpop.permute.xlu0 %1665
        %1667 = vrot.lane.b32.xlu0 %v1387, 64
        %v1668 = vpop.permute.xlu0 %1667
        %1669 = vrot.lane.b32.xlu0 %v1388, 64
        %v1670 = vpop.permute.xlu0 %1669
        %1671 = vrot.lane.b32.xlu0 %v1389, 64
        %v1672 = vpop.permute.xlu0 %1671
        %1673 = vrot.lane.b32.xlu0 %v1390, 64
        %v1674 = vpop.permute.xlu0 %1673
        %1675 = vrot.lane.b32.xlu0 %v1391, 64
        %v1676 = vpop.permute.xlu0 %1675
        %1677 = vrot.lane.b32.xlu0 %v1392, 64
        %v1678 = vpop.permute.xlu0 %1677
        %1679 = vrot.lane.b32.xlu0 %v1393, 64
        %v1680 = vpop.permute.xlu0 %1679
        %1681 = vrot.lane.b32.xlu0 %v1394, 64
        %v1682 = vpop.permute.xlu0 %1681
        %1683 = vrot.lane.b32.xlu0 %v1395, 64
        %v1684 = vpop.permute.xlu0 %1683
        %1685 = vrot.lane.b32.xlu0 %v1396, 64
        %v1686 = vpop.permute.xlu0 %1685
        %1687 = vrot.lane.b32.xlu0 %v1397, 64
        %v1688 = vpop.permute.xlu0 %1687
        %1689 = vrot.lane.b32.xlu0 %v1398, 64
        %v1690 = vpop.permute.xlu0 %1689
        %1691 = vrot.lane.b32.xlu0 %v1399, 64
        %v1692 = vpop.permute.xlu0 %1691
        %1693 = vrot.lane.b32.xlu0 %v1400, 64
        %v1694 = vpop.permute.xlu0 %1693
        %1695 = vrot.lane.b32.xlu0 %v1401, 64
        %v1696 = vpop.permute.xlu0 %1695
        %1697 = vrot.lane.b32.xlu0 %v1402, 64
        %v1698 = vpop.permute.xlu0 %1697
        %1699 = vrot.lane.b32.xlu0 %v1403, 64
        %v1700 = vpop.permute.xlu0 %1699
        %1701 = vrot.lane.b32.xlu0 %v1404, 64
        %v1702 = vpop.permute.xlu0 %1701
        %vm1735 = vcmask 785920
        %1736 = vst.msk [vmem:[#allocation2 + $0xf] sm:$0xff] %vm1735, %v1640
        %1737 = vst.msk [vmem:[#allocation2 + $0x17] sm:$0xff] %vm1735, %v1642
        %1738 = vst.msk [vmem:[#allocation2 + $0x1f] sm:$0xff] %vm1735, %v1644
        %1739 = vst.msk [vmem:[#allocation2 + $0x27] sm:$0xff] %vm1735, %v1646
        %1740 = vst.msk [vmem:[#allocation2 + $0x2f] sm:$0xff] %vm1735, %v1648
        %1741 = vst.msk [vmem:[#allocation2 + $0x37] sm:$0xff] %vm1735, %v1650
        %1742 = vst.msk [vmem:[#allocation2 + $0x3f] sm:$0xff] %vm1735, %v1652
        %1743 = vst.msk [vmem:[#allocation2 + $0x47] sm:$0xff] %vm1735, %v1654
        %1744 = vst.msk [vmem:[#allocation2 + $0x4f] sm:$0xff] %vm1735, %v1656
        %1745 = vst.msk [vmem:[#allocation2 + $0x57] sm:$0xff] %vm1735, %v1658
        %1746 = vst.msk [vmem:[#allocation2 + $0x5f] sm:$0xff] %vm1735, %v1660
        %1747 = vst.msk [vmem:[#allocation2 + $0x67] sm:$0xff] %vm1735, %v1662
        %1748 = vst.msk [vmem:[#allocation2 + $0x6f] sm:$0xff] %vm1735, %v1664
        %1749 = vst.msk [vmem:[#allocation2 + $0x77] sm:$0xff] %vm1735, %v1666
        %1750 = vst.msk [vmem:[#allocation2 + $0x7f] sm:$0xff] %vm1735, %v1668
        %1751 = vst.msk [vmem:[#allocation2 + $0x87] sm:$0xff] %vm1735, %v1670
        %1752 = vst.msk [vmem:[#allocation2 + $0x8f] sm:$0xff] %vm1735, %v1672
        %1753 = vst.msk [vmem:[#allocation2 + $0x97] sm:$0xff] %vm1735, %v1674
        %1754 = vst.msk [vmem:[#allocation2 + $0x9f] sm:$0xff] %vm1735, %v1676
        %1755 = vst.msk [vmem:[#allocation2 + $0xa7] sm:$0xff] %vm1735, %v1678
        %1756 = vst.msk [vmem:[#allocation2 + $0xaf] sm:$0xff] %vm1735, %v1680
        %1757 = vst.msk [vmem:[#allocation2 + $0xb7] sm:$0xff] %vm1735, %v1682
        %1758 = vst.msk [vmem:[#allocation2 + $0xbf] sm:$0xff] %vm1735, %v1684
        %1759 = vst.msk [vmem:[#allocation2 + $0xc7] sm:$0xff] %vm1735, %v1686
        %1760 = vst.msk [vmem:[#allocation2 + $0xcf] sm:$0xff] %vm1735, %v1688
        %1761 = vst.msk [vmem:[#allocation2 + $0xd7] sm:$0xff] %vm1735, %v1690
        %1762 = vst.msk [vmem:[#allocation2 + $0xdf] sm:$0xff] %vm1735, %v1692
        %1763 = vst.msk [vmem:[#allocation2 + $0xe7] sm:$0xff] %vm1735, %v1694
        %1764 = vst.msk [vmem:[#allocation2 + $0xef] sm:$0xff] %vm1735, %v1696
        %1765 = vst.msk [vmem:[#allocation2 + $0xf7] sm:$0xff] %vm1735, %v1698
        %1766 = vst.msk [vmem:[#allocation2 + $0xff] sm:$0xff] %vm1735, %v1700
        %1767 = vst.msk [vmem:[#allocation2 + $0x107] sm:$0xff] %vm1735, %v1702
        %v1768 = vld [vmem:[#allocation2] sm:$0xff]
        %v1769 = vld [vmem:[#allocation2 + $0x8] sm:$0xff]
        %v1770 = vld [vmem:[#allocation2 + $0x10] sm:$0xff]
        %v1771 = vld [vmem:[#allocation2 + $0x18] sm:$0xff]
        %v1772 = vld [vmem:[#allocation2 + $0x20] sm:$0xff]
        %v1773 = vld [vmem:[#allocation2 + $0x28] sm:$0xff]
        %v1774 = vld [vmem:[#allocation2 + $0x30] sm:$0xff]
        %v1775 = vld [vmem:[#allocation2 + $0x38] sm:$0xff]
        %v1776 = vld [vmem:[#allocation2 + $0x40] sm:$0xff]
        %v1777 = vld [vmem:[#allocation2 + $0x48] sm:$0xff]
        %v1778 = vld [vmem:[#allocation2 + $0x50] sm:$0xff]
        %v1779 = vld [vmem:[#allocation2 + $0x58] sm:$0xff]
        %v1780 = vld [vmem:[#allocation2 + $0x60] sm:$0xff]
        %v1781 = vld [vmem:[#allocation2 + $0x68] sm:$0xff]
        %v1782 = vld [vmem:[#allocation2 + $0x70] sm:$0xff]
        %v1783 = vld [vmem:[#allocation2 + $0x78] sm:$0xff]
        %v1784 = vld [vmem:[#allocation2 + $0x80] sm:$0xff]
        %v1785 = vld [vmem:[#allocation2 + $0x88] sm:$0xff]
        %v1786 = vld [vmem:[#allocation2 + $0x90] sm:$0xff]
        %v1787 = vld [vmem:[#allocation2 + $0x98] sm:$0xff]
        %v1788 = vld [vmem:[#allocation2 + $0xa0] sm:$0xff]
        %v1789 = vld [vmem:[#allocation2 + $0xa8] sm:$0xff]
        %v1790 = vld [vmem:[#allocation2 + $0xb0] sm:$0xff]
        %v1791 = vld [vmem:[#allocation2 + $0xb8] sm:$0xff]
        %v1792 = vld [vmem:[#allocation2 + $0xc0] sm:$0xff]
        %v1793 = vld [vmem:[#allocation2 + $0xc8] sm:$0xff]
        %v1794 = vld [vmem:[#allocation2 + $0xd0] sm:$0xff]
        %v1795 = vld [vmem:[#allocation2 + $0xd8] sm:$0xff]
        %v1796 = vld [vmem:[#allocation2 + $0xe0] sm:$0xff]
        %v1797 = vld [vmem:[#allocation2 + $0xe8] sm:$0xff]
        %v1798 = vld [vmem:[#allocation2 + $0xf0] sm:$0xff]
        %v1799 = vld [vmem:[#allocation2 + $0xf8] sm:$0xff]
        %v1800 = vld [vmem:[%s4] sm:$0xff]
        %v1801 = vld [vmem:[%s4 + $0x8] sm:$0xff]
        %v1802 = vld [vmem:[%s4 + $0x10] sm:$0xff]
        %v1803 = vld [vmem:[%s4 + $0x18] sm:$0xff]
        %v1804 = vld [vmem:[%s4 + $0x20] sm:$0xff]
        %v1805 = vld [vmem:[%s4 + $0x28] sm:$0xff]
        %v1806 = vld [vmem:[%s4 + $0x30] sm:$0xff]
        %v1807 = vld [vmem:[%s4 + $0x38] sm:$0xff]
        %v1808 = vld [vmem:[%s4 + $0x40] sm:$0xff]
        %v1809 = vld [vmem:[%s4 + $0x48] sm:$0xff]
        %v1810 = vld [vmem:[%s4 + $0x50] sm:$0xff]
        %v1811 = vld [vmem:[%s4 + $0x58] sm:$0xff]
        %v1812 = vld [vmem:[#allocation2 + $0x100] sm:$0xff]
        %v1813 = vld [vmem:[#allocation2 + $0x108] sm:$0xff]
        %s1814 = scalar_lea.vmem %s4, 96
        %v1815 = vld [vmem:[%s1814] sm:$0xff]
        %v1816 = vld [vmem:[%s1814 + $0x8] sm:$0xff]
        %v1817 = vld [vmem:[%s1814 + $0x10] sm:$0xff]
        %v1818 = vld [vmem:[%s1814 + $0x18] sm:$0xff]
        %v1819 = vld [vmem:[%s1814 + $0x20] sm:$0xff]
        %v1820 = vld [vmem:[%s1814 + $0x28] sm:$0xff]
        %v1821 = vld [vmem:[%s1814 + $0x30] sm:$0xff]
        %v1822 = vld [vmem:[%s1814 + $0x38] sm:$0xff]
        %v1823 = vld [vmem:[%s1814 + $0x40] sm:$0xff]
        %v1824 = vld [vmem:[%s1814 + $0x48] sm:$0xff]
        %v1825 = vld [vmem:[%s1814 + $0x50] sm:$0xff]
        %v1826 = vld [vmem:[%s1814 + $0x58] sm:$0xff]
        %v1828 = vsel %vm1405, %v1770, 0
        %v1831 = vsel %vm1405, %v1771, 0
        %v1834 = vsel %vm1405, %v1772, 0
        %v1837 = vsel %vm1405, %v1773, 0
        %v1840 = vsel %vm1405, %v1774, 0
        %v1843 = vsel %vm1405, %v1775, 0
        %v1846 = vsel %vm1405, %v1776, 0
        %v1849 = vsel %vm1405, %v1777, 0
        %v1852 = vsel %vm1405, %v1778, 0
        %v1855 = vsel %vm1405, %v1779, 0
        %v1858 = vsel %vm1405, %v1780, 0
        %v1861 = vsel %vm1405, %v1781, 0
        %v1864 = vsel %vm1405, %v1782, 0
        %v1867 = vsel %vm1405, %v1783, 0
        %v1870 = vsel %vm1405, %v1784, 0
        %v1873 = vsel %vm1405, %v1785, 0
        %v1876 = vsel %vm1405, %v1786, 0
        %v1879 = vsel %vm1405, %v1787, 0
        %v1882 = vsel %vm1405, %v1788, 0
        %v1885 = vsel %vm1405, %v1789, 0
        %v1888 = vsel %vm1405, %v1790, 0
        %v1891 = vsel %vm1405, %v1791, 0
        %v1894 = vsel %vm1405, %v1792, 0
        %v1897 = vsel %vm1405, %v1793, 0
        %v1900 = vsel %vm1405, %v1794, 0
        %v1903 = vsel %vm1405, %v1795, 0
        %v1906 = vsel %vm1405, %v1796, 0
        %v1909 = vsel %vm1405, %v1797, 0
        %v1912 = vsel %vm1405, %v1798, 0
        %v1915 = vsel %vm1405, %v1799, 0
        %v1918 = vsel %vm1405, %v1812, 0
        %v1921 = vsel %vm1405, %v1813, 0
        %1923 = vmatprep.subr.mxu0 0.0
        %1924 = vmatpush1.msra.mxu0 0.0
        %1925 = vmatprep.subr.mxu0 0.0
        %1926 = vmatpush1.msra.mxu0 0.0
        %1927 = vmatprep.subr.mxu0 0.0
        %1928 = vmatpush1.msra.mxu0 0.0
        %1929 = vmatprep.subr.mxu0 0.0
        %1930 = vmatpush1.msra.mxu0 0.0
        %1931 = vmatprep.subr.mxu0 0.0
        %1932 = vmatpush1.msra.mxu0 %v1826
        %1933 = vmatprep.subr.mxu0 0.0
        %1934 = vmatpush1.msra.mxu0 %v1825
        %1935 = vmatprep.subr.mxu0 0.0
        %1936 = vmatpush1.msra.mxu0 %v1824
        %1937 = vmatprep.subr.mxu0 0.0
        %1938 = vmatpush1.msra.mxu0 %v1823
        %1939 = vmatprep.subr.mxu0 0.0
        %1940 = vmatpush1.msra.mxu0 %v1822
        %1941 = vmatprep.subr.mxu0 0.0
        %1942 = vmatpush1.msra.mxu0 %v1821
        %1943 = vmatprep.subr.mxu0 0.0
        %1944 = vmatpush1.msra.mxu0 %v1820
        %1945 = vmatprep.subr.mxu0 0.0
        %1946 = vmatpush1.msra.mxu0 %v1819
        %1947 = vmatprep.subr.mxu0 0.0
        %1948 = vmatpush1.msra.mxu0 %v1818
        %1949 = vmatprep.subr.mxu0 0.0
        %1950 = vmatpush1.msra.mxu0 %v1817
        %1951 = vmatprep.subr.mxu0 0.0
        %1952 = vmatpush1.msra.mxu0 %v1816
        %1953 = vmatprep.subr.mxu0 0.0
        %1954 = vmatpush1.msra.mxu0 %v1815
        %1955 = vmatprep.subr.mxu0 0.0
        %1956 = vmatpush2.msra.mxu0 0.0
        %1957 = vmatprep.subr.mxu0 0.0
        %1958 = vmatpush2.msra.mxu0 0.0
        %1959 = vmatprep.subr.mxu0 0.0
        %1960 = vmatpush2.msra.mxu0 0.0
        %1961 = vmatprep.subr.mxu0 0.0
        %1962 = vmatpush2.msra.mxu0 0.0
        %1963 = vmatprep.subr.mxu0 0.0
        %1964 = vmatpush2.msra.mxu0 0.0
        %1965 = vmatprep.subr.mxu0 0.0
        %1966 = vmatpush2.msra.mxu0 0.0
        %1967 = vmatprep.subr.mxu0 0.0
        %1968 = vmatpush2.msra.mxu0 0.0
        %1969 = vmatprep.subr.mxu0 0.0
        %1970 = vmatpush2.msra.mxu0 0.0
        %1971 = vmatprep.subr.mxu0 0.0
        %1972 = vmatpush2.msra.mxu0 0.0
        %1973 = vmatprep.subr.mxu0 0.0
        %1974 = vmatpush2.msra.mxu0 0.0
        %1975 = vmatprep.subr.mxu0 0.0
        %1976 = vmatpush2.msra.mxu0 0.0
        %1977 = vmatprep.subr.mxu0 0.0
        %1978 = vmatpush2.msra.mxu0 0.0
        %1979 = vmatprep.subr.mxu0 0.0
        %1980 = vmatpush2.msra.mxu0 0.0
        %1981 = vmatprep.subr.mxu0 0.0
        %1982 = vmatpush2.msra.mxu0 0.0
        %1983 = vmatprep.subr.mxu0 0.0
        %1984 = vmatpush2.msra.mxu0 0.0
        %1985 = vmatprep.subr.mxu0 0.0
        %1986 = vmatpush2.msra.mxu0 0.0
        %1987 = vmatprep.mubr.f32.mxu0 0.0
        %1988 = vmatmul.mubr.f32.gmra.mxu0 %v1828
        %v1989 = vpop.f32.mrf.mxu0
        %v1990 = vadd.f32 0.0, %v1989
        %v1991 = vpop.f32.mrf.mxu0
        %1992 = vmatprep.mubr.f32.mxu0 0.0
        %1993 = vmatmul.mubr.f32.gmra.mxu0 %v1831
        %v1994 = vpop.f32.mrf.mxu0
        %v1995 = vadd.f32 0.0, %v1994
        %v1996 = vpop.f32.mrf.mxu0
        %1997 = vmatprep.mubr.f32.mxu0 0.0
        %1998 = vmatmul.mubr.f32.gmra.mxu0 %v1834
        %v1999 = vpop.f32.mrf.mxu0
        %v2000 = vadd.f32 0.0, %v1999
        %v2001 = vpop.f32.mrf.mxu0
        %2002 = vmatprep.mubr.f32.mxu0 0.0
        %2003 = vmatmul.mubr.f32.gmra.mxu0 %v1837
        %v2004 = vpop.f32.mrf.mxu0
        %v2005 = vadd.f32 0.0, %v2004
        %v2006 = vpop.f32.mrf.mxu0
        %2007 = vmatprep.mubr.f32.mxu0 0.0
        %2008 = vmatmul.mubr.f32.gmra.mxu0 %v1840
        %v2009 = vpop.f32.mrf.mxu0
        %v2010 = vadd.f32 0.0, %v2009
        %v2011 = vpop.f32.mrf.mxu0
        %2012 = vmatprep.mubr.f32.mxu0 0.0
        %2013 = vmatmul.mubr.f32.gmra.mxu0 %v1843
        %v2014 = vpop.f32.mrf.mxu0
        %v2015 = vadd.f32 0.0, %v2014
        %v2016 = vpop.f32.mrf.mxu0
        %2017 = vmatprep.mubr.f32.mxu0 0.0
        %2018 = vmatmul.mubr.f32.gmra.mxu0 %v1846
        %v2019 = vpop.f32.mrf.mxu0
        %v2020 = vadd.f32 0.0, %v2019
        %v2021 = vpop.f32.mrf.mxu0
        %2022 = vmatprep.mubr.f32.mxu0 0.0
        %2023 = vmatmul.mubr.f32.gmra.mxu0 %v1849
        %v2024 = vpop.f32.mrf.mxu0
        %v2025 = vadd.f32 0.0, %v2024
        %v2026 = vpop.f32.mrf.mxu0
        %2027 = vmatprep.mubr.f32.mxu0 0.0
        %2028 = vmatmul.mubr.f32.gmra.mxu0 %v1852
        %v2029 = vpop.f32.mrf.mxu0
        %v2030 = vadd.f32 0.0, %v2029
        %v2031 = vpop.f32.mrf.mxu0
        %2032 = vmatprep.mubr.f32.mxu0 0.0
        %2033 = vmatmul.mubr.f32.gmra.mxu0 %v1855
        %v2034 = vpop.f32.mrf.mxu0
        %v2035 = vadd.f32 0.0, %v2034
        %v2036 = vpop.f32.mrf.mxu0
        %2037 = vmatprep.mubr.f32.mxu0 0.0
        %2038 = vmatmul.mubr.f32.gmra.mxu0 %v1858
        %v2039 = vpop.f32.mrf.mxu0
        %v2040 = vadd.f32 0.0, %v2039
        %v2041 = vpop.f32.mrf.mxu0
        %2042 = vmatprep.mubr.f32.mxu0 0.0
        %2043 = vmatmul.mubr.f32.gmra.mxu0 %v1861
        %v2044 = vpop.f32.mrf.mxu0
        %v2045 = vadd.f32 0.0, %v2044
        %v2046 = vpop.f32.mrf.mxu0
        %2047 = vmatprep.mubr.f32.mxu0 0.0
        %2048 = vmatmul.mubr.f32.gmra.mxu0 %v1864
        %v2049 = vpop.f32.mrf.mxu0
        %v2050 = vadd.f32 0.0, %v2049
        %v2051 = vpop.f32.mrf.mxu0
        %2052 = vmatprep.mubr.f32.mxu0 0.0
        %2053 = vmatmul.mubr.f32.gmra.mxu0 %v1867
        %v2054 = vpop.f32.mrf.mxu0
        %v2055 = vadd.f32 0.0, %v2054
        %v2056 = vpop.f32.mrf.mxu0
        %2057 = vmatprep.mubr.f32.mxu0 0.0
        %2058 = vmatmul.mubr.f32.gmra.mxu0 %v1870
        %v2059 = vpop.f32.mrf.mxu0
        %v2060 = vadd.f32 0.0, %v2059
        %v2061 = vpop.f32.mrf.mxu0
        %2062 = vmatprep.mubr.f32.mxu0 0.0
        %2063 = vmatmul.mubr.f32.gmra.mxu0 %v1873
        %v2064 = vpop.f32.mrf.mxu0
        %v2065 = vadd.f32 0.0, %v2064
        %v2066 = vpop.f32.mrf.mxu0
        %2067 = vmatprep.mubr.f32.mxu0 0.0
        %2068 = vmatmul.mubr.f32.gmra.mxu0 %v1876
        %v2069 = vpop.f32.mrf.mxu0
        %v2070 = vadd.f32 0.0, %v2069
        %v2071 = vpop.f32.mrf.mxu0
        %2072 = vmatprep.mubr.f32.mxu0 0.0
        %2073 = vmatmul.mubr.f32.gmra.mxu0 %v1879
        %v2074 = vpop.f32.mrf.mxu0
        %v2075 = vadd.f32 0.0, %v2074
        %v2076 = vpop.f32.mrf.mxu0
        %2077 = vmatprep.mubr.f32.mxu0 0.0
        %2078 = vmatmul.mubr.f32.gmra.mxu0 %v1882
        %v2079 = vpop.f32.mrf.mxu0
        %v2080 = vadd.f32 0.0, %v2079
        %v2081 = vpop.f32.mrf.mxu0
        %2082 = vmatprep.mubr.f32.mxu0 0.0
        %2083 = vmatmul.mubr.f32.gmra.mxu0 %v1885
        %v2084 = vpop.f32.mrf.mxu0
        %v2085 = vadd.f32 0.0, %v2084
        %v2086 = vpop.f32.mrf.mxu0
        %2087 = vmatprep.mubr.f32.mxu0 0.0
        %2088 = vmatmul.mubr.f32.gmra.mxu0 %v1888
        %v2089 = vpop.f32.mrf.mxu0
        %v2090 = vadd.f32 0.0, %v2089
        %v2091 = vpop.f32.mrf.mxu0
        %2092 = vmatprep.mubr.f32.mxu0 0.0
        %2093 = vmatmul.mubr.f32.gmra.mxu0 %v1891
        %v2094 = vpop.f32.mrf.mxu0
        %v2095 = vadd.f32 0.0, %v2094
        %v2096 = vpop.f32.mrf.mxu0
        %2097 = vmatprep.mubr.f32.mxu0 0.0
        %2098 = vmatmul.mubr.f32.gmra.mxu0 %v1894
        %v2099 = vpop.f32.mrf.mxu0
        %v2100 = vadd.f32 0.0, %v2099
        %v2101 = vpop.f32.mrf.mxu0
        %2102 = vmatprep.mubr.f32.mxu0 0.0
        %2103 = vmatmul.mubr.f32.gmra.mxu0 %v1897
        %v2104 = vpop.f32.mrf.mxu0
        %v2105 = vadd.f32 0.0, %v2104
        %v2106 = vpop.f32.mrf.mxu0
        %2107 = vmatprep.mubr.f32.mxu0 0.0
        %2108 = vmatmul.mubr.f32.gmra.mxu0 %v1900
        %v2109 = vpop.f32.mrf.mxu0
        %v2110 = vadd.f32 0.0, %v2109
        %v2111 = vpop.f32.mrf.mxu0
        %2112 = vmatprep.mubr.f32.mxu0 0.0
        %2113 = vmatmul.mubr.f32.gmra.mxu0 %v1903
        %v2114 = vpop.f32.mrf.mxu0
        %v2115 = vadd.f32 0.0, %v2114
        %v2116 = vpop.f32.mrf.mxu0
        %2117 = vmatprep.mubr.f32.mxu0 0.0
        %2118 = vmatmul.mubr.f32.gmra.mxu0 %v1906
        %v2119 = vpop.f32.mrf.mxu0
        %v2120 = vadd.f32 0.0, %v2119
        %v2121 = vpop.f32.mrf.mxu0
        %2122 = vmatprep.mubr.f32.mxu0 0.0
        %2123 = vmatmul.mubr.f32.gmra.mxu0 %v1909
        %v2124 = vpop.f32.mrf.mxu0
        %v2125 = vadd.f32 0.0, %v2124
        %v2126 = vpop.f32.mrf.mxu0
        %2127 = vmatprep.mubr.f32.mxu0 0.0
        %2128 = vmatmul.mubr.f32.gmra.mxu0 %v1912
        %v2129 = vpop.f32.mrf.mxu0
        %v2130 = vadd.f32 0.0, %v2129
        %v2131 = vpop.f32.mrf.mxu0
        %2132 = vmatprep.mubr.f32.mxu0 0.0
        %2133 = vmatmul.mubr.f32.gmra.mxu0 %v1915
        %v2134 = vpop.f32.mrf.mxu0
        %v2135 = vadd.f32 0.0, %v2134
        %v2136 = vpop.f32.mrf.mxu0
        %2137 = vmatprep.mubr.f32.mxu0 0.0
        %2138 = vmatmul.mubr.f32.gmra.mxu0 %v1918
        %v2139 = vpop.f32.mrf.mxu0
        %v2140 = vadd.f32 0.0, %v2139
        %v2141 = vpop.f32.mrf.mxu0
        %2142 = vmatprep.mubr.f32.mxu0 0.0
        %2143 = vmatmul.mubr.f32.gmra.mxu0 %v1921
        %v2144 = vpop.f32.mrf.mxu0
        %v2145 = vadd.f32 0.0, %v2144
        %v2146 = vpop.f32.mrf.mxu0
        %2147 = vdwg.mxu0
        %v2149 = vsel %vm1405, %v1768, 0
        %v2152 = vsel %vm1405, %v1769, 0
        %2154 = vmatprep.subr.mxu0 0.0
        %2155 = vmatpush1.msra.mxu0 0.0
        %2156 = vmatprep.subr.mxu0 0.0
        %2157 = vmatpush1.msra.mxu0 0.0
        %2158 = vmatprep.subr.mxu0 0.0
        %2159 = vmatpush1.msra.mxu0 0.0
        %2160 = vmatprep.subr.mxu0 0.0
        %2161 = vmatpush1.msra.mxu0 0.0
        %2162 = vmatprep.subr.mxu0 0.0
        %2163 = vmatpush1.msra.mxu0 %v1811
        %2164 = vmatprep.subr.mxu0 0.0
        %2165 = vmatpush1.msra.mxu0 %v1810
        %2166 = vmatprep.subr.mxu0 0.0
        %2167 = vmatpush1.msra.mxu0 %v1809
        %2168 = vmatprep.subr.mxu0 0.0
        %2169 = vmatpush1.msra.mxu0 %v1808
        %2170 = vmatprep.subr.mxu0 0.0
        %2171 = vmatpush1.msra.mxu0 %v1807
        %2172 = vmatprep.subr.mxu0 0.0
        %2173 = vmatpush1.msra.mxu0 %v1806
        %2174 = vmatprep.subr.mxu0 0.0
        %2175 = vmatpush1.msra.mxu0 %v1805
        %2176 = vmatprep.subr.mxu0 0.0
        %2177 = vmatpush1.msra.mxu0 %v1804
        %2178 = vmatprep.subr.mxu0 0.0
        %2179 = vmatpush1.msra.mxu0 %v1803
        %2180 = vmatprep.subr.mxu0 0.0
        %2181 = vmatpush1.msra.mxu0 %v1802
        %2182 = vmatprep.subr.mxu0 0.0
        %2183 = vmatpush1.msra.mxu0 %v1801
        %2184 = vmatprep.subr.mxu0 0.0
        %2185 = vmatpush1.msra.mxu0 %v1800
        %2186 = vmatprep.subr.mxu0 0.0
        %2187 = vmatpush2.msra.mxu0 0.0
        %2188 = vmatprep.subr.mxu0 0.0
        %2189 = vmatpush2.msra.mxu0 0.0
        %2190 = vmatprep.subr.mxu0 0.0
        %2191 = vmatpush2.msra.mxu0 0.0
        %2192 = vmatprep.subr.mxu0 0.0
        %2193 = vmatpush2.msra.mxu0 0.0
        %2194 = vmatprep.subr.mxu0 0.0
        %2195 = vmatpush2.msra.mxu0 0.0
        %2196 = vmatprep.subr.mxu0 0.0
        %2197 = vmatpush2.msra.mxu0 0.0
        %2198 = vmatprep.subr.mxu0 0.0
        %2199 = vmatpush2.msra.mxu0 0.0
        %2200 = vmatprep.subr.mxu0 0.0
        %2201 = vmatpush2.msra.mxu0 0.0
        %2202 = vmatprep.subr.mxu0 0.0
        %2203 = vmatpush2.msra.mxu0 0.0
        %2204 = vmatprep.subr.mxu0 0.0
        %2205 = vmatpush2.msra.mxu0 0.0
        %2206 = vmatprep.subr.mxu0 0.0
        %2207 = vmatpush2.msra.mxu0 0.0
        %2208 = vmatprep.subr.mxu0 0.0
        %2209 = vmatpush2.msra.mxu0 0.0
        %2210 = vmatprep.subr.mxu0 0.0
        %2211 = vmatpush2.msra.mxu0 0.0
        %2212 = vmatprep.subr.mxu0 0.0
        %2213 = vmatpush2.msra.mxu0 0.0
        %2214 = vmatprep.subr.mxu0 0.0
        %2215 = vmatpush2.msra.mxu0 0.0
        %2216 = vmatprep.subr.mxu0 0.0
        %2217 = vmatpush2.msra.mxu0 0.0
        %2218 = vmatprep.mubr.f32.mxu0 0.0
        %2219 = vmatmul.mubr.f32.gmra.mxu0 %v2149
        %v2220 = vpop.f32.mrf.mxu0
        %v2221 = vadd.f32 %v1990, %v2220
        %v2222 = vpop.f32.mrf.mxu0
        %2223 = vmatprep.mubr.f32.mxu0 0.0
        %2224 = vmatmul.mubr.f32.gmra.mxu0 %v2152
        %v2225 = vpop.f32.mrf.mxu0
        %v2226 = vadd.f32 %v1995, %v2225
        %v2227 = vpop.f32.mrf.mxu0
        %2228 = vmatprep.mubr.f32.mxu0 0.0
        %2229 = vmatmul.mubr.f32.gmra.mxu0 %v1828
        %v2230 = vpop.f32.mrf.mxu0
        %v2231 = vadd.f32 %v2000, %v2230
        %v2232 = vpop.f32.mrf.mxu0
        %2233 = vmatprep.mubr.f32.mxu0 0.0
        %2234 = vmatmul.mubr.f32.gmra.mxu0 %v1831
        %v2235 = vpop.f32.mrf.mxu0
        %v2236 = vadd.f32 %v2005, %v2235
        %v2237 = vpop.f32.mrf.mxu0
        %2238 = vmatprep.mubr.f32.mxu0 0.0
        %2239 = vmatmul.mubr.f32.gmra.mxu0 %v1834
        %v2240 = vpop.f32.mrf.mxu0
        %v2241 = vadd.f32 %v2010, %v2240
        %v2242 = vpop.f32.mrf.mxu0
        %2243 = vmatprep.mubr.f32.mxu0 0.0
        %2244 = vmatmul.mubr.f32.gmra.mxu0 %v1837
        %v2245 = vpop.f32.mrf.mxu0
        %v2246 = vadd.f32 %v2015, %v2245
        %v2247 = vpop.f32.mrf.mxu0
        %2248 = vmatprep.mubr.f32.mxu0 0.0
        %2249 = vmatmul.mubr.f32.gmra.mxu0 %v1840
        %v2250 = vpop.f32.mrf.mxu0
        %v2251 = vadd.f32 %v2020, %v2250
        %v2252 = vpop.f32.mrf.mxu0
        %2253 = vmatprep.mubr.f32.mxu0 0.0
        %2254 = vmatmul.mubr.f32.gmra.mxu0 %v1843
        %v2255 = vpop.f32.mrf.mxu0
        %v2256 = vadd.f32 %v2025, %v2255
        %v2257 = vpop.f32.mrf.mxu0
        %2258 = vmatprep.mubr.f32.mxu0 0.0
        %2259 = vmatmul.mubr.f32.gmra.mxu0 %v1846
        %v2260 = vpop.f32.mrf.mxu0
        %v2261 = vadd.f32 %v2030, %v2260
        %v2262 = vpop.f32.mrf.mxu0
        %2263 = vmatprep.mubr.f32.mxu0 0.0
        %2264 = vmatmul.mubr.f32.gmra.mxu0 %v1849
        %v2265 = vpop.f32.mrf.mxu0
        %v2266 = vadd.f32 %v2035, %v2265
        %v2267 = vpop.f32.mrf.mxu0
        %2268 = vmatprep.mubr.f32.mxu0 0.0
        %2269 = vmatmul.mubr.f32.gmra.mxu0 %v1852
        %v2270 = vpop.f32.mrf.mxu0
        %v2271 = vadd.f32 %v2040, %v2270
        %v2272 = vpop.f32.mrf.mxu0
        %2273 = vmatprep.mubr.f32.mxu0 0.0
        %2274 = vmatmul.mubr.f32.gmra.mxu0 %v1855
        %v2275 = vpop.f32.mrf.mxu0
        %v2276 = vadd.f32 %v2045, %v2275
        %v2277 = vpop.f32.mrf.mxu0
        %2278 = vmatprep.mubr.f32.mxu0 0.0
        %2279 = vmatmul.mubr.f32.gmra.mxu0 %v1858
        %v2280 = vpop.f32.mrf.mxu0
        %v2281 = vadd.f32 %v2050, %v2280
        %v2282 = vpop.f32.mrf.mxu0
        %2283 = vmatprep.mubr.f32.mxu0 0.0
        %2284 = vmatmul.mubr.f32.gmra.mxu0 %v1861
        %v2285 = vpop.f32.mrf.mxu0
        %v2286 = vadd.f32 %v2055, %v2285
        %v2287 = vpop.f32.mrf.mxu0
        %2288 = vmatprep.mubr.f32.mxu0 0.0
        %2289 = vmatmul.mubr.f32.gmra.mxu0 %v1864
        %v2290 = vpop.f32.mrf.mxu0
        %v2291 = vadd.f32 %v2060, %v2290
        %v2292 = vpop.f32.mrf.mxu0
        %2293 = vmatprep.mubr.f32.mxu0 0.0
        %2294 = vmatmul.mubr.f32.gmra.mxu0 %v1867
        %v2295 = vpop.f32.mrf.mxu0
        %v2296 = vadd.f32 %v2065, %v2295
        %v2297 = vpop.f32.mrf.mxu0
        %2298 = vmatprep.mubr.f32.mxu0 0.0
        %2299 = vmatmul.mubr.f32.gmra.mxu0 %v1870
        %v2300 = vpop.f32.mrf.mxu0
        %v2301 = vadd.f32 %v2070, %v2300
        %v2302 = vpop.f32.mrf.mxu0
        %2303 = vmatprep.mubr.f32.mxu0 0.0
        %2304 = vmatmul.mubr.f32.gmra.mxu0 %v1873
        %v2305 = vpop.f32.mrf.mxu0
        %v2306 = vadd.f32 %v2075, %v2305
        %v2307 = vpop.f32.mrf.mxu0
        %2308 = vmatprep.mubr.f32.mxu0 0.0
        %2309 = vmatmul.mubr.f32.gmra.mxu0 %v1876
        %v2310 = vpop.f32.mrf.mxu0
        %v2311 = vadd.f32 %v2080, %v2310
        %v2312 = vpop.f32.mrf.mxu0
        %2313 = vmatprep.mubr.f32.mxu0 0.0
        %2314 = vmatmul.mubr.f32.gmra.mxu0 %v1879
        %v2315 = vpop.f32.mrf.mxu0
        %v2316 = vadd.f32 %v2085, %v2315
        %v2317 = vpop.f32.mrf.mxu0
        %2318 = vmatprep.mubr.f32.mxu0 0.0
        %2319 = vmatmul.mubr.f32.gmra.mxu0 %v1882
        %v2320 = vpop.f32.mrf.mxu0
        %v2321 = vadd.f32 %v2090, %v2320
        %v2322 = vpop.f32.mrf.mxu0
        %2323 = vmatprep.mubr.f32.mxu0 0.0
        %2324 = vmatmul.mubr.f32.gmra.mxu0 %v1885
        %v2325 = vpop.f32.mrf.mxu0
        %v2326 = vadd.f32 %v2095, %v2325
        %v2327 = vpop.f32.mrf.mxu0
        %2328 = vmatprep.mubr.f32.mxu0 0.0
        %2329 = vmatmul.mubr.f32.gmra.mxu0 %v1888
        %v2330 = vpop.f32.mrf.mxu0
        %v2331 = vadd.f32 %v2100, %v2330
        %v2332 = vpop.f32.mrf.mxu0
        %2333 = vmatprep.mubr.f32.mxu0 0.0
        %2334 = vmatmul.mubr.f32.gmra.mxu0 %v1891
        %v2335 = vpop.f32.mrf.mxu0
        %v2336 = vadd.f32 %v2105, %v2335
        %v2337 = vpop.f32.mrf.mxu0
        %2338 = vmatprep.mubr.f32.mxu0 0.0
        %2339 = vmatmul.mubr.f32.gmra.mxu0 %v1894
        %v2340 = vpop.f32.mrf.mxu0
        %v2341 = vadd.f32 %v2110, %v2340
        %v2342 = vpop.f32.mrf.mxu0
        %2343 = vmatprep.mubr.f32.mxu0 0.0
        %2344 = vmatmul.mubr.f32.gmra.mxu0 %v1897
        %v2345 = vpop.f32.mrf.mxu0
        %v2346 = vadd.f32 %v2115, %v2345
        %v2347 = vpop.f32.mrf.mxu0
        %2348 = vmatprep.mubr.f32.mxu0 0.0
        %2349 = vmatmul.mubr.f32.gmra.mxu0 %v1900
        %v2350 = vpop.f32.mrf.mxu0
        %v2351 = vadd.f32 %v2120, %v2350
        %v2352 = vpop.f32.mrf.mxu0
        %2353 = vmatprep.mubr.f32.mxu0 0.0
        %2354 = vmatmul.mubr.f32.gmra.mxu0 %v1903
        %v2355 = vpop.f32.mrf.mxu0
        %v2356 = vadd.f32 %v2125, %v2355
        %v2357 = vpop.f32.mrf.mxu0
        %2358 = vmatprep.mubr.f32.mxu0 0.0
        %2359 = vmatmul.mubr.f32.gmra.mxu0 %v1906
        %v2360 = vpop.f32.mrf.mxu0
        %v2361 = vadd.f32 %v2130, %v2360
        %v2362 = vpop.f32.mrf.mxu0
        %2363 = vmatprep.mubr.f32.mxu0 0.0
        %2364 = vmatmul.mubr.f32.gmra.mxu0 %v1909
        %v2365 = vpop.f32.mrf.mxu0
        %v2366 = vadd.f32 %v2135, %v2365
        %v2367 = vpop.f32.mrf.mxu0
        %2368 = vmatprep.mubr.f32.mxu0 0.0
        %2369 = vmatmul.mubr.f32.gmra.mxu0 %v1912
        %v2370 = vpop.f32.mrf.mxu0
        %v2371 = vadd.f32 %v2140, %v2370
        %v2372 = vpop.f32.mrf.mxu0
        %2373 = vmatprep.mubr.f32.mxu0 0.0
        %2374 = vmatmul.mubr.f32.gmra.mxu0 %v1915
        %v2375 = vpop.f32.mrf.mxu0
        %v2376 = vadd.f32 %v2145, %v2375
        %v2377 = vpop.f32.mrf.mxu0
        %2378 = vdwg.mxu0
        %v2379 = vld [vmem:[#allocation2 + $0x20] sm:$0xff]
        %v2380 = vld [vmem:[#allocation2 + $0x28] sm:$0xff]
        %v2381 = vld [vmem:[#allocation2 + $0x30] sm:$0xff]
        %v2382 = vld [vmem:[#allocation2 + $0x38] sm:$0xff]
        %v2383 = vld [vmem:[#allocation2 + $0x40] sm:$0xff]
        %v2384 = vld [vmem:[#allocation2 + $0x48] sm:$0xff]
        %v2385 = vld [vmem:[#allocation2 + $0x50] sm:$0xff]
        %v2386 = vld [vmem:[#allocation2 + $0x58] sm:$0xff]
        %v2387 = vld [vmem:[#allocation2 + $0x60] sm:$0xff]
        %v2388 = vld [vmem:[#allocation2 + $0x68] sm:$0xff]
        %v2389 = vld [vmem:[#allocation2 + $0x70] sm:$0xff]
        %v2390 = vld [vmem:[#allocation2 + $0x78] sm:$0xff]
        %v2391 = vld [vmem:[#allocation2 + $0x80] sm:$0xff]
        %v2392 = vld [vmem:[#allocation2 + $0x88] sm:$0xff]
        %v2393 = vld [vmem:[#allocation2 + $0x90] sm:$0xff]
        %v2394 = vld [vmem:[#allocation2 + $0x98] sm:$0xff]
        %v2395 = vld [vmem:[#allocation2 + $0xa0] sm:$0xff]
        %v2396 = vld [vmem:[#allocation2 + $0xa8] sm:$0xff]
        %v2397 = vld [vmem:[#allocation2 + $0xb0] sm:$0xff]
        %v2398 = vld [vmem:[#allocation2 + $0xb8] sm:$0xff]
        %v2399 = vld [vmem:[#allocation2 + $0xc0] sm:$0xff]
        %v2400 = vld [vmem:[#allocation2 + $0xc8] sm:$0xff]
        %v2401 = vld [vmem:[#allocation2 + $0xd0] sm:$0xff]
        %v2402 = vld [vmem:[#allocation2 + $0xd8] sm:$0xff]
        %v2403 = vld [vmem:[#allocation2 + $0xe0] sm:$0xff]
        %v2404 = vld [vmem:[#allocation2 + $0xe8] sm:$0xff]
        %v2405 = vld [vmem:[#allocation2 + $0xf0] sm:$0xff]
        %v2406 = vld [vmem:[#allocation2 + $0xf8] sm:$0xff]
        %v2407 = vld [vmem:[#allocation2 + $0x100] sm:$0xff]
        %v2408 = vld [vmem:[#allocation2 + $0x108] sm:$0xff]
        %v2409 = vld [vmem:[#allocation2 + $0x110] sm:$0xff]
        %v2410 = vld [vmem:[#allocation2 + $0x118] sm:$0xff]
        %s2411 = scalar_lea.vmem %s4, 192
        %v2412 = vld [vmem:[%s2411] sm:$0xff]
        %v2413 = vld [vmem:[%s2411 + $0x8] sm:$0xff]
        %v2414 = vld [vmem:[%s2411 + $0x10] sm:$0xff]
        %v2415 = vld [vmem:[%s2411 + $0x18] sm:$0xff]
        %v2416 = vld [vmem:[%s2411 + $0x20] sm:$0xff]
        %v2417 = vld [vmem:[%s2411 + $0x28] sm:$0xff]
        %v2418 = vld [vmem:[%s2411 + $0x30] sm:$0xff]
        %v2419 = vld [vmem:[%s2411 + $0x38] sm:$0xff]
        %v2420 = vld [vmem:[%s2411 + $0x40] sm:$0xff]
        %v2421 = vld [vmem:[%s2411 + $0x48] sm:$0xff]
        %v2422 = vld [vmem:[%s2411 + $0x50] sm:$0xff]
        %v2423 = vld [vmem:[%s2411 + $0x58] sm:$0xff]
        %v2425 = vsel %vm1405, %v2379, 0
        %v2428 = vsel %vm1405, %v2380, 0
        %v2431 = vsel %vm1405, %v2381, 0
        %v2434 = vsel %vm1405, %v2382, 0
        %v2437 = vsel %vm1405, %v2383, 0
        %v2440 = vsel %vm1405, %v2384, 0
        %v2443 = vsel %vm1405, %v2385, 0
        %v2446 = vsel %vm1405, %v2386, 0
        %v2449 = vsel %vm1405, %v2387, 0
        %v2452 = vsel %vm1405, %v2388, 0
        %v2455 = vsel %vm1405, %v2389, 0
        %v2458 = vsel %vm1405, %v2390, 0
        %v2461 = vsel %vm1405, %v2391, 0
        %v2464 = vsel %vm1405, %v2392, 0
        %v2467 = vsel %vm1405, %v2393, 0
        %v2470 = vsel %vm1405, %v2394, 0
        %v2473 = vsel %vm1405, %v2395, 0
        %v2476 = vsel %vm1405, %v2396, 0
        %v2479 = vsel %vm1405, %v2397, 0
        %v2482 = vsel %vm1405, %v2398, 0
        %v2485 = vsel %vm1405, %v2399, 0
        %v2488 = vsel %vm1405, %v2400, 0
        %v2491 = vsel %vm1405, %v2401, 0
        %v2494 = vsel %vm1405, %v2402, 0
        %v2497 = vsel %vm1405, %v2403, 0
        %v2500 = vsel %vm1405, %v2404, 0
        %v2503 = vsel %vm1405, %v2405, 0
        %v2506 = vsel %vm1405, %v2406, 0
        %v2509 = vsel %vm1405, %v2407, 0
        %v2512 = vsel %vm1405, %v2408, 0
        %v2515 = vsel %vm1405, %v2409, 0
        %v2518 = vsel %vm1405, %v2410, 0
        %2520 = vmatprep.subr.mxu0 0.0
        %2521 = vmatpush1.msra.mxu0 0.0
        %2522 = vmatprep.subr.mxu0 0.0
        %2523 = vmatpush1.msra.mxu0 0.0
        %2524 = vmatprep.subr.mxu0 0.0
        %2525 = vmatpush1.msra.mxu0 0.0
        %2526 = vmatprep.subr.mxu0 0.0
        %2527 = vmatpush1.msra.mxu0 0.0
        %2528 = vmatprep.subr.mxu0 0.0
        %2529 = vmatpush1.msra.mxu0 %v2423
        %2530 = vmatprep.subr.mxu0 0.0
        %2531 = vmatpush1.msra.mxu0 %v2422
        %2532 = vmatprep.subr.mxu0 0.0
        %2533 = vmatpush1.msra.mxu0 %v2421
        %2534 = vmatprep.subr.mxu0 0.0
        %2535 = vmatpush1.msra.mxu0 %v2420
        %2536 = vmatprep.subr.mxu0 0.0
        %2537 = vmatpush1.msra.mxu0 %v2419
        %2538 = vmatprep.subr.mxu0 0.0
        %2539 = vmatpush1.msra.mxu0 %v2418
        %2540 = vmatprep.subr.mxu0 0.0
        %2541 = vmatpush1.msra.mxu0 %v2417
        %2542 = vmatprep.subr.mxu0 0.0
        %2543 = vmatpush1.msra.mxu0 %v2416
        %2544 = vmatprep.subr.mxu0 0.0
        %2545 = vmatpush1.msra.mxu0 %v2415
        %2546 = vmatprep.subr.mxu0 0.0
        %2547 = vmatpush1.msra.mxu0 %v2414
        %2548 = vmatprep.subr.mxu0 0.0
        %2549 = vmatpush1.msra.mxu0 %v2413
        %2550 = vmatprep.subr.mxu0 0.0
        %2551 = vmatpush1.msra.mxu0 %v2412
        %2552 = vmatprep.subr.mxu0 0.0
        %2553 = vmatpush2.msra.mxu0 0.0
        %2554 = vmatprep.subr.mxu0 0.0
        %2555 = vmatpush2.msra.mxu0 0.0
        %2556 = vmatprep.subr.mxu0 0.0
        %2557 = vmatpush2.msra.mxu0 0.0
        %2558 = vmatprep.subr.mxu0 0.0
        %2559 = vmatpush2.msra.mxu0 0.0
        %2560 = vmatprep.subr.mxu0 0.0
        %2561 = vmatpush2.msra.mxu0 0.0
        %2562 = vmatprep.subr.mxu0 0.0
        %2563 = vmatpush2.msra.mxu0 0.0
        %2564 = vmatprep.subr.mxu0 0.0
        %2565 = vmatpush2.msra.mxu0 0.0
        %2566 = vmatprep.subr.mxu0 0.0
        %2567 = vmatpush2.msra.mxu0 0.0
        %2568 = vmatprep.subr.mxu0 0.0
        %2569 = vmatpush2.msra.mxu0 0.0
        %2570 = vmatprep.subr.mxu0 0.0
        %2571 = vmatpush2.msra.mxu0 0.0
        %2572 = vmatprep.subr.mxu0 0.0
        %2573 = vmatpush2.msra.mxu0 0.0
        %2574 = vmatprep.subr.mxu0 0.0
        %2575 = vmatpush2.msra.mxu0 0.0
        %2576 = vmatprep.subr.mxu0 0.0
        %2577 = vmatpush2.msra.mxu0 0.0
        %2578 = vmatprep.subr.mxu0 0.0
        %2579 = vmatpush2.msra.mxu0 0.0
        %2580 = vmatprep.subr.mxu0 0.0
        %2581 = vmatpush2.msra.mxu0 0.0
        %2582 = vmatprep.subr.mxu0 0.0
        %2583 = vmatpush2.msra.mxu0 0.0
        %2584 = vmatprep.mubr.f32.mxu0 0.0
        %2585 = vmatmul.mubr.f32.gmra.mxu0 %v2425
        %v2586 = vpop.f32.mrf.mxu0
        %v2587 = vadd.f32 0.0, %v2586
        %v2588 = vpop.f32.mrf.mxu0
        %2589 = vmatprep.mubr.f32.mxu0 0.0
        %2590 = vmatmul.mubr.f32.gmra.mxu0 %v2428
        %v2591 = vpop.f32.mrf.mxu0
        %v2592 = vadd.f32 0.0, %v2591
        %v2593 = vpop.f32.mrf.mxu0
        %2594 = vmatprep.mubr.f32.mxu0 0.0
        %2595 = vmatmul.mubr.f32.gmra.mxu0 %v2431
        %v2596 = vpop.f32.mrf.mxu0
        %v2597 = vadd.f32 0.0, %v2596
        %v2598 = vpop.f32.mrf.mxu0
        %2599 = vmatprep.mubr.f32.mxu0 0.0
        %2600 = vmatmul.mubr.f32.gmra.mxu0 %v2434
        %v2601 = vpop.f32.mrf.mxu0
        %v2602 = vadd.f32 0.0, %v2601
        %v2603 = vpop.f32.mrf.mxu0
        %2604 = vmatprep.mubr.f32.mxu0 0.0
        %2605 = vmatmul.mubr.f32.gmra.mxu0 %v2437
        %v2606 = vpop.f32.mrf.mxu0
        %v2607 = vadd.f32 0.0, %v2606
        %v2608 = vpop.f32.mrf.mxu0
        %2609 = vmatprep.mubr.f32.mxu0 0.0
        %2610 = vmatmul.mubr.f32.gmra.mxu0 %v2440
        %v2611 = vpop.f32.mrf.mxu0
        %v2612 = vadd.f32 0.0, %v2611
        %v2613 = vpop.f32.mrf.mxu0
        %2614 = vmatprep.mubr.f32.mxu0 0.0
        %2615 = vmatmul.mubr.f32.gmra.mxu0 %v2443
        %v2616 = vpop.f32.mrf.mxu0
        %v2617 = vadd.f32 0.0, %v2616
        %v2618 = vpop.f32.mrf.mxu0
        %2619 = vmatprep.mubr.f32.mxu0 0.0
        %2620 = vmatmul.mubr.f32.gmra.mxu0 %v2446
        %v2621 = vpop.f32.mrf.mxu0
        %v2622 = vadd.f32 0.0, %v2621
        %v2623 = vpop.f32.mrf.mxu0
        %2624 = vmatprep.mubr.f32.mxu0 0.0
        %2625 = vmatmul.mubr.f32.gmra.mxu0 %v2449
        %v2626 = vpop.f32.mrf.mxu0
        %v2627 = vadd.f32 0.0, %v2626
        %v2628 = vpop.f32.mrf.mxu0
        %2629 = vmatprep.mubr.f32.mxu0 0.0
        %2630 = vmatmul.mubr.f32.gmra.mxu0 %v2452
        %v2631 = vpop.f32.mrf.mxu0
        %v2632 = vadd.f32 0.0, %v2631
        %v2633 = vpop.f32.mrf.mxu0
        %2634 = vmatprep.mubr.f32.mxu0 0.0
        %2635 = vmatmul.mubr.f32.gmra.mxu0 %v2455
        %v2636 = vpop.f32.mrf.mxu0
        %v2637 = vadd.f32 0.0, %v2636
        %v2638 = vpop.f32.mrf.mxu0
        %2639 = vmatprep.mubr.f32.mxu0 0.0
        %2640 = vmatmul.mubr.f32.gmra.mxu0 %v2458
        %v2641 = vpop.f32.mrf.mxu0
        %v2642 = vadd.f32 0.0, %v2641
        %v2643 = vpop.f32.mrf.mxu0
        %2644 = vmatprep.mubr.f32.mxu0 0.0
        %2645 = vmatmul.mubr.f32.gmra.mxu0 %v2461
        %v2646 = vpop.f32.mrf.mxu0
        %v2647 = vadd.f32 0.0, %v2646
        %v2648 = vpop.f32.mrf.mxu0
        %2649 = vmatprep.mubr.f32.mxu0 0.0
        %2650 = vmatmul.mubr.f32.gmra.mxu0 %v2464
        %v2651 = vpop.f32.mrf.mxu0
        %v2652 = vadd.f32 0.0, %v2651
        %v2653 = vpop.f32.mrf.mxu0
        %2654 = vmatprep.mubr.f32.mxu0 0.0
        %2655 = vmatmul.mubr.f32.gmra.mxu0 %v2467
        %v2656 = vpop.f32.mrf.mxu0
        %v2657 = vadd.f32 0.0, %v2656
        %v2658 = vpop.f32.mrf.mxu0
        %2659 = vmatprep.mubr.f32.mxu0 0.0
        %2660 = vmatmul.mubr.f32.gmra.mxu0 %v2470
        %v2661 = vpop.f32.mrf.mxu0
        %v2662 = vadd.f32 0.0, %v2661
        %v2663 = vpop.f32.mrf.mxu0
        %2664 = vmatprep.mubr.f32.mxu0 0.0
        %2665 = vmatmul.mubr.f32.gmra.mxu0 %v2473
        %v2666 = vpop.f32.mrf.mxu0
        %v2667 = vadd.f32 0.0, %v2666
        %v2668 = vpop.f32.mrf.mxu0
        %2669 = vmatprep.mubr.f32.mxu0 0.0
        %2670 = vmatmul.mubr.f32.gmra.mxu0 %v2476
        %v2671 = vpop.f32.mrf.mxu0
        %v2672 = vadd.f32 0.0, %v2671
        %v2673 = vpop.f32.mrf.mxu0
        %2674 = vmatprep.mubr.f32.mxu0 0.0
        %2675 = vmatmul.mubr.f32.gmra.mxu0 %v2479
        %v2676 = vpop.f32.mrf.mxu0
        %v2677 = vadd.f32 0.0, %v2676
        %v2678 = vpop.f32.mrf.mxu0
        %2679 = vmatprep.mubr.f32.mxu0 0.0
        %2680 = vmatmul.mubr.f32.gmra.mxu0 %v2482
        %v2681 = vpop.f32.mrf.mxu0
        %v2682 = vadd.f32 0.0, %v2681
        %v2683 = vpop.f32.mrf.mxu0
        %2684 = vmatprep.mubr.f32.mxu0 0.0
        %2685 = vmatmul.mubr.f32.gmra.mxu0 %v2485
        %v2686 = vpop.f32.mrf.mxu0
        %v2687 = vadd.f32 0.0, %v2686
        %v2688 = vpop.f32.mrf.mxu0
        %2689 = vmatprep.mubr.f32.mxu0 0.0
        %2690 = vmatmul.mubr.f32.gmra.mxu0 %v2488
        %v2691 = vpop.f32.mrf.mxu0
        %v2692 = vadd.f32 0.0, %v2691
        %v2693 = vpop.f32.mrf.mxu0
        %2694 = vmatprep.mubr.f32.mxu0 0.0
        %2695 = vmatmul.mubr.f32.gmra.mxu0 %v2491
        %v2696 = vpop.f32.mrf.mxu0
        %v2697 = vadd.f32 0.0, %v2696
        %v2698 = vpop.f32.mrf.mxu0
        %2699 = vmatprep.mubr.f32.mxu0 0.0
        %2700 = vmatmul.mubr.f32.gmra.mxu0 %v2494
        %v2701 = vpop.f32.mrf.mxu0
        %v2702 = vadd.f32 0.0, %v2701
        %v2703 = vpop.f32.mrf.mxu0
        %2704 = vmatprep.mubr.f32.mxu0 0.0
        %2705 = vmatmul.mubr.f32.gmra.mxu0 %v2497
        %v2706 = vpop.f32.mrf.mxu0
        %v2707 = vadd.f32 0.0, %v2706
        %v2708 = vpop.f32.mrf.mxu0
        %2709 = vmatprep.mubr.f32.mxu0 0.0
        %2710 = vmatmul.mubr.f32.gmra.mxu0 %v2500
        %v2711 = vpop.f32.mrf.mxu0
        %v2712 = vadd.f32 0.0, %v2711
        %v2713 = vpop.f32.mrf.mxu0
        %2714 = vmatprep.mubr.f32.mxu0 0.0
        %2715 = vmatmul.mubr.f32.gmra.mxu0 %v2503
        %v2716 = vpop.f32.mrf.mxu0
        %v2717 = vadd.f32 0.0, %v2716
        %v2718 = vpop.f32.mrf.mxu0
        %2719 = vmatprep.mubr.f32.mxu0 0.0
        %2720 = vmatmul.mubr.f32.gmra.mxu0 %v2506
        %v2721 = vpop.f32.mrf.mxu0
        %v2722 = vadd.f32 0.0, %v2721
        %v2723 = vpop.f32.mrf.mxu0
        %2724 = vmatprep.mubr.f32.mxu0 0.0
        %2725 = vmatmul.mubr.f32.gmra.mxu0 %v2509
        %v2726 = vpop.f32.mrf.mxu0
        %v2727 = vadd.f32 0.0, %v2726
        %v2728 = vpop.f32.mrf.mxu0
        %2729 = vmatprep.mubr.f32.mxu0 0.0
        %2730 = vmatmul.mubr.f32.gmra.mxu0 %v2512
        %v2731 = vpop.f32.mrf.mxu0
        %v2732 = vadd.f32 0.0, %v2731
        %v2733 = vpop.f32.mrf.mxu0
        %2734 = vmatprep.mubr.f32.mxu0 0.0
        %2735 = vmatmul.mubr.f32.gmra.mxu0 %v2515
        %v2736 = vpop.f32.mrf.mxu0
        %v2737 = vadd.f32 0.0, %v2736
        %v2738 = vpop.f32.mrf.mxu0
        %2739 = vmatprep.mubr.f32.mxu0 0.0
        %2740 = vmatmul.mubr.f32.gmra.mxu0 %v2518
        %v2741 = vpop.f32.mrf.mxu0
        %v2742 = vadd.f32 0.0, %v2741
        %v2743 = vpop.f32.mrf.mxu0
        %2744 = vdwg.mxu0
        %v2745 = vadd.f32 %v2221, %v2587
        %v2746 = vadd.f32 %v2226, %v2592
        %v2747 = vadd.f32 %v2231, %v2597
        %v2748 = vadd.f32 %v2236, %v2602
        %v2749 = vadd.f32 %v2241, %v2607
        %v2750 = vadd.f32 %v2246, %v2612
        %v2751 = vadd.f32 %v2251, %v2617
        %v2752 = vadd.f32 %v2256, %v2622
        %v2753 = vadd.f32 %v2261, %v2627
        %v2754 = vadd.f32 %v2266, %v2632
        %v2755 = vadd.f32 %v2271, %v2637
        %v2756 = vadd.f32 %v2276, %v2642
        %v2757 = vadd.f32 %v2281, %v2647
        %v2758 = vadd.f32 %v2286, %v2652
        %v2759 = vadd.f32 %v2291, %v2657
        %v2760 = vadd.f32 %v2296, %v2662
        %v2761 = vadd.f32 %v2301, %v2667
        %v2762 = vadd.f32 %v2306, %v2672
        %v2763 = vadd.f32 %v2311, %v2677
        %v2764 = vadd.f32 %v2316, %v2682
        %v2765 = vadd.f32 %v2321, %v2687
        %v2766 = vadd.f32 %v2326, %v2692
        %v2767 = vadd.f32 %v2331, %v2697
        %v2768 = vadd.f32 %v2336, %v2702
        %v2769 = vadd.f32 %v2341, %v2707
        %v2770 = vadd.f32 %v2346, %v2712
        %v2771 = vadd.f32 %v2351, %v2717
        %v2772 = vadd.f32 %v2356, %v2722
        %v2773 = vadd.f32 %v2361, %v2727
        %v2774 = vadd.f32 %v2366, %v2732
        %v2775 = vadd.f32 %v2371, %v2737
        %v2776 = vadd.f32 %v2376, %v2742
        %v2777 = vld [vmem:[%s5] sm:$0x1]
        %v2779 = vlaneseq
        %v2780 = vshrl.u32 %v2779, 7
        %v2781 = vsub.s32 0, %v2780
        %v2782 = vrot.slane %v2777, %v2781
        %v2784 = vmul.f32 %v2745, %v2782
        %v2785 = vmul.f32 %v2746, %v2782
        %v2786 = vmul.f32 %v2747, %v2782
        %v2787 = vmul.f32 %v2748, %v2782
        %v2788 = vmul.f32 %v2749, %v2782
        %v2789 = vmul.f32 %v2750, %v2782
        %v2790 = vmul.f32 %v2751, %v2782
        %v2791 = vmul.f32 %v2752, %v2782
        %v2792 = vmul.f32 %v2753, %v2782
        %v2793 = vmul.f32 %v2754, %v2782
        %v2794 = vmul.f32 %v2755, %v2782
        %v2795 = vmul.f32 %v2756, %v2782
        %v2796 = vmul.f32 %v2757, %v2782
        %v2797 = vmul.f32 %v2758, %v2782
        %v2798 = vmul.f32 %v2759, %v2782
        %v2799 = vmul.f32 %v2760, %v2782
        %v2800 = vmul.f32 %v2761, %v2782
        %v2801 = vmul.f32 %v2762, %v2782
        %v2802 = vmul.f32 %v2763, %v2782
        %v2803 = vmul.f32 %v2764, %v2782
        %v2804 = vmul.f32 %v2765, %v2782
        %v2805 = vmul.f32 %v2766, %v2782
        %v2806 = vmul.f32 %v2767, %v2782
        %v2807 = vmul.f32 %v2768, %v2782
        %v2808 = vmul.f32 %v2769, %v2782
        %v2809 = vmul.f32 %v2770, %v2782
        %v2810 = vmul.f32 %v2771, %v2782
        %v2811 = vmul.f32 %v2772, %v2782
        %v2812 = vmul.f32 %v2773, %v2782
        %v2813 = vmul.f32 %v2774, %v2782
        %v2814 = vmul.f32 %v2775, %v2782
        %v2815 = vmul.f32 %v2776, %v2782
        %v2816 = vld [vmem:[%s6] sm:$0x1]
        %v2818 = vlaneseq
        %v2819 = vshrl.u32 %v2818, 7
        %v2820 = vsub.s32 0, %v2819
        %v2821 = vrot.slane %v2816, %v2820
        %v2823 = vadd.f32 %v2784, %v2821
        %v2824 = vadd.f32 %v2785, %v2821
        %v2825 = vadd.f32 %v2786, %v2821
        %v2826 = vadd.f32 %v2787, %v2821
        %v2827 = vadd.f32 %v2788, %v2821
        %v2828 = vadd.f32 %v2789, %v2821
        %v2829 = vadd.f32 %v2790, %v2821
        %v2830 = vadd.f32 %v2791, %v2821
        %v2831 = vadd.f32 %v2792, %v2821
        %v2832 = vadd.f32 %v2793, %v2821
        %v2833 = vadd.f32 %v2794, %v2821
        %v2834 = vadd.f32 %v2795, %v2821
        %v2835 = vadd.f32 %v2796, %v2821
        %v2836 = vadd.f32 %v2797, %v2821
        %v2837 = vadd.f32 %v2798, %v2821
        %v2838 = vadd.f32 %v2799, %v2821
        %v2839 = vadd.f32 %v2800, %v2821
        %v2840 = vadd.f32 %v2801, %v2821
        %v2841 = vadd.f32 %v2802, %v2821
        %v2842 = vadd.f32 %v2803, %v2821
        %v2843 = vadd.f32 %v2804, %v2821
        %v2844 = vadd.f32 %v2805, %v2821
        %v2845 = vadd.f32 %v2806, %v2821
        %v2846 = vadd.f32 %v2807, %v2821
        %v2847 = vadd.f32 %v2808, %v2821
        %v2848 = vadd.f32 %v2809, %v2821
        %v2849 = vadd.f32 %v2810, %v2821
        %v2850 = vadd.f32 %v2811, %v2821
        %v2851 = vadd.f32 %v2812, %v2821
        %v2852 = vadd.f32 %v2813, %v2821
        %v2853 = vadd.f32 %v2814, %v2821
        %v2854 = vadd.f32 %v2815, %v2821
        %v2855 = vmax.f32 %v2823, 0.0
        %v2856 = vmax.f32 %v2824, 0.0
        %v2857 = vmax.f32 %v2825, 0.0
        %v2858 = vmax.f32 %v2826, 0.0
        %v2859 = vmax.f32 %v2827, 0.0
        %v2860 = vmax.f32 %v2828, 0.0
        %v2861 = vmax.f32 %v2829, 0.0
        %v2862 = vmax.f32 %v2830, 0.0
        %v2863 = vmax.f32 %v2831, 0.0
        %v2864 = vmax.f32 %v2832, 0.0
        %v2865 = vmax.f32 %v2833, 0.0
        %v2866 = vmax.f32 %v2834, 0.0
        %v2867 = vmax.f32 %v2835, 0.0
        %v2868 = vmax.f32 %v2836, 0.0
        %v2869 = vmax.f32 %v2837, 0.0
        %v2870 = vmax.f32 %v2838, 0.0
        %v2871 = vmax.f32 %v2839, 0.0
        %v2872 = vmax.f32 %v2840, 0.0
        %v2873 = vmax.f32 %v2841, 0.0
        %v2874 = vmax.f32 %v2842, 0.0
        %v2875 = vmax.f32 %v2843, 0.0
        %v2876 = vmax.f32 %v2844, 0.0
        %v2877 = vmax.f32 %v2845, 0.0
        %v2878 = vmax.f32 %v2846, 0.0
        %v2879 = vmax.f32 %v2847, 0.0
        %v2880 = vmax.f32 %v2848, 0.0
        %v2881 = vmax.f32 %v2849, 0.0
        %v2882 = vmax.f32 %v2850, 0.0
        %v2883 = vmax.f32 %v2851, 0.0
        %v2884 = vmax.f32 %v2852, 0.0
        %v2885 = vmax.f32 %v2853, 0.0
        %v2886 = vmax.f32 %v2854, 0.0
        %v2887 = vld [vmem:[%s7] sm:$0xff]
        %v2888 = vld [vmem:[%s7 + $0x8] sm:$0xff]
        %v2889 = vld [vmem:[%s7 + $0x10] sm:$0xff]
        %v2890 = vld [vmem:[%s7 + $0x18] sm:$0xff]
        %v2892 = vsel %vm1413, %v2855, 0
        %v2895 = vsel %vm1413, %v2856, 0
        %v2898 = vsel %vm1413, %v2857, 0
        %v2901 = vsel %vm1413, %v2858, 0
        %v2904 = vsel %vm1413, %v2859, 0
        %v2907 = vsel %vm1413, %v2860, 0
        %v2910 = vsel %vm1413, %v2861, 0
        %v2913 = vsel %vm1413, %v2862, 0
        %v2916 = vsel %vm1413, %v2863, 0
        %v2919 = vsel %vm1413, %v2864, 0
        %v2922 = vsel %vm1413, %v2865, 0
        %v2925 = vsel %vm1413, %v2866, 0
        %v2928 = vsel %vm1413, %v2867, 0
        %v2931 = vsel %vm1413, %v2868, 0
        %v2934 = vsel %vm1413, %v2869, 0
        %v2937 = vsel %vm1413, %v2870, 0
        %v2940 = vsel %vm1413, %v2871, 0
        %v2943 = vsel %vm1413, %v2872, 0
        %v2946 = vsel %vm1413, %v2873, 0
        %v2949 = vsel %vm1413, %v2874, 0
        %v2952 = vsel %vm1413, %v2875, 0
        %v2955 = vsel %vm1413, %v2876, 0
        %v2958 = vsel %vm1413, %v2877, 0
        %v2961 = vsel %vm1413, %v2878, 0
        %v2964 = vsel %vm1413, %v2879, 0
        %v2967 = vsel %vm1413, %v2880, 0
        %v2970 = vsel %vm1413, %v2881, 0
        %v2973 = vsel %vm1413, %v2882, 0
        %v2976 = vsel %vm1413, %v2883, 0
        %v2979 = vsel %vm1413, %v2884, 0
        %v2982 = vsel %vm1413, %v2885, 0
        %v2985 = vsel %vm1413, %v2886, 0
        %2987 = vmatprep.subr.mxu0 0.0
        %2988 = vmatpush1.msra.mxu0 0.0
        %2989 = vmatprep.subr.mxu0 0.0
        %2990 = vmatpush1.msra.mxu0 0.0
        %2991 = vmatprep.subr.mxu0 0.0
        %2992 = vmatpush1.msra.mxu0 0.0
        %2993 = vmatprep.subr.mxu0 0.0
        %2994 = vmatpush1.msra.mxu0 0.0
        %2995 = vmatprep.subr.mxu0 0.0
        %2996 = vmatpush1.msra.mxu0 0.0
        %2997 = vmatprep.subr.mxu0 0.0
        %2998 = vmatpush1.msra.mxu0 0.0
        %2999 = vmatprep.subr.mxu0 0.0
        %3000 = vmatpush1.msra.mxu0 0.0
        %3001 = vmatprep.subr.mxu0 0.0
        %3002 = vmatpush1.msra.mxu0 0.0
        %3003 = vmatprep.subr.mxu0 0.0
        %3004 = vmatpush1.msra.mxu0 0.0
        %3005 = vmatprep.subr.mxu0 0.0
        %3006 = vmatpush1.msra.mxu0 0.0
        %3007 = vmatprep.subr.mxu0 0.0
        %3008 = vmatpush1.msra.mxu0 0.0
        %3009 = vmatprep.subr.mxu0 0.0
        %3010 = vmatpush1.msra.mxu0 0.0
        %3011 = vmatprep.subr.mxu0 0.0
        %3012 = vmatpush1.msra.mxu0 %v2890
        %3013 = vmatprep.subr.mxu0 0.0
        %3014 = vmatpush1.msra.mxu0 %v2889
        %3015 = vmatprep.subr.mxu0 0.0
        %3016 = vmatpush1.msra.mxu0 %v2888
        %3017 = vmatprep.subr.mxu0 0.0
        %3018 = vmatpush1.msra.mxu0 %v2887
        %3019 = vmatprep.subr.mxu0 0.0
        %3020 = vmatpush2.msra.mxu0 0.0
        %3021 = vmatprep.subr.mxu0 0.0
        %3022 = vmatpush2.msra.mxu0 0.0
        %3023 = vmatprep.subr.mxu0 0.0
        %3024 = vmatpush2.msra.mxu0 0.0
        %3025 = vmatprep.subr.mxu0 0.0
        %3026 = vmatpush2.msra.mxu0 0.0
        %3027 = vmatprep.subr.mxu0 0.0
        %3028 = vmatpush2.msra.mxu0 0.0
        %3029 = vmatprep.subr.mxu0 0.0
        %3030 = vmatpush2.msra.mxu0 0.0
        %3031 = vmatprep.subr.mxu0 0.0
        %3032 = vmatpush2.msra.mxu0 0.0
        %3033 = vmatprep.subr.mxu0 0.0
        %3034 = vmatpush2.msra.mxu0 0.0
        %3035 = vmatprep.subr.mxu0 0.0
        %3036 = vmatpush2.msra.mxu0 0.0
        %3037 = vmatprep.subr.mxu0 0.0
        %3038 = vmatpush2.msra.mxu0 0.0
        %3039 = vmatprep.subr.mxu0 0.0
        %3040 = vmatpush2.msra.mxu0 0.0
        %3041 = vmatprep.subr.mxu0 0.0
        %3042 = vmatpush2.msra.mxu0 0.0
        %3043 = vmatprep.subr.mxu0 0.0
        %3044 = vmatpush2.msra.mxu0 0.0
        %3045 = vmatprep.subr.mxu0 0.0
        %3046 = vmatpush2.msra.mxu0 0.0
        %3047 = vmatprep.subr.mxu0 0.0
        %3048 = vmatpush2.msra.mxu0 0.0
        %3049 = vmatprep.subr.mxu0 0.0
        %3050 = vmatpush2.msra.mxu0 0.0
        %3051 = vmatprep.mubr.f32.mxu0 0.0
        %3052 = vmatmul.mubr.f32.gmra.mxu0 %v2892
        %v3053 = vpop.f32.mrf.mxu0
        %v3054 = vadd.f32 0.0, %v3053
        %v3055 = vpop.f32.mrf.mxu0
        %3056 = vmatprep.mubr.f32.mxu0 0.0
        %3057 = vmatmul.mubr.f32.gmra.mxu0 %v2895
        %v3058 = vpop.f32.mrf.mxu0
        %v3059 = vadd.f32 0.0, %v3058
        %v3060 = vpop.f32.mrf.mxu0
        %3061 = vmatprep.mubr.f32.mxu0 0.0
        %3062 = vmatmul.mubr.f32.gmra.mxu0 %v2898
        %v3063 = vpop.f32.mrf.mxu0
        %v3064 = vadd.f32 0.0, %v3063
        %v3065 = vpop.f32.mrf.mxu0
        %3066 = vmatprep.mubr.f32.mxu0 0.0
        %3067 = vmatmul.mubr.f32.gmra.mxu0 %v2901
        %v3068 = vpop.f32.mrf.mxu0
        %v3069 = vadd.f32 0.0, %v3068
        %v3070 = vpop.f32.mrf.mxu0
        %3071 = vmatprep.mubr.f32.mxu0 0.0
        %3072 = vmatmul.mubr.f32.gmra.mxu0 %v2904
        %v3073 = vpop.f32.mrf.mxu0
        %v3074 = vadd.f32 0.0, %v3073
        %v3075 = vpop.f32.mrf.mxu0
        %3076 = vmatprep.mubr.f32.mxu0 0.0
        %3077 = vmatmul.mubr.f32.gmra.mxu0 %v2907
        %v3078 = vpop.f32.mrf.mxu0
        %v3079 = vadd.f32 0.0, %v3078
        %v3080 = vpop.f32.mrf.mxu0
        %3081 = vmatprep.mubr.f32.mxu0 0.0
        %3082 = vmatmul.mubr.f32.gmra.mxu0 %v2910
        %v3083 = vpop.f32.mrf.mxu0
        %v3084 = vadd.f32 0.0, %v3083
        %v3085 = vpop.f32.mrf.mxu0
        %3086 = vmatprep.mubr.f32.mxu0 0.0
        %3087 = vmatmul.mubr.f32.gmra.mxu0 %v2913
        %v3088 = vpop.f32.mrf.mxu0
        %v3089 = vadd.f32 0.0, %v3088
        %v3090 = vpop.f32.mrf.mxu0
        %3091 = vmatprep.mubr.f32.mxu0 0.0
        %3092 = vmatmul.mubr.f32.gmra.mxu0 %v2916
        %v3093 = vpop.f32.mrf.mxu0
        %v3094 = vadd.f32 0.0, %v3093
        %v3095 = vpop.f32.mrf.mxu0
        %3096 = vmatprep.mubr.f32.mxu0 0.0
        %3097 = vmatmul.mubr.f32.gmra.mxu0 %v2919
        %v3098 = vpop.f32.mrf.mxu0
        %v3099 = vadd.f32 0.0, %v3098
        %v3100 = vpop.f32.mrf.mxu0
        %3101 = vmatprep.mubr.f32.mxu0 0.0
        %3102 = vmatmul.mubr.f32.gmra.mxu0 %v2922
        %v3103 = vpop.f32.mrf.mxu0
        %v3104 = vadd.f32 0.0, %v3103
        %v3105 = vpop.f32.mrf.mxu0
        %3106 = vmatprep.mubr.f32.mxu0 0.0
        %3107 = vmatmul.mubr.f32.gmra.mxu0 %v2925
        %v3108 = vpop.f32.mrf.mxu0
        %v3109 = vadd.f32 0.0, %v3108
        %v3110 = vpop.f32.mrf.mxu0
        %3111 = vmatprep.mubr.f32.mxu0 0.0
        %3112 = vmatmul.mubr.f32.gmra.mxu0 %v2928
        %v3113 = vpop.f32.mrf.mxu0
        %v3114 = vadd.f32 0.0, %v3113
        %v3115 = vpop.f32.mrf.mxu0
        %3116 = vmatprep.mubr.f32.mxu0 0.0
        %3117 = vmatmul.mubr.f32.gmra.mxu0 %v2931
        %v3118 = vpop.f32.mrf.mxu0
        %v3119 = vadd.f32 0.0, %v3118
        %v3120 = vpop.f32.mrf.mxu0
        %3121 = vmatprep.mubr.f32.mxu0 0.0
        %3122 = vmatmul.mubr.f32.gmra.mxu0 %v2934
        %v3123 = vpop.f32.mrf.mxu0
        %v3124 = vadd.f32 0.0, %v3123
        %v3125 = vpop.f32.mrf.mxu0
        %3126 = vmatprep.mubr.f32.mxu0 0.0
        %3127 = vmatmul.mubr.f32.gmra.mxu0 %v2937
        %v3128 = vpop.f32.mrf.mxu0
        %v3129 = vadd.f32 0.0, %v3128
        %v3130 = vpop.f32.mrf.mxu0
        %3131 = vmatprep.mubr.f32.mxu0 0.0
        %3132 = vmatmul.mubr.f32.gmra.mxu0 %v2940
        %v3133 = vpop.f32.mrf.mxu0
        %v3134 = vadd.f32 0.0, %v3133
        %v3135 = vpop.f32.mrf.mxu0
        %3136 = vmatprep.mubr.f32.mxu0 0.0
        %3137 = vmatmul.mubr.f32.gmra.mxu0 %v2943
        %v3138 = vpop.f32.mrf.mxu0
        %v3139 = vadd.f32 0.0, %v3138
        %v3140 = vpop.f32.mrf.mxu0
        %3141 = vmatprep.mubr.f32.mxu0 0.0
        %3142 = vmatmul.mubr.f32.gmra.mxu0 %v2946
        %v3143 = vpop.f32.mrf.mxu0
        %v3144 = vadd.f32 0.0, %v3143
        %v3145 = vpop.f32.mrf.mxu0
        %3146 = vmatprep.mubr.f32.mxu0 0.0
        %3147 = vmatmul.mubr.f32.gmra.mxu0 %v2949
        %v3148 = vpop.f32.mrf.mxu0
        %v3149 = vadd.f32 0.0, %v3148
        %v3150 = vpop.f32.mrf.mxu0
        %3151 = vmatprep.mubr.f32.mxu0 0.0
        %3152 = vmatmul.mubr.f32.gmra.mxu0 %v2952
        %v3153 = vpop.f32.mrf.mxu0
        %v3154 = vadd.f32 0.0, %v3153
        %v3155 = vpop.f32.mrf.mxu0
        %3156 = vmatprep.mubr.f32.mxu0 0.0
        %3157 = vmatmul.mubr.f32.gmra.mxu0 %v2955
        %v3158 = vpop.f32.mrf.mxu0
        %v3159 = vadd.f32 0.0, %v3158
        %v3160 = vpop.f32.mrf.mxu0
        %3161 = vmatprep.mubr.f32.mxu0 0.0
        %3162 = vmatmul.mubr.f32.gmra.mxu0 %v2958
        %v3163 = vpop.f32.mrf.mxu0
        %v3164 = vadd.f32 0.0, %v3163
        %v3165 = vpop.f32.mrf.mxu0
        %3166 = vmatprep.mubr.f32.mxu0 0.0
        %3167 = vmatmul.mubr.f32.gmra.mxu0 %v2961
        %v3168 = vpop.f32.mrf.mxu0
        %v3169 = vadd.f32 0.0, %v3168
        %v3170 = vpop.f32.mrf.mxu0
        %3171 = vmatprep.mubr.f32.mxu0 0.0
        %3172 = vmatmul.mubr.f32.gmra.mxu0 %v2964
        %v3173 = vpop.f32.mrf.mxu0
        %v3174 = vadd.f32 0.0, %v3173
        %v3175 = vpop.f32.mrf.mxu0
        %3176 = vmatprep.mubr.f32.mxu0 0.0
        %3177 = vmatmul.mubr.f32.gmra.mxu0 %v2967
        %v3178 = vpop.f32.mrf.mxu0
        %v3179 = vadd.f32 0.0, %v3178
        %v3180 = vpop.f32.mrf.mxu0
        %3181 = vmatprep.mubr.f32.mxu0 0.0
        %3182 = vmatmul.mubr.f32.gmra.mxu0 %v2970
        %v3183 = vpop.f32.mrf.mxu0
        %v3184 = vadd.f32 0.0, %v3183
        %v3185 = vpop.f32.mrf.mxu0
        %3186 = vmatprep.mubr.f32.mxu0 0.0
        %3187 = vmatmul.mubr.f32.gmra.mxu0 %v2973
        %v3188 = vpop.f32.mrf.mxu0
        %v3189 = vadd.f32 0.0, %v3188
        %v3190 = vpop.f32.mrf.mxu0
        %3191 = vmatprep.mubr.f32.mxu0 0.0
        %3192 = vmatmul.mubr.f32.gmra.mxu0 %v2976
        %v3193 = vpop.f32.mrf.mxu0
        %v3194 = vadd.f32 0.0, %v3193
        %v3195 = vpop.f32.mrf.mxu0
        %3196 = vmatprep.mubr.f32.mxu0 0.0
        %3197 = vmatmul.mubr.f32.gmra.mxu0 %v2979
        %v3198 = vpop.f32.mrf.mxu0
        %v3199 = vadd.f32 0.0, %v3198
        %v3200 = vpop.f32.mrf.mxu0
        %3201 = vmatprep.mubr.f32.mxu0 0.0
        %3202 = vmatmul.mubr.f32.gmra.mxu0 %v2982
        %v3203 = vpop.f32.mrf.mxu0
        %v3204 = vadd.f32 0.0, %v3203
        %v3205 = vpop.f32.mrf.mxu0
        %3206 = vmatprep.mubr.f32.mxu0 0.0
        %3207 = vmatmul.mubr.f32.gmra.mxu0 %v2985
        %v3208 = vpop.f32.mrf.mxu0
        %v3209 = vadd.f32 0.0, %v3208
        %v3210 = vpop.f32.mrf.mxu0
        %3211 = vdwg.mxu0
        %v3212 = vld [vmem:[%s8] sm:$0x1]
        %v3214 = vlaneseq
        %v3215 = vshrl.u32 %v3214, 7
        %v3216 = vsub.s32 0, %v3215
        %v3217 = vrot.slane %v3212, %v3216
        %v3219 = vmul.f32 %v3054, %v3217
        %v3220 = vmul.f32 %v3059, %v3217
        %v3221 = vmul.f32 %v3064, %v3217
        %v3222 = vmul.f32 %v3069, %v3217
        %v3223 = vmul.f32 %v3074, %v3217
        %v3224 = vmul.f32 %v3079, %v3217
        %v3225 = vmul.f32 %v3084, %v3217
        %v3226 = vmul.f32 %v3089, %v3217
        %v3227 = vmul.f32 %v3094, %v3217
        %v3228 = vmul.f32 %v3099, %v3217
        %v3229 = vmul.f32 %v3104, %v3217
        %v3230 = vmul.f32 %v3109, %v3217
        %v3231 = vmul.f32 %v3114, %v3217
        %v3232 = vmul.f32 %v3119, %v3217
        %v3233 = vmul.f32 %v3124, %v3217
        %v3234 = vmul.f32 %v3129, %v3217
        %v3235 = vmul.f32 %v3134, %v3217
        %v3236 = vmul.f32 %v3139, %v3217
        %v3237 = vmul.f32 %v3144, %v3217
        %v3238 = vmul.f32 %v3149, %v3217
        %v3239 = vmul.f32 %v3154, %v3217
        %v3240 = vmul.f32 %v3159, %v3217
        %v3241 = vmul.f32 %v3164, %v3217
        %v3242 = vmul.f32 %v3169, %v3217
        %v3243 = vmul.f32 %v3174, %v3217
        %v3244 = vmul.f32 %v3179, %v3217
        %v3245 = vmul.f32 %v3184, %v3217
        %v3246 = vmul.f32 %v3189, %v3217
        %v3247 = vmul.f32 %v3194, %v3217
        %v3248 = vmul.f32 %v3199, %v3217
        %v3249 = vmul.f32 %v3204, %v3217
        %v3250 = vmul.f32 %v3209, %v3217
        %v3251 = vld [vmem:[%s9] sm:$0x1]
        %v3253 = vlaneseq
        %v3254 = vshrl.u32 %v3253, 7
        %v3255 = vsub.s32 0, %v3254
        %v3256 = vrot.slane %v3251, %v3255
        %v3258 = vadd.f32 %v3219, %v3256
        %v3259 = vadd.f32 %v3220, %v3256
        %v3260 = vadd.f32 %v3221, %v3256
        %v3261 = vadd.f32 %v3222, %v3256
        %v3262 = vadd.f32 %v3223, %v3256
        %v3263 = vadd.f32 %v3224, %v3256
        %v3264 = vadd.f32 %v3225, %v3256
        %v3265 = vadd.f32 %v3226, %v3256
        %v3266 = vadd.f32 %v3227, %v3256
        %v3267 = vadd.f32 %v3228, %v3256
        %v3268 = vadd.f32 %v3229, %v3256
        %v3269 = vadd.f32 %v3230, %v3256
        %v3270 = vadd.f32 %v3231, %v3256
        %v3271 = vadd.f32 %v3232, %v3256
        %v3272 = vadd.f32 %v3233, %v3256
        %v3273 = vadd.f32 %v3234, %v3256
        %v3274 = vadd.f32 %v3235, %v3256
        %v3275 = vadd.f32 %v3236, %v3256
        %v3276 = vadd.f32 %v3237, %v3256
        %v3277 = vadd.f32 %v3238, %v3256
        %v3278 = vadd.f32 %v3239, %v3256
        %v3279 = vadd.f32 %v3240, %v3256
        %v3280 = vadd.f32 %v3241, %v3256
        %v3281 = vadd.f32 %v3242, %v3256
        %v3282 = vadd.f32 %v3243, %v3256
        %v3283 = vadd.f32 %v3244, %v3256
        %v3284 = vadd.f32 %v3245, %v3256
        %v3285 = vadd.f32 %v3246, %v3256
        %v3286 = vadd.f32 %v3247, %v3256
        %v3287 = vadd.f32 %v3248, %v3256
        %v3288 = vadd.f32 %v3249, %v3256
        %v3289 = vadd.f32 %v3250, %v3256
        %v3290 = vmax.f32 %v3258, 0.0
        %v3291 = vmax.f32 %v3259, 0.0
        %v3292 = vmax.f32 %v3260, 0.0
        %v3293 = vmax.f32 %v3261, 0.0
        %v3294 = vmax.f32 %v3262, 0.0
        %v3295 = vmax.f32 %v3263, 0.0
        %v3296 = vmax.f32 %v3264, 0.0
        %v3297 = vmax.f32 %v3265, 0.0
        %v3298 = vmax.f32 %v3266, 0.0
        %v3299 = vmax.f32 %v3267, 0.0
        %v3300 = vmax.f32 %v3268, 0.0
        %v3301 = vmax.f32 %v3269, 0.0
        %v3302 = vmax.f32 %v3270, 0.0
        %v3303 = vmax.f32 %v3271, 0.0
        %v3304 = vmax.f32 %v3272, 0.0
        %v3305 = vmax.f32 %v3273, 0.0
        %v3306 = vmax.f32 %v3274, 0.0
        %v3307 = vmax.f32 %v3275, 0.0
        %v3308 = vmax.f32 %v3276, 0.0
        %v3309 = vmax.f32 %v3277, 0.0
        %v3310 = vmax.f32 %v3278, 0.0
        %v3311 = vmax.f32 %v3279, 0.0
        %v3312 = vmax.f32 %v3280, 0.0
        %v3313 = vmax.f32 %v3281, 0.0
        %v3314 = vmax.f32 %v3282, 0.0
        %v3315 = vmax.f32 %v3283, 0.0
        %v3316 = vmax.f32 %v3284, 0.0
        %v3317 = vmax.f32 %v3285, 0.0
        %v3318 = vmax.f32 %v3286, 0.0
        %v3319 = vmax.f32 %v3287, 0.0
        %v3320 = vmax.f32 %v3288, 0.0
        %v3321 = vmax.f32 %v3289, 0.0
        %3322 = vxpose.xlu0.b32.start [1/16] %v3290, 128
        %3323 = vxpose.xlu0.b32.cont [2/16] %v3291, 128
        %3324 = vxpose.xlu0.b32.cont [3/16] %v3292, 128
        %3325 = vxpose.xlu0.b32.cont [4/16] %v3293, 128
        %3326 = vxpose.xlu0.b32.cont [5/16] %v3294, 128
        %3327 = vxpose.xlu0.b32.cont [6/16] %v3295, 128
        %3328 = vxpose.xlu0.b32.cont [7/16] %v3296, 128
        %3329 = vxpose.xlu0.b32.cont [8/16] %v3297, 128
        %3330 = vxpose.xlu0.b32.cont [9/16] %v3298, 128
        %3331 = vxpose.xlu0.b32.cont [10/16] %v3299, 128
        %3332 = vxpose.xlu0.b32.cont [11/16] %v3300, 128
        %3333 = vxpose.xlu0.b32.cont [12/16] %v3301, 128
        %3334 = vxpose.xlu0.b32.cont [13/16] %v3302, 128
        %3335 = vxpose.xlu0.b32.cont [14/16] %v3303, 128
        %3336 = vxpose.xlu0.b32.cont [15/16] %v3304, 128
        %3337 = vxpose.xlu0.b32.end [16/16] %v3305, 128
        %v3338 = vpop.trf.xlu0
        %v3339 = vpop.trf.xlu0
        %v3340 = vpop.trf.xlu0
        %v3341 = vpop.trf.xlu0
        %v3342 = vpop.trf.xlu0
        %v3343 = vpop.trf.xlu0
        %v3344 = vpop.trf.xlu0
        %v3345 = vpop.trf.xlu0
        %v3346 = vpop.trf.xlu0
        %v3347 = vpop.trf.xlu0
        %v3348 = vpop.trf.xlu0
        %v3349 = vpop.trf.xlu0
        %v3350 = vpop.trf.xlu0
        %v3351 = vpop.trf.xlu0
        %v3352 = vpop.trf.xlu0
        %v3353 = vpop.trf.xlu0
        %3354 = vxpose.xlu0.b32.start [1/16] %v3306, 128
        %3355 = vxpose.xlu0.b32.cont [2/16] %v3307, 128
        %3356 = vxpose.xlu0.b32.cont [3/16] %v3308, 128
        %3357 = vxpose.xlu0.b32.cont [4/16] %v3309, 128
        %3358 = vxpose.xlu0.b32.cont [5/16] %v3310, 128
        %3359 = vxpose.xlu0.b32.cont [6/16] %v3311, 128
        %3360 = vxpose.xlu0.b32.cont [7/16] %v3312, 128
        %3361 = vxpose.xlu0.b32.cont [8/16] %v3313, 128
        %3362 = vxpose.xlu0.b32.cont [9/16] %v3314, 128
        %3363 = vxpose.xlu0.b32.cont [10/16] %v3315, 128
        %3364 = vxpose.xlu0.b32.cont [11/16] %v3316, 128
        %3365 = vxpose.xlu0.b32.cont [12/16] %v3317, 128
        %3366 = vxpose.xlu0.b32.cont [13/16] %v3318, 128
        %3367 = vxpose.xlu0.b32.cont [14/16] %v3319, 128
        %3368 = vxpose.xlu0.b32.cont [15/16] %v3320, 128
        %3369 = vxpose.xlu0.b32.end [16/16] %v3321, 128
        %v3370 = vpop.trf.xlu0
        %v3371 = vpop.trf.xlu0
        %v3372 = vpop.trf.xlu0
        %v3373 = vpop.trf.xlu0
        %v3374 = vpop.trf.xlu0
        %v3375 = vpop.trf.xlu0
        %v3376 = vpop.trf.xlu0
        %v3377 = vpop.trf.xlu0
        %v3378 = vpop.trf.xlu0
        %v3379 = vpop.trf.xlu0
        %v3380 = vpop.trf.xlu0
        %v3381 = vpop.trf.xlu0
        %v3382 = vpop.trf.xlu0
        %v3383 = vpop.trf.xlu0
        %v3384 = vpop.trf.xlu0
        %v3385 = vpop.trf.xlu0
        %3386 = vst [vmem:[%s352] sm:$0xff] %v3338
        %3387 = vst [vmem:[%s352 + $0x8] sm:$0xff] %v3370
        %3388 = vst [vmem:[%s352 + $0x10] sm:$0xff] %v3339
        %3389 = vst [vmem:[%s352 + $0x18] sm:$0xff] %v3371
        %s3390 = sand.u32 %s247, 1
        %s3391 = scalar_lea.sflag [#allocation4], %s3390
        %s3392 = sand.u32 %s247, 1
        %s3393 = smul.addr %s3392, 32
        %s3394 = scalar_lea.vmem [#allocation3], %s3393
        // Predicated region
        $region61: #{tpu_custom_call.1} parent=59 // pred_check
          %p3395 = pneg %p257
        $region62: #{tpu_custom_call.1} parent=59 // pred_check_branch
          %3397 = sbr.rel (%p3395) target = $region64
        $region63: #{tpu_custom_call.1} parent=59 // pred_region
          %s3399 = ssub.s32 512, 512
          %3400 = vsyncadd %s3391, %s3399
          %s3401 = smul.addr %s24, 4
          %s3402 = smul.addr %s3401, 128
          %s3403 = scalar_lea.hbm %s10, %s3402
          %s3404 = sshll.u32 %s3394, 4
          %s3405 = int_to_ptr.vmem [resolvable:$true] %s3404
          %3410 = dma.vmem_to_hbm [thread:$0]  %s3405, 512, %s3403, %s3391, 256, 256, 16
        $region64: #{tpu_custom_call.1} parent=59 // pred_fallthru
          _
      $region60: #{tpu_custom_call.1} parent=5 // pred_fallthru
        _
      %p3411 = scmp.le.s32.totalorder 2, %s19
      // Predicated region
      $region65: #{tpu_custom_call.1} parent=5 // pred_check
        %p3412 = pneg %p3411
      $region66: #{tpu_custom_call.1} parent=5 // pred_check_branch
        %3414 = sbr.rel (%p3412) target = $region68
      $region67: #{tpu_custom_call.1} parent=5 // pred_region
        %s3415 = ssub.s32 %s19, 2
        // Predicated region
        $region69: #{tpu_custom_call.1} parent=67 // pred_check
          %p3416 = pneg %p263
        $region70: #{tpu_custom_call.1} parent=67 // pred_check_branch
          %3418 = sbr.rel (%p3416) target = $region72
        $region71: #{tpu_custom_call.1} parent=67 // pred_region
          %s3419 = sand.u32 %s248, 1
          %s3420 = scalar_lea.sflag [#allocation4], %s3419
          %s3421 = sand.u32 %s248, 1
          %s3422 = smul.addr %s3421, 32
          %s3423 = scalar_lea.vmem [#allocation3], %s3422
          %3424 = dma.done %s3420, 512
        $region72: #{tpu_custom_call.1} parent=67 // pred_fallthru
          _
      $region68: #{tpu_custom_call.1} parent=5 // pred_fallthru
        _
    $region6: #{tpu_custom_call.1} parent=1 // loop_footer
      %s23 = sadd.s32 1, %s19
    $region7: #{tpu_custom_call.1} parent=1 // loop_footer_branch
      %18 = sbr.rel target = $region3
    $region8: #{tpu_custom_call.1} parent=1 // loop_exit
      _
    %3425 = vsyncpa [#allocation4], 1
    %s3426 = scalar_lea.sflag [#allocation4], 1
    %3427 = vsyncpa %s3426, 1

</llo_original>
